<compile_context>
chip_gen: v7x
topology: tpu7x:2x2x1
jax: 0.10.0
libtpu: 0.0.40
codegen_flags: <defaults>
</compile_context>

<pallas_src>
import math

import jax
import jax.numpy as jnp
from jax.experimental import pallas as pl
from jax.experimental.pallas import tpu as pltpu

# ---------------------------------------------------------------------------
# Irreps configuration
# ---------------------------------------------------------------------------
MUL1 = 4      # multiplicity in irreps_in1 (both 0e and 1e)
MUL2 = 1      # multiplicity in irreps_in2
MULO = 8      # multiplicity in irreps_out
IN1_DIM = MUL1 * 1 + MUL1 * 3       # 16
IN2_DIM = MUL2 * 1 + MUL2 * 3       # 4
OUT_DIM = MULO * 1 + MULO * 3       # 32
PATH_NUMEL = MUL1 * MUL2 * MULO     # 32 weights per instruction
WEIGHT_NUMEL = 5 * PATH_NUMEL       # 160
GROUPED = IN2_DIM * OUT_DIM         # 128 = fused lane width of the factorized form

# Normalization coefficients (path_weight alpha), exactly as the PyTorch __init__
# computes them for component/element normalization:
#   i_out = 0 paths: alpha = sqrt(dim(0e) / sum_fan) = sqrt(1 / 8)
#   i_out = 1 paths: alpha = sqrt(dim(1e) / sum_fan) = sqrt(3 / 12) = 0.5
ALPHA_000 = math.sqrt(1.0 / 8.0)
ALPHA_110 = math.sqrt(1.0 / 8.0)
ALPHA_011 = 0.5
ALPHA_101 = 0.5
ALPHA_111 = 0.5
INV_SQRT3 = 1.0 / math.sqrt(3.0)
INV_SQRT6 = 1.0 / math.sqrt(6.0)   # wigner_3j(1,1,1) = eps_ijk / sqrt(6)

# init_rescale_bias(): weights of each instruction scaled by 1/sqrt(fan_in of its
# output slice); slice 0 fan_in = 4+4 = 8, slice 1 fan_in = 4+4+4 = 12.
SQRT_K = [1.0 / math.sqrt(8.0), 1.0 / math.sqrt(8.0),
          1.0 / math.sqrt(12.0), 1.0 / math.sqrt(12.0), 1.0 / math.sqrt(12.0)]

# Levi-Civita symbol (nonzeros only).
EPS = {(0, 1, 2): 1.0, (1, 2, 0): 1.0, (2, 0, 1): 1.0,
       (0, 2, 1): -1.0, (2, 1, 0): -1.0, (1, 0, 2): -1.0}


def _round_up(a, b):
    return ((a + b - 1) // b) * b


# ---------------------------------------------------------------------------
# One-time weight prep: fold every constant into a (16,4,32) bilinear tensor T,
#   out[z, o] = sum_{i,j} T[i, j, o] * x[z, i] * y[z, j]
# and emit the factorized matrices
#   G[i, 32*j + o] = T[i, j, o]            (16, 128)
#   S[j', 32*j + o] = delta(j, j')         (4, 128)   (0/1 selector)
#   R[32*j + o', o] = delta(o', o)         (128, 32)  (4 stacked I_32)
# so that  out = ((x @ G) * (y @ S)) @ R.
#
# Output layout (e3nn interleaved): col w (0..7) = scalar channel w,
#                                   col 8+3w+k   = 1e channel w, component k.
# Input layout: x[:, u] (u<4) = 0e, x[:, 4+3u+i] = 1e chan u comp i;
#               y[:, 0] = 0e, y[:, 1+j] = 1e comp j.
# ---------------------------------------------------------------------------
def build_factorized_weights(weights):
    W0, W1, W2, W3, W4 = weights   # each (MUL1, MULO), already module-rescaled
    c0 = ALPHA_000
    c1 = ALPHA_110 * INV_SQRT3
    c2 = ALPHA_011 * INV_SQRT3
    c3 = ALPHA_101 * INV_SQRT3
    c4 = ALPHA_111 * INV_SQRT6

    T = jnp.zeros((IN1_DIM, IN2_DIM, OUT_DIM), jnp.float32)

    # (0,0,0): out[:, w] += c0 * W0[u,w] * x[:, u] * y[:, 0]
    T = T.at[0:MUL1, 0, 0:MULO].add(c0 * W0)

    # (1,1,0): out[:, w] += c1 * W1[u,w] * x[:, 4+3u+i] * y[:, 1+i]
    for i in range(3):
        T = T.at[MUL1 + i:IN1_DIM:3, 1 + i, 0:MULO].add(c1 * W1)

    # (0,1,1): out[:, 8+3w+j] += c2 * W2[u,w] * x[:, u] * y[:, 1+j]
    for j in range(3):
        T = T.at[0:MUL1, 1 + j, MULO + j:OUT_DIM:3].add(c2 * W2)

    # (1,0,1): out[:, 8+3w+i] += c3 * W3[u,w] * x[:, 4+3u+i] * y[:, 0]
    for i in range(3):
        T = T.at[MUL1 + i:IN1_DIM:3, 0, MULO + i:OUT_DIM:3].add(c3 * W3)

    # (1,1,1): out[:, 8+3w+k] += c4 * eps[i,j,k] * W4[u,w] * x[:, 4+3u+i] * y[:, 1+j]
    for (i, j, k), sgn in EPS.items():
        T = T.at[MUL1 + i:IN1_DIM:3, 1 + j, MULO + k:OUT_DIM:3].add(sgn * c4 * W4)

    G = T.reshape(IN1_DIM, GROUPED)                                   # (16, 128)
    S = jnp.kron(jnp.eye(IN2_DIM, dtype=jnp.float32),
                 jnp.ones((1, OUT_DIM), jnp.float32))                 # (4, 128)
    R = jnp.tile(jnp.eye(OUT_DIM, dtype=jnp.float32), (IN2_DIM, 1))   # (128, 32)
    return G, S, R


# ---------------------------------------------------------------------------
# Pallas kernel: 3 MXU matmuls + one full-lane VPU multiply per batch tile.
#   xg  = x @ G   (tm, 128)   lane-dense
#   ys  = y @ S   (tm, 128)   lane-dense broadcast of y per 32-lane group
#   out = (xg * ys) @ R       (tm, 32)   sums the 4 lane groups
# No slices, tiles, rolls or concatenates anywhere in the hot path.
# ---------------------------------------------------------------------------
def _tp_kernel(x_ref, y_ref, g_ref, s_ref, r_ref, o_ref):
    xg = jnp.dot(x_ref[...], g_ref[...], preferred_element_type=jnp.float32)
    ys = jnp.dot(y_ref[...], s_ref[...], preferred_element_type=jnp.float32)
    out = jnp.dot(xg * ys, r_ref[...], preferred_element_type=jnp.float32)
    o_ref[...] = out.astype(o_ref.dtype)


# ---------------------------------------------------------------------------
# Wrapper
# ---------------------------------------------------------------------------
def simple_tensor_product(x, y, weights, *, tm=4096):
    """x: (Z, 16), y: (Z, 4), weights: list of 5 (MUL1, MULO) matrices -> (Z, 32).

    tm is sweepable; padded double-buffered I/O is ~tm*3 KiB of VMEM, so ~8-16K
    fits under the 48 MiB limit set below (v7x physical VMEM is 64 MiB).
    """
    Z = x.shape[0]
    assert x.shape[-1] == IN1_DIM and y.shape[-1] == IN2_DIM

    G, S, R = build_factorized_weights(weights)   # tiny one-time prep

    # Tile: multiple of 8; cap at ceil(Z/2) (rounded up to 8) so the grid has at
    # least 2 steps and ("parallel",) can shard across both v7x TensorCores.
    half = _round_up(max(1, -(-Z // 2)), 8)
    tm = max(8, min(_round_up(tm, 8), half))
    grid = (pl.cdiv(Z, tm),)                      # ragged last block is masked

    out = pl.pallas_call(
        _tp_kernel,
        grid=grid,
        in_specs=[
            pl.BlockSpec((tm, IN1_DIM), lambda i: (i, 0)),
            pl.BlockSpec((tm, IN2_DIM), lambda i: (i, 0)),
            pl.BlockSpec((IN1_DIM, GROUPED), lambda i: (0, 0)),   # VMEM-resident G
            pl.BlockSpec((IN2_DIM, GROUPED), lambda i: (0, 0)),   # VMEM-resident S
            pl.BlockSpec((GROUPED, OUT_DIM), lambda i: (0, 0)),   # VMEM-resident R
        ],
        out_specs=pl.BlockSpec((tm, OUT_DIM), lambda i: (i, 0)),
        out_shape=jax.ShapeDtypeStruct((Z, OUT_DIM), jnp.float32),
        compiler_params=pltpu.CompilerParams(
            dimension_semantics=("parallel",),
            vmem_limit_bytes=48 * 1024 * 1024),
    )(x, y, G, S, R)
    return out


# ---------------------------------------------------------------------------
# Deterministic parameter init (mirrors __init__: randn(weight_numel), then each
# instruction's view multiplied by its slice's sqrt_k in init_rescale_bias()).
# ---------------------------------------------------------------------------
def init_weights(key):
    flat = jax.random.normal(key, (WEIGHT_NUMEL,), dtype=jnp.float32)
    ws = []
    off = 0
    for k in SQRT_K:
        ws.append(flat[off:off + PATH_NUMEL].reshape(MUL1, MULO) * k)
        off += PATH_NUMEL
    return ws


# ---------------------------------------------------------------------------
# Pure-JAX reference (uses the UNFOLDED module weights, like the PyTorch forward)
# ---------------------------------------------------------------------------
def reference(x, y, ws):
    Z = x.shape[0]
    W0, W1, W2, W3, W4 = ws
    x1_0 = x[:, :MUL1]
    x1_1 = x[:, MUL1:].reshape(Z, MUL1, 3)
    x2_0 = y[:, 0:1]
    x2_1 = y[:, 1:4]

    eps = jnp.zeros((3, 3, 3), jnp.float32)
    for (i, j, k), sgn in EPS.items():
        eps = eps.at[i, j, k].set(sgn)

    r1 = ALPHA_000 * (jnp.einsum('zu,uw->zw', x1_0, W0) * x2_0)
    r2 = ALPHA_110 * jnp.einsum('zui,zi,uw->zw', x1_1, x2_1, W1) * INV_SQRT3
    out0 = r1 + r2

    r3 = ALPHA_011 * jnp.einsum('zu,uw,zj->zwj', x1_0, W2, x2_1) * INV_SQRT3
    r4 = (ALPHA_101 * jnp.einsum('zui,uw->zwi', x1_1, W3)
          * x2_0[:, :, None] * INV_SQRT3)
    r5 = ALPHA_111 * jnp.einsum('uw,ijk,zui,zj->zwk', W4, eps, x1_1, x2_1) * INV_SQRT6
    out1 = (r3 + r4 + r5).reshape(Z, MULO * 3)
    return jnp.concatenate([out0, out1], axis=-1)


if __name__ == "__main__":
    key = jax.random.PRNGKey(0)
    kx, ky, kw = jax.random.split(key, 3)

    Z = 2048
    x = jax.random.normal(kx, (Z, IN1_DIM), dtype=jnp.float32)
    y = jax.random.normal(ky, (Z, IN2_DIM), dtype=jnp.float32)
    ws = init_weights(kw)

    out = jax.block_until_ready(simple_tensor_product(x, y, ws))
    ref = reference(x, y, ws)
    assert out.shape == (Z, OUT_DIM)
    assert jnp.allclose(out, ref, atol=1e-4, rtol=1e-4), "mismatch vs reference"

    # Ragged batch with an explicit small tile: exercises cdiv grid, >=2 steps,
    # and the masked partial last block (no wrapper pad / output slice).
    Z2 = 1100
    out2 = jax.block_until_ready(simple_tensor_product(x[:Z2], y[:Z2], ws, tm=512))
    assert out2.shape == (Z2, OUT_DIM)
    assert jnp.allclose(out2, ref[:Z2], atol=1e-4, rtol=1e-4), "ragged mismatch"

    print("KERNEL_OK")
</pallas_src>

<mosaic_0001>
module attributes {stable_mosaic.version = 11 : i64} {
  func.func @_tp_kernel(%arg0: i32, %arg1: memref<1024x16xf32, #tpu.memory_space<vmem>>, %arg2: memref<1024x4xf32, #tpu.memory_space<vmem>>, %arg3: memref<16x128xf32, #tpu.memory_space<vmem>>, %arg4: memref<4x128xf32, #tpu.memory_space<vmem>>, %arg5: memref<128x32xf32, #tpu.memory_space<vmem>>, %arg6: memref<1024x32xf32, #tpu.memory_space<vmem>>) attributes {dimension_semantics = [#tpu.dimension_semantics<parallel>], iteration_bounds = array<i64: 2>, scalar_prefetch = 0 : i64, scratch_operands = 0 : i64, tpu.core_type = #tpu.core_type<tc>, window_params = [{transform_indices = @transform_0, window_bounds = array<i64: 1024, 16>}, {transform_indices = @transform_1, window_bounds = array<i64: 1024, 4>}, {pipeline_mode = #tpu.pipeline_mode<synchronous>, transform_indices = @transform_2, window_bounds = array<i64: 16, 128>}, {pipeline_mode = #tpu.pipeline_mode<synchronous>, transform_indices = @transform_3, window_bounds = array<i64: 4, 128>}, {pipeline_mode = #tpu.pipeline_mode<synchronous>, transform_indices = @transform_4, window_bounds = array<i64: 128, 32>}, {transform_indices = @transform_5, window_bounds = array<i64: 1024, 32>}]} {
    %c0 = arith.constant 0 : index
    %c0_0 = arith.constant 0 : index
    %0 = vector.load %arg1[%c0, %c0_0] : memref<1024x16xf32, #tpu.memory_space<vmem>>, vector<1024x16xf32>
    %c0_1 = arith.constant 0 : index
    %c0_2 = arith.constant 0 : index
    %1 = vector.load %arg3[%c0_1, %c0_2] : memref<16x128xf32, #tpu.memory_space<vmem>>, vector<16x128xf32>
    %cst = arith.constant dense<0.000000e+00> : vector<1024x128xf32>
    %2 = tpu.matmul %0, %1, %cst {dimension_numbers = #tpu.dot_dimension_numbers<[1], [0], [0], [1], [0, 0, 1, 1], [], []>} : vector<1024x16xf32>, vector<16x128xf32>, vector<1024x128xf32> -> vector<1024x128xf32>
    %c0_3 = arith.constant 0 : index
    %c0_4 = arith.constant 0 : index
    %3 = vector.load %arg2[%c0_3, %c0_4] : memref<1024x4xf32, #tpu.memory_space<vmem>>, vector<1024x4xf32>
    %c0_5 = arith.constant 0 : index
    %c0_6 = arith.constant 0 : index
    %4 = vector.load %arg4[%c0_5, %c0_6] : memref<4x128xf32, #tpu.memory_space<vmem>>, vector<4x128xf32>
    %cst_7 = arith.constant dense<0.000000e+00> : vector<1024x128xf32>
    %5 = tpu.matmul %3, %4, %cst_7 {dimension_numbers = #tpu.dot_dimension_numbers<[1], [0], [0], [1], [0, 0, 1, 1], [], []>} : vector<1024x4xf32>, vector<4x128xf32>, vector<1024x128xf32> -> vector<1024x128xf32>
    %6 = arith.mulf %2, %5 : vector<1024x128xf32>
    %c0_8 = arith.constant 0 : index
    %c0_9 = arith.constant 0 : index
    %7 = vector.load %arg5[%c0_8, %c0_9] : memref<128x32xf32, #tpu.memory_space<vmem>>, vector<128x32xf32>
    %cst_10 = arith.constant dense<0.000000e+00> : vector<1024x32xf32>
    %8 = tpu.matmul %6, %7, %cst_10 {dimension_numbers = #tpu.dot_dimension_numbers<[1], [0], [0], [1], [0, 0, 1, 1], [], []>} : vector<1024x128xf32>, vector<128x32xf32>, vector<1024x32xf32> -> vector<1024x32xf32>
    %c0_11 = arith.constant 0 : index
    %c0_12 = arith.constant 0 : index
    %9 = vector.load %arg6[%c0_11, %c0_12] : memref<1024x32xf32, #tpu.memory_space<vmem>>, vector<1024x32xf32>
    tpu.vector_store %arg6[%c0_11, %c0_12], %8 {strides = array<i32>} : memref<1024x32xf32, #tpu.memory_space<vmem>>, vector<1024x32xf32>,
    return
  }
  func.func @transform_0(%arg0: i32) -> (i32, i32) {
    %c0_i32 = arith.constant 0 : i32
    %c0_i32_0 = arith.constant 0 : i32
    return %arg0, %c0_i32 : i32, i32
  }
  func.func @transform_1(%arg0: i32) -> (i32, i32) {
    %c0_i32 = arith.constant 0 : i32
    %c0_i32_0 = arith.constant 0 : i32
    return %arg0, %c0_i32 : i32, i32
  }
  func.func @transform_2(%arg0: i32) -> (i32, i32) {
    %c0_i32 = arith.constant 0 : i32
    %c0_i32_0 = arith.constant 0 : i32
    %c0_i32_1 = arith.constant 0 : i32
    return %c0_i32, %c0_i32_0 : i32, i32
  }
  func.func @transform_3(%arg0: i32) -> (i32, i32) {
    %c0_i32 = arith.constant 0 : i32
    %c0_i32_0 = arith.constant 0 : i32
    %c0_i32_1 = arith.constant 0 : i32
    return %c0_i32, %c0_i32_0 : i32, i32
  }
  func.func @transform_4(%arg0: i32) -> (i32, i32) {
    %c0_i32 = arith.constant 0 : i32
    %c0_i32_0 = arith.constant 0 : i32
    %c0_i32_1 = arith.constant 0 : i32
    return %c0_i32, %c0_i32_0 : i32, i32
  }
  func.func @transform_5(%arg0: i32) -> (i32, i32) {
    %c0_i32 = arith.constant 0 : i32
    %c0_i32_0 = arith.constant 0 : i32
    return %arg0, %c0_i32 : i32, i32
  }
}

</mosaic_0001>

<llo_original>
// kernel: tpu_custom_call.1
$region0: #{tpu_custom_call.1}
  #allocation0 [shape = 'u32[]', space=smem, size = 0x4, offset = 0x4, fixed_abs, tag = 'smem constant byte address 0x4 - core index']
  #allocation1 [shape = 'u32[144,128]{1,0:T(1,128)}', space=vmem, size = 0x12000, scoped, tag = 'internal scratch']
  %s0 = inlined_call_operand.vmem [shape: f32[2048,16], index: 0, kind: input, shape index: {}]
  %s1 = inlined_call_operand.vmem [shape: f32[2048,4], index: 1, kind: input, shape index: {}]
  %s2 = inlined_call_operand.vmem [shape: f32[16,128], index: 2, kind: input, shape index: {}]
  %s3 = inlined_call_operand.vmem [shape: f32[4,128], index: 3, kind: input, shape index: {}]
  %s4 = inlined_call_operand.vmem [shape: f32[128,32], index: 4, kind: input, shape index: {}]
  %s5 = inlined_call_operand.vmem [shape: f32[2048,32], index: 5, kind: output, shape index: {}]
  %s6 = sld [smem:[#allocation0]]
  $region53: #{tpu_custom_call.1} parent=0
    _
  %s8 = ssub.s32 1, %s6
  %s9 = scalar_select 0, %s8, %s6
  loop: start=0, step=1, limit=4
  $region2: #{tpu_custom_call.1} parent=0 // loop_pre_header
    _
  $region3: #{tpu_custom_call.1} parent=0 // loop_header
    %s11 = sphi 0, %s15
    %p12 = scmp.ge.s32.totalorder %s11, 4
    %s21 = sphi 0, %s23
    %s24 = sphi 0, %s21
    %s25 = sphi 0, %s24
    %s41 = sphi 0, %s25
    %s47 = sphi 0, %s49
    %s50 = sphi 0, %s47
    %s51 = sphi 0, %s50
    %s67 = sphi 0, %s51
    %s71 = sphi 0, %s71
    %s73 = sphi 0, %s71
    %s74 = sphi 0, %s73
    %s88 = sphi 0, %s74
    %s92 = sphi 0, %s92
    %s94 = sphi 0, %s92
    %s95 = sphi 0, %s94
    %s109 = sphi 0, %s95
    %s113 = sphi 0, %s113
    %s115 = sphi 0, %s113
    %s116 = sphi 0, %s115
    %s130 = sphi 0, %s116
    %s136 = sphi 0, %s138
    %s139 = sphi 0, %s136
    %s140 = sphi 0, %s139
    %s156 = sphi 0, %s140
  $region4: #{tpu_custom_call.1} parent=0 // loop_header_branch
    %14 = sbr.rel (%p12) target = $region8
  $region5: #{tpu_custom_call.1} parent=0 // loop_body
    %s16 = ssub.s32 %s11, 1
    %s17 = ssub.s32 %s11, 2
    %s18 = sadd.s32 %s11, 1
    %s19 = ssub.s32 %s11, %s18
    %p20 = scmp.eq.s32.totalorder %s19, 0
    %s22 = sadd.s32 %s21, 1
    %s23 = scalar_select %p20, %s21, %s22
    %p26 = pneg %p20
    %p27 = scmp.eq.s32.totalorder %s11, 1
    %p28 = por %p26, %p27
    %p29 = scmp.ne.s32.totalorder %s21, %s24
    %p30 = scmp.eq.s32.totalorder %s11, 0
    %p31 = por %p29, %p30
    %p32 = scmp.ne.s32.totalorder %s21, %s24
    %p33 = scmp.eq.s32.totalorder %s16, 1
    %p34 = por %p32, %p33
    %p35 = scmp.ne.s32.totalorder %s24, %s25
    %p36 = scmp.eq.s32.totalorder %s16, 0
    %p37 = por %p35, %p36
    %p38 = scmp.ne.s32.totalorder %s24, %s25
    %p39 = scmp.eq.s32.totalorder %s17, 1
    %p40 = por %p38, %p39
    %p42 = scmp.ne.s32.totalorder %s25, %s41
    %p43 = scmp.eq.s32.totalorder %s17, 0
    %p44 = por %p42, %p43
    %s45 = ssub.s32 %s11, %s18
    %p46 = scmp.eq.s32.totalorder %s45, 0
    %s48 = sadd.s32 %s47, 1
    %s49 = scalar_select %p46, %s47, %s48
    %p52 = pneg %p46
    %p53 = scmp.eq.s32.totalorder %s11, 1
    %p54 = por %p52, %p53
    %p55 = scmp.ne.s32.totalorder %s47, %s50
    %p56 = scmp.eq.s32.totalorder %s11, 0
    %p57 = por %p55, %p56
    %p58 = scmp.ne.s32.totalorder %s47, %s50
    %p59 = scmp.eq.s32.totalorder %s16, 1
    %p60 = por %p58, %p59
    %p61 = scmp.ne.s32.totalorder %s50, %s51
    %p62 = scmp.eq.s32.totalorder %s16, 0
    %p63 = por %p61, %p62
    %p64 = scmp.ne.s32.totalorder %s50, %s51
    %p65 = scmp.eq.s32.totalorder %s17, 1
    %p66 = por %p64, %p65
    %p68 = scmp.ne.s32.totalorder %s51, %s67
    %p69 = scmp.eq.s32.totalorder %s17, 0
    %p70 = por %p68, %p69
    %s72 = sadd.s32 %s71, 1
    %p75 = scmp.eq.s32.totalorder %s11, 1
    %p76 = scmp.ne.s32.totalorder %s71, %s73
    %p77 = scmp.eq.s32.totalorder %s11, 0
    %p78 = por %p76, %p77
    %p79 = scmp.ne.s32.totalorder %s71, %s73
    %p80 = scmp.eq.s32.totalorder %s16, 1
    %p81 = por %p79, %p80
    %p82 = scmp.ne.s32.totalorder %s73, %s74
    %p83 = scmp.eq.s32.totalorder %s16, 0
    %p84 = por %p82, %p83
    %p85 = scmp.ne.s32.totalorder %s73, %s74
    %p86 = scmp.eq.s32.totalorder %s17, 1
    %p87 = por %p85, %p86
    %p89 = scmp.ne.s32.totalorder %s74, %s88
    %p90 = scmp.eq.s32.totalorder %s17, 0
    %p91 = por %p89, %p90
    %s93 = sadd.s32 %s92, 1
    %p96 = scmp.eq.s32.totalorder %s11, 1
    %p97 = scmp.ne.s32.totalorder %s92, %s94
    %p98 = scmp.eq.s32.totalorder %s11, 0
    %p99 = por %p97, %p98
    %p100 = scmp.ne.s32.totalorder %s92, %s94
    %p101 = scmp.eq.s32.totalorder %s16, 1
    %p102 = por %p100, %p101
    %p103 = scmp.ne.s32.totalorder %s94, %s95
    %p104 = scmp.eq.s32.totalorder %s16, 0
    %p105 = por %p103, %p104
    %p106 = scmp.ne.s32.totalorder %s94, %s95
    %p107 = scmp.eq.s32.totalorder %s17, 1
    %p108 = por %p106, %p107
    %p110 = scmp.ne.s32.totalorder %s95, %s109
    %p111 = scmp.eq.s32.totalorder %s17, 0
    %p112 = por %p110, %p111
    %s114 = sadd.s32 %s113, 1
    %p117 = scmp.eq.s32.totalorder %s11, 1
    %p118 = scmp.ne.s32.totalorder %s113, %s115
    %p119 = scmp.eq.s32.totalorder %s11, 0
    %p120 = por %p118, %p119
    %p121 = scmp.ne.s32.totalorder %s113, %s115
    %p122 = scmp.eq.s32.totalorder %s16, 1
    %p123 = por %p121, %p122
    %p124 = scmp.ne.s32.totalorder %s115, %s116
    %p125 = scmp.eq.s32.totalorder %s16, 0
    %p126 = por %p124, %p125
    %p127 = scmp.ne.s32.totalorder %s115, %s116
    %p128 = scmp.eq.s32.totalorder %s17, 1
    %p129 = por %p127, %p128
    %p131 = scmp.ne.s32.totalorder %s116, %s130
    %p132 = scmp.eq.s32.totalorder %s17, 0
    %p133 = por %p131, %p132
    %s134 = ssub.s32 %s11, %s18
    %p135 = scmp.eq.s32.totalorder %s134, 0
    %s137 = sadd.s32 %s136, 1
    %s138 = scalar_select %p135, %s136, %s137
    %p141 = pneg %p135
    %p142 = scmp.eq.s32.totalorder %s11, 1
    %p143 = por %p141, %p142
    %p144 = scmp.ne.s32.totalorder %s136, %s139
    %p145 = scmp.eq.s32.totalorder %s11, 0
    %p146 = por %p144, %p145
    %p147 = scmp.ne.s32.totalorder %s136, %s139
    %p148 = scmp.eq.s32.totalorder %s16, 1
    %p149 = por %p147, %p148
    %p150 = scmp.ne.s32.totalorder %s139, %s140
    %p151 = scmp.eq.s32.totalorder %s16, 0
    %p152 = por %p150, %p151
    %p153 = scmp.ne.s32.totalorder %s139, %s140
    %p154 = scmp.eq.s32.totalorder %s17, 1
    %p155 = por %p153, %p154
    %p157 = scmp.ne.s32.totalorder %s140, %s156
    %p158 = scmp.eq.s32.totalorder %s17, 0
    %p159 = por %p157, %p158
    %p160 = scmp.le.s32.totalorder 1, %s11
    %p161 = scmp.lt.s32.totalorder %s11, 3
    %p162 = pnand %p160, %p161
    %p163 = pneg %p162
    // Predicated region
    $region9: #{tpu_custom_call.1} parent=5 // pred_check
      _
    $region10: #{tpu_custom_call.1} parent=5 // pred_check_branch
      %165 = sbr.rel (%p162) target = $region12
    $region11: #{tpu_custom_call.1} parent=5 // pred_region
      %s166 = ssub.s32 %s11, 1
      // Predicated region
      $region13: #{tpu_custom_call.1} parent=11 // pred_check
        %p167 = pneg %p84
      $region14: #{tpu_custom_call.1} parent=11 // pred_check_branch
        %169 = sbr.rel (%p167) target = $region16
      $region15: #{tpu_custom_call.1} parent=11 // pred_region
        _
      $region16: #{tpu_custom_call.1} parent=11 // pred_fallthru
        _
      // Predicated region
      $region17: #{tpu_custom_call.1} parent=11 // pred_check
        %p170 = pneg %p105
      $region18: #{tpu_custom_call.1} parent=11 // pred_check_branch
        %172 = sbr.rel (%p170) target = $region20
      $region19: #{tpu_custom_call.1} parent=11 // pred_region
        _
      $region20: #{tpu_custom_call.1} parent=11 // pred_fallthru
        _
      // Predicated region
      $region21: #{tpu_custom_call.1} parent=11 // pred_check
        %p173 = pneg %p126
      $region22: #{tpu_custom_call.1} parent=11 // pred_check_branch
        %175 = sbr.rel (%p173) target = $region24
      $region23: #{tpu_custom_call.1} parent=11 // pred_region
        _
      $region24: #{tpu_custom_call.1} parent=11 // pred_fallthru
        _
    $region12: #{tpu_custom_call.1} parent=5 // pred_fallthru
      _
    %p176 = scmp.lt.s32.totalorder %s11, 2
    // Predicated region
    $region25: #{tpu_custom_call.1} parent=5 // pred_check
      %p177 = pneg %p176
    $region26: #{tpu_custom_call.1} parent=5 // pred_check_branch
      %179 = sbr.rel (%p177) target = $region28
    $region27: #{tpu_custom_call.1} parent=5 // pred_region
      // Predicated region
      $region29: #{tpu_custom_call.1} parent=27 // pred_check
        %p180 = pneg %p31
      $region30: #{tpu_custom_call.1} parent=27 // pred_check_branch
        %182 = sbr.rel (%p180) target = $region32
      $region31: #{tpu_custom_call.1} parent=27 // pred_region
        %s183 = smul.u32 128, %s11
        %p184 = scmp.lt.s32.totalorder %s183, 255
        %s185 = scalar_select %p184, %s183, 255
        %s186 = smul.addr %s185, 8
        %s187 = scalar_lea.vmem %s0, %s186
        %s188 = smul.u32 128, %s11
      $region32: #{tpu_custom_call.1} parent=27 // pred_fallthru
        _
      // Predicated region
      $region33: #{tpu_custom_call.1} parent=27 // pred_check
        %p189 = pneg %p57
      $region34: #{tpu_custom_call.1} parent=27 // pred_check_branch
        %191 = sbr.rel (%p189) target = $region36
      $region35: #{tpu_custom_call.1} parent=27 // pred_region
        %s192 = smul.u32 128, %s11
        %p193 = scmp.lt.s32.totalorder %s192, 255
        %s194 = scalar_select %p193, %s192, 255
        %s195 = smul.addr %s194, 8
        %s196 = scalar_lea.vmem %s1, %s195
        %s197 = smul.u32 128, %s11
      $region36: #{tpu_custom_call.1} parent=27 // pred_fallthru
        _
    $region28: #{tpu_custom_call.1} parent=5 // pred_fallthru
      _
    %p198 = scmp.le.s32.totalorder 1, %s11
    %p199 = scmp.lt.s32.totalorder %s11, 3
    %p200 = pnand %p198, %p199
    %p201 = pneg %p200
    // Predicated region
    $region37: #{tpu_custom_call.1} parent=5 // pred_check
      _
    $region38: #{tpu_custom_call.1} parent=5 // pred_check_branch
      %203 = sbr.rel (%p200) target = $region40
    $region39: #{tpu_custom_call.1} parent=5 // pred_region
      %s204 = ssub.s32 %s11, 1
      %s205 = smul.u32 128, %s16
      %p206 = scmp.lt.s32.totalorder %s205, 255
      %s207 = scalar_select %p206, %s205, 255
      %s208 = smul.addr %s207, 8
      %s209 = scalar_lea.vmem %s0, %s208
      %p210 = pneg %p37
      %p211 = pneg %p34
      %s212 = smul.u32 128, %s16
      %p213 = scmp.lt.s32.totalorder %s212, 255
      %s214 = scalar_select %p213, %s212, 255
      %s215 = smul.addr %s214, 8
      %s216 = scalar_lea.vmem %s1, %s215
      %p217 = pneg %p63
      %p218 = pneg %p60
      %p219 = pneg %p84
      %p220 = pneg %p81
      %p221 = pneg %p105
      %p222 = pneg %p102
      %p223 = pneg %p126
      %p224 = pneg %p123
      %p225 = pneg %p152
      %p226 = pneg %p149
      %s227 = smul.u32 128, %s16
      %p228 = scmp.lt.s32.totalorder %s227, 255
      %s229 = scalar_select %p228, %s227, 255
      %s230 = smul.addr %s229, 8
      %s231 = scalar_lea.vmem %s5, %s230
      %s232 = smul.u32 128, %s16
      %p233 = scmp.lt.s32.totalorder %s232, 255
      %s234 = scalar_select %p233, %s232, 255
      %s235 = smul.addr %s234, 8
      %s236 = scalar_lea.vmem %s0, %s235
      %s237 = smul.u32 128, %s16
      %s238 = smul.u32 128, %s16
      %p239 = scmp.lt.s32.totalorder %s238, 255
      %s240 = scalar_select %p239, %s238, 255
      %s241 = smul.addr %s240, 8
      %s242 = scalar_lea.vmem %s1, %s241
      %s243 = smul.u32 128, %s16
      %s244 = smul.u32 128, %s16
      %p245 = scmp.lt.s32.totalorder %s244, 255
      %s246 = scalar_select %p245, %s244, 255
      %s247 = smul.addr %s246, 8
      %s248 = scalar_lea.vmem %s5, %s247
      %s249 = smul.u32 128, %s16
      %v250 = vld [vmem:[%s236] sm:$0xff]
      %v251 = vld [vmem:[%s236 + $0x8] sm:$0xff]
      %v252 = vld [vmem:[%s236 + $0x10] sm:$0xff]
      %v253 = vld [vmem:[%s236 + $0x18] sm:$0xff]
      %v254 = vld [vmem:[%s236 + $0x20] sm:$0xff]
      %v255 = vld [vmem:[%s236 + $0x28] sm:$0xff]
      %v256 = vld [vmem:[%s236 + $0x30] sm:$0xff]
      %v257 = vld [vmem:[%s236 + $0x38] sm:$0xff]
      %v258 = vld [vmem:[%s236 + $0x40] sm:$0xff]
      %v259 = vld [vmem:[%s236 + $0x48] sm:$0xff]
      %v260 = vld [vmem:[%s236 + $0x50] sm:$0xff]
      %v261 = vld [vmem:[%s236 + $0x58] sm:$0xff]
      %v262 = vld [vmem:[%s236 + $0x60] sm:$0xff]
      %v263 = vld [vmem:[%s236 + $0x68] sm:$0xff]
      %v264 = vld [vmem:[%s236 + $0x70] sm:$0xff]
      %v265 = vld [vmem:[%s236 + $0x78] sm:$0xff]
      %v266 = vld [vmem:[%s236 + $0x80] sm:$0xff]
      %v267 = vld [vmem:[%s236 + $0x88] sm:$0xff]
      %v268 = vld [vmem:[%s236 + $0x90] sm:$0xff]
      %v269 = vld [vmem:[%s236 + $0x98] sm:$0xff]
      %v270 = vld [vmem:[%s236 + $0xa0] sm:$0xff]
      %v271 = vld [vmem:[%s236 + $0xa8] sm:$0xff]
      %v272 = vld [vmem:[%s236 + $0xb0] sm:$0xff]
      %v273 = vld [vmem:[%s236 + $0xb8] sm:$0xff]
      %v274 = vld [vmem:[%s236 + $0xc0] sm:$0xff]
      %v275 = vld [vmem:[%s236 + $0xc8] sm:$0xff]
      %v276 = vld [vmem:[%s236 + $0xd0] sm:$0xff]
      %v277 = vld [vmem:[%s236 + $0xd8] sm:$0xff]
      %v278 = vld [vmem:[%s236 + $0xe0] sm:$0xff]
      %v279 = vld [vmem:[%s236 + $0xe8] sm:$0xff]
      %v280 = vld [vmem:[%s236 + $0xf0] sm:$0xff]
      %v281 = vld [vmem:[%s236 + $0xf8] sm:$0xff]
      %v282 = vld [vmem:[%s236 + $0x100] sm:$0xff]
      %v283 = vld [vmem:[%s236 + $0x108] sm:$0xff]
      %v284 = vld [vmem:[%s236 + $0x110] sm:$0xff]
      %v285 = vld [vmem:[%s236 + $0x118] sm:$0xff]
      %v286 = vld [vmem:[%s236 + $0x120] sm:$0xff]
      %v287 = vld [vmem:[%s236 + $0x128] sm:$0xff]
      %v288 = vld [vmem:[%s236 + $0x130] sm:$0xff]
      %v289 = vld [vmem:[%s236 + $0x138] sm:$0xff]
      %v290 = vld [vmem:[%s236 + $0x140] sm:$0xff]
      %v291 = vld [vmem:[%s236 + $0x148] sm:$0xff]
      %v292 = vld [vmem:[%s236 + $0x150] sm:$0xff]
      %v293 = vld [vmem:[%s236 + $0x158] sm:$0xff]
      %v294 = vld [vmem:[%s236 + $0x160] sm:$0xff]
      %v295 = vld [vmem:[%s236 + $0x168] sm:$0xff]
      %v296 = vld [vmem:[%s236 + $0x170] sm:$0xff]
      %v297 = vld [vmem:[%s236 + $0x178] sm:$0xff]
      %v298 = vld [vmem:[%s236 + $0x180] sm:$0xff]
      %v299 = vld [vmem:[%s236 + $0x188] sm:$0xff]
      %v300 = vld [vmem:[%s236 + $0x190] sm:$0xff]
      %v301 = vld [vmem:[%s236 + $0x198] sm:$0xff]
      %v302 = vld [vmem:[%s236 + $0x1a0] sm:$0xff]
      %v303 = vld [vmem:[%s236 + $0x1a8] sm:$0xff]
      %v304 = vld [vmem:[%s236 + $0x1b0] sm:$0xff]
      %v305 = vld [vmem:[%s236 + $0x1b8] sm:$0xff]
      %v306 = vld [vmem:[%s236 + $0x1c0] sm:$0xff]
      %v307 = vld [vmem:[%s236 + $0x1c8] sm:$0xff]
      %v308 = vld [vmem:[%s236 + $0x1d0] sm:$0xff]
      %v309 = vld [vmem:[%s236 + $0x1d8] sm:$0xff]
      %v310 = vld [vmem:[%s236 + $0x1e0] sm:$0xff]
      %v311 = vld [vmem:[%s236 + $0x1e8] sm:$0xff]
      %v312 = vld [vmem:[%s236 + $0x1f0] sm:$0xff]
      %v313 = vld [vmem:[%s236 + $0x1f8] sm:$0xff]
      %v314 = vld [vmem:[%s236 + $0x200] sm:$0xff]
      %v315 = vld [vmem:[%s236 + $0x208] sm:$0xff]
      %v316 = vld [vmem:[%s236 + $0x210] sm:$0xff]
      %v317 = vld [vmem:[%s236 + $0x218] sm:$0xff]
      %v318 = vld [vmem:[%s236 + $0x220] sm:$0xff]
      %v319 = vld [vmem:[%s236 + $0x228] sm:$0xff]
      %v320 = vld [vmem:[%s236 + $0x230] sm:$0xff]
      %v321 = vld [vmem:[%s236 + $0x238] sm:$0xff]
      %v322 = vld [vmem:[%s236 + $0x240] sm:$0xff]
      %v323 = vld [vmem:[%s236 + $0x248] sm:$0xff]
      %v324 = vld [vmem:[%s236 + $0x250] sm:$0xff]
      %v325 = vld [vmem:[%s236 + $0x258] sm:$0xff]
      %v326 = vld [vmem:[%s236 + $0x260] sm:$0xff]
      %v327 = vld [vmem:[%s236 + $0x268] sm:$0xff]
      %v328 = vld [vmem:[%s236 + $0x270] sm:$0xff]
      %v329 = vld [vmem:[%s236 + $0x278] sm:$0xff]
      %v330 = vld [vmem:[%s236 + $0x280] sm:$0xff]
      %v331 = vld [vmem:[%s236 + $0x288] sm:$0xff]
      %v332 = vld [vmem:[%s236 + $0x290] sm:$0xff]
      %v333 = vld [vmem:[%s236 + $0x298] sm:$0xff]
      %v334 = vld [vmem:[%s236 + $0x2a0] sm:$0xff]
      %v335 = vld [vmem:[%s236 + $0x2a8] sm:$0xff]
      %v336 = vld [vmem:[%s236 + $0x2b0] sm:$0xff]
      %v337 = vld [vmem:[%s236 + $0x2b8] sm:$0xff]
      %v338 = vld [vmem:[%s236 + $0x2c0] sm:$0xff]
      %v339 = vld [vmem:[%s236 + $0x2c8] sm:$0xff]
      %v340 = vld [vmem:[%s236 + $0x2d0] sm:$0xff]
      %v341 = vld [vmem:[%s236 + $0x2d8] sm:$0xff]
      %v342 = vld [vmem:[%s236 + $0x2e0] sm:$0xff]
      %v343 = vld [vmem:[%s236 + $0x2e8] sm:$0xff]
      %v344 = vld [vmem:[%s236 + $0x2f0] sm:$0xff]
      %v345 = vld [vmem:[%s236 + $0x2f8] sm:$0xff]
      %v346 = vld [vmem:[%s236 + $0x300] sm:$0xff]
      %v347 = vld [vmem:[%s236 + $0x308] sm:$0xff]
      %v348 = vld [vmem:[%s236 + $0x310] sm:$0xff]
      %v349 = vld [vmem:[%s236 + $0x318] sm:$0xff]
      %v350 = vld [vmem:[%s236 + $0x320] sm:$0xff]
      %v351 = vld [vmem:[%s236 + $0x328] sm:$0xff]
      %v352 = vld [vmem:[%s236 + $0x330] sm:$0xff]
      %v353 = vld [vmem:[%s236 + $0x338] sm:$0xff]
      %v354 = vld [vmem:[%s236 + $0x340] sm:$0xff]
      %v355 = vld [vmem:[%s236 + $0x348] sm:$0xff]
      %v356 = vld [vmem:[%s236 + $0x350] sm:$0xff]
      %v357 = vld [vmem:[%s236 + $0x358] sm:$0xff]
      %v358 = vld [vmem:[%s236 + $0x360] sm:$0xff]
      %v359 = vld [vmem:[%s236 + $0x368] sm:$0xff]
      %v360 = vld [vmem:[%s236 + $0x370] sm:$0xff]
      %v361 = vld [vmem:[%s236 + $0x378] sm:$0xff]
      %v362 = vld [vmem:[%s236 + $0x380] sm:$0xff]
      %v363 = vld [vmem:[%s236 + $0x388] sm:$0xff]
      %v364 = vld [vmem:[%s236 + $0x390] sm:$0xff]
      %v365 = vld [vmem:[%s236 + $0x398] sm:$0xff]
      %v366 = vld [vmem:[%s236 + $0x3a0] sm:$0xff]
      %v367 = vld [vmem:[%s236 + $0x3a8] sm:$0xff]
      %v368 = vld [vmem:[%s236 + $0x3b0] sm:$0xff]
      %v369 = vld [vmem:[%s236 + $0x3b8] sm:$0xff]
      %v370 = vld [vmem:[%s236 + $0x3c0] sm:$0xff]
      %v371 = vld [vmem:[%s236 + $0x3c8] sm:$0xff]
      %v372 = vld [vmem:[%s236 + $0x3d0] sm:$0xff]
      %v373 = vld [vmem:[%s236 + $0x3d8] sm:$0xff]
      %v374 = vld [vmem:[%s236 + $0x3e0] sm:$0xff]
      %v375 = vld [vmem:[%s236 + $0x3e8] sm:$0xff]
      %v376 = vld [vmem:[%s236 + $0x3f0] sm:$0xff]
      %v377 = vld [vmem:[%s236 + $0x3f8] sm:$0xff]
      %v378 = vld [vmem:[%s2] sm:$0xff]
      %v379 = vld [vmem:[%s2 + $0x8] sm:$0xff]
      %vm380 = vcmask 130048
      %v382 = vsel %vm380, %v250, 0
      %v385 = vsel %vm380, %v251, 0
      %v388 = vsel %vm380, %v252, 0
      %v391 = vsel %vm380, %v253, 0
      %v394 = vsel %vm380, %v254, 0
      %v397 = vsel %vm380, %v255, 0
      %v400 = vsel %vm380, %v256, 0
      %v403 = vsel %vm380, %v257, 0
      %v406 = vsel %vm380, %v258, 0
      %v409 = vsel %vm380, %v259, 0
      %v412 = vsel %vm380, %v260, 0
      %v415 = vsel %vm380, %v261, 0
      %v418 = vsel %vm380, %v262, 0
      %v421 = vsel %vm380, %v263, 0
      %v424 = vsel %vm380, %v264, 0
      %v427 = vsel %vm380, %v265, 0
      %v430 = vsel %vm380, %v266, 0
      %v433 = vsel %vm380, %v267, 0
      %v436 = vsel %vm380, %v268, 0
      %v439 = vsel %vm380, %v269, 0
      %v442 = vsel %vm380, %v270, 0
      %v445 = vsel %vm380, %v271, 0
      %v448 = vsel %vm380, %v272, 0
      %v451 = vsel %vm380, %v273, 0
      %v454 = vsel %vm380, %v274, 0
      %v457 = vsel %vm380, %v275, 0
      %v460 = vsel %vm380, %v276, 0
      %v463 = vsel %vm380, %v277, 0
      %v466 = vsel %vm380, %v278, 0
      %v469 = vsel %vm380, %v279, 0
      %v472 = vsel %vm380, %v280, 0
      %v475 = vsel %vm380, %v281, 0
      %v478 = vsel %vm380, %v282, 0
      %v481 = vsel %vm380, %v283, 0
      %v484 = vsel %vm380, %v284, 0
      %v487 = vsel %vm380, %v285, 0
      %v490 = vsel %vm380, %v286, 0
      %v493 = vsel %vm380, %v287, 0
      %v496 = vsel %vm380, %v288, 0
      %v499 = vsel %vm380, %v289, 0
      %v502 = vsel %vm380, %v290, 0
      %v505 = vsel %vm380, %v291, 0
      %v508 = vsel %vm380, %v292, 0
      %v511 = vsel %vm380, %v293, 0
      %v514 = vsel %vm380, %v294, 0
      %v517 = vsel %vm380, %v295, 0
      %v520 = vsel %vm380, %v296, 0
      %v523 = vsel %vm380, %v297, 0
      %v526 = vsel %vm380, %v298, 0
      %v529 = vsel %vm380, %v299, 0
      %v532 = vsel %vm380, %v300, 0
      %v535 = vsel %vm380, %v301, 0
      %v538 = vsel %vm380, %v302, 0
      %v541 = vsel %vm380, %v303, 0
      %v544 = vsel %vm380, %v304, 0
      %v547 = vsel %vm380, %v305, 0
      %v550 = vsel %vm380, %v306, 0
      %v553 = vsel %vm380, %v307, 0
      %v556 = vsel %vm380, %v308, 0
      %v559 = vsel %vm380, %v309, 0
      %v562 = vsel %vm380, %v310, 0
      %v565 = vsel %vm380, %v311, 0
      %v568 = vsel %vm380, %v312, 0
      %v571 = vsel %vm380, %v313, 0
      %v574 = vsel %vm380, %v314, 0
      %v577 = vsel %vm380, %v315, 0
      %v580 = vsel %vm380, %v316, 0
      %v583 = vsel %vm380, %v317, 0
      %v586 = vsel %vm380, %v318, 0
      %v589 = vsel %vm380, %v319, 0
      %v592 = vsel %vm380, %v320, 0
      %v595 = vsel %vm380, %v321, 0
      %v598 = vsel %vm380, %v322, 0
      %v601 = vsel %vm380, %v323, 0
      %v604 = vsel %vm380, %v324, 0
      %v607 = vsel %vm380, %v325, 0
      %v610 = vsel %vm380, %v326, 0
      %v613 = vsel %vm380, %v327, 0
      %v616 = vsel %vm380, %v328, 0
      %v619 = vsel %vm380, %v329, 0
      %v622 = vsel %vm380, %v330, 0
      %v625 = vsel %vm380, %v331, 0
      %v628 = vsel %vm380, %v332, 0
      %v631 = vsel %vm380, %v333, 0
      %v634 = vsel %vm380, %v334, 0
      %v637 = vsel %vm380, %v335, 0
      %v640 = vsel %vm380, %v336, 0
      %v643 = vsel %vm380, %v337, 0
      %v646 = vsel %vm380, %v338, 0
      %v649 = vsel %vm380, %v339, 0
      %v652 = vsel %vm380, %v340, 0
      %v655 = vsel %vm380, %v341, 0
      %v658 = vsel %vm380, %v342, 0
      %v661 = vsel %vm380, %v343, 0
      %v664 = vsel %vm380, %v344, 0
      %v667 = vsel %vm380, %v345, 0
      %v670 = vsel %vm380, %v346, 0
      %v673 = vsel %vm380, %v347, 0
      %v676 = vsel %vm380, %v348, 0
      %v679 = vsel %vm380, %v349, 0
      %v682 = vsel %vm380, %v350, 0
      %v685 = vsel %vm380, %v351, 0
      %v688 = vsel %vm380, %v352, 0
      %v691 = vsel %vm380, %v353, 0
      %v694 = vsel %vm380, %v354, 0
      %v697 = vsel %vm380, %v355, 0
      %v700 = vsel %vm380, %v356, 0
      %v703 = vsel %vm380, %v357, 0
      %v706 = vsel %vm380, %v358, 0
      %v709 = vsel %vm380, %v359, 0
      %v712 = vsel %vm380, %v360, 0
      %v715 = vsel %vm380, %v361, 0
      %v718 = vsel %vm380, %v362, 0
      %v721 = vsel %vm380, %v363, 0
      %v724 = vsel %vm380, %v364, 0
      %v727 = vsel %vm380, %v365, 0
      %v730 = vsel %vm380, %v366, 0
      %v733 = vsel %vm380, %v367, 0
      %v736 = vsel %vm380, %v368, 0
      %v739 = vsel %vm380, %v369, 0
      %v742 = vsel %vm380, %v370, 0
      %v745 = vsel %vm380, %v371, 0
      %v748 = vsel %vm380, %v372, 0
      %v751 = vsel %vm380, %v373, 0
      %v754 = vsel %vm380, %v374, 0
      %v757 = vsel %vm380, %v375, 0
      %v760 = vsel %vm380, %v376, 0
      %v763 = vsel %vm380, %v377, 0
      %765 = vmatprep.subr.mxu0 0.0
      %766 = vmatpush1.msra.mxu0 %v378
      %767 = vmatprep.subr.mxu0 0.0
      %768 = vmatpush1.msra.mxu0 %v379
      %769 = vmatprep.subr.mxu0 0.0
      %770 = vmatpush1.msra.mxu0 0.0
      %771 = vmatprep.subr.mxu0 0.0
      %772 = vmatpush1.msra.mxu0 0.0
      %773 = vmatprep.subr.mxu0 0.0
      %774 = vmatpush1.msra.mxu0 0.0
      %775 = vmatprep.subr.mxu0 0.0
      %776 = vmatpush1.msra.mxu0 0.0
      %777 = vmatprep.subr.mxu0 0.0
      %778 = vmatpush1.msra.mxu0 0.0
      %779 = vmatprep.subr.mxu0 0.0
      %780 = vmatpush1.msra.mxu0 0.0
      %781 = vmatprep.subr.mxu0 0.0
      %782 = vmatpush1.msra.mxu0 0.0
      %783 = vmatprep.subr.mxu0 0.0
      %784 = vmatpush1.msra.mxu0 0.0
      %785 = vmatprep.subr.mxu0 0.0
      %786 = vmatpush1.msra.mxu0 0.0
      %787 = vmatprep.subr.mxu0 0.0
      %788 = vmatpush1.msra.mxu0 0.0
      %789 = vmatprep.subr.mxu0 0.0
      %790 = vmatpush1.msra.mxu0 0.0
      %791 = vmatprep.subr.mxu0 0.0
      %792 = vmatpush1.msra.mxu0 0.0
      %793 = vmatprep.subr.mxu0 0.0
      %794 = vmatpush1.msra.mxu0 0.0
      %795 = vmatprep.subr.mxu0 0.0
      %796 = vmatpush1.msra.mxu0 0.0
      %797 = vmatprep.subr.mxu0 0.0
      %798 = vmatpush1.msra.mxu0 0.0
      %799 = vmatprep.subr.mxu0 0.0
      %800 = vmatpush1.msra.mxu0 0.0
      %801 = vmatprep.subr.mxu0 0.0
      %802 = vmatpush1.msra.mxu0 0.0
      %803 = vmatprep.subr.mxu0 0.0
      %804 = vmatpush1.msra.mxu0 0.0
      %805 = vmatprep.subr.mxu0 0.0
      %806 = vmatpush1.msra.mxu0 0.0
      %807 = vmatprep.subr.mxu0 0.0
      %808 = vmatpush1.msra.mxu0 0.0
      %809 = vmatprep.subr.mxu0 0.0
      %810 = vmatpush1.msra.mxu0 0.0
      %811 = vmatprep.subr.mxu0 0.0
      %812 = vmatpush1.msra.mxu0 0.0
      %813 = vmatprep.subr.mxu0 0.0
      %814 = vmatpush1.msra.mxu0 0.0
      %815 = vmatprep.subr.mxu0 0.0
      %816 = vmatpush1.msra.mxu0 0.0
      %817 = vmatprep.subr.mxu0 0.0
      %818 = vmatpush1.msra.mxu0 0.0
      %819 = vmatprep.subr.mxu0 0.0
      %820 = vmatpush1.msra.mxu0 0.0
      %821 = vmatprep.subr.mxu0 0.0
      %822 = vmatpush1.msra.mxu0 0.0
      %823 = vmatprep.subr.mxu0 0.0
      %824 = vmatpush1.msra.mxu0 0.0
      %825 = vmatprep.subr.mxu0 0.0
      %826 = vmatpush1.msra.mxu0 0.0
      %827 = vmatprep.subr.mxu0 0.0
      %828 = vmatpush1.msra.mxu0 0.0
      %829 = vmatprep.mubr.f32.mxu0 0.0
      %830 = vmatmul.mubr.f32.gmra.mrb[0].mxu0 %v382
      %v831 = vpop.f32.mrb[0].mxu0
      %v832 = vadd.f32 0.0, %v831
      %v833 = vpop.f32.mrb[0].mxu0
      %834 = vmatprep.mubr.f32.mxu0 0.0
      %835 = vmatmul.mubr.f32.gmra.mrb[0].mxu0 %v385
      %v836 = vpop.f32.mrb[0].mxu0
      %v837 = vadd.f32 0.0, %v836
      %v838 = vpop.f32.mrb[0].mxu0
      %839 = vmatprep.mubr.f32.mxu0 0.0
      %840 = vmatmul.mubr.f32.gmra.mrb[0].mxu0 %v388
      %v841 = vpop.f32.mrb[0].mxu0
      %v842 = vadd.f32 0.0, %v841
      %v843 = vpop.f32.mrb[0].mxu0
      %844 = vmatprep.mubr.f32.mxu0 0.0
      %845 = vmatmul.mubr.f32.gmra.mrb[0].mxu0 %v391
      %v846 = vpop.f32.mrb[0].mxu0
      %v847 = vadd.f32 0.0, %v846
      %v848 = vpop.f32.mrb[0].mxu0
      %849 = vmatprep.mubr.f32.mxu0 0.0
      %850 = vmatmul.mubr.f32.gmra.mrb[0].mxu0 %v394
      %v851 = vpop.f32.mrb[0].mxu0
      %v852 = vadd.f32 0.0, %v851
      %v853 = vpop.f32.mrb[0].mxu0
      %854 = vmatprep.mubr.f32.mxu0 0.0
      %855 = vmatmul.mubr.f32.gmra.mrb[0].mxu0 %v397
      %v856 = vpop.f32.mrb[0].mxu0
      %v857 = vadd.f32 0.0, %v856
      %v858 = vpop.f32.mrb[0].mxu0
      %859 = vmatprep.mubr.f32.mxu0 0.0
      %860 = vmatmul.mubr.f32.gmra.mrb[0].mxu0 %v400
      %v861 = vpop.f32.mrb[0].mxu0
      %v862 = vadd.f32 0.0, %v861
      %v863 = vpop.f32.mrb[0].mxu0
      %864 = vmatprep.mubr.f32.mxu0 0.0
      %865 = vmatmul.mubr.f32.gmra.mrb[0].mxu0 %v403
      %v866 = vpop.f32.mrb[0].mxu0
      %v867 = vadd.f32 0.0, %v866
      %v868 = vpop.f32.mrb[0].mxu0
      %869 = vmatprep.mubr.f32.mxu0 0.0
      %870 = vmatmul.mubr.f32.gmra.mrb[0].mxu0 %v406
      %v871 = vpop.f32.mrb[0].mxu0
      %v872 = vadd.f32 0.0, %v871
      %v873 = vpop.f32.mrb[0].mxu0
      %874 = vmatprep.mubr.f32.mxu0 0.0
      %875 = vmatmul.mubr.f32.gmra.mrb[0].mxu0 %v409
      %v876 = vpop.f32.mrb[0].mxu0
      %v877 = vadd.f32 0.0, %v876
      %v878 = vpop.f32.mrb[0].mxu0
      %879 = vmatprep.mubr.f32.mxu0 0.0
      %880 = vmatmul.mubr.f32.gmra.mrb[0].mxu0 %v412
      %v881 = vpop.f32.mrb[0].mxu0
      %v882 = vadd.f32 0.0, %v881
      %v883 = vpop.f32.mrb[0].mxu0
      %884 = vmatprep.mubr.f32.mxu0 0.0
      %885 = vmatmul.mubr.f32.gmra.mrb[0].mxu0 %v415
      %v886 = vpop.f32.mrb[0].mxu0
      %v887 = vadd.f32 0.0, %v886
      %v888 = vpop.f32.mrb[0].mxu0
      %889 = vmatprep.mubr.f32.mxu0 0.0
      %890 = vmatmul.mubr.f32.gmra.mrb[0].mxu0 %v418
      %v891 = vpop.f32.mrb[0].mxu0
      %v892 = vadd.f32 0.0, %v891
      %v893 = vpop.f32.mrb[0].mxu0
      %894 = vmatprep.mubr.f32.mxu0 0.0
      %895 = vmatmul.mubr.f32.gmra.mrb[0].mxu0 %v421
      %v896 = vpop.f32.mrb[0].mxu0
      %v897 = vadd.f32 0.0, %v896
      %v898 = vpop.f32.mrb[0].mxu0
      %899 = vmatprep.mubr.f32.mxu0 0.0
      %900 = vmatmul.mubr.f32.gmra.mrb[0].mxu0 %v424
      %v901 = vpop.f32.mrb[0].mxu0
      %v902 = vadd.f32 0.0, %v901
      %v903 = vpop.f32.mrb[0].mxu0
      %904 = vmatprep.mubr.f32.mxu0 0.0
      %905 = vmatmul.mubr.f32.gmra.mrb[0].mxu0 %v427
      %v906 = vpop.f32.mrb[0].mxu0
      %v907 = vadd.f32 0.0, %v906
      %v908 = vpop.f32.mrb[0].mxu0
      %909 = vmatprep.mubr.f32.mxu0 0.0
      %910 = vmatmul.mubr.f32.gmra.mrb[0].mxu0 %v430
      %v911 = vpop.f32.mrb[0].mxu0
      %v912 = vadd.f32 0.0, %v911
      %v913 = vpop.f32.mrb[0].mxu0
      %914 = vmatprep.mubr.f32.mxu0 0.0
      %915 = vmatmul.mubr.f32.gmra.mrb[0].mxu0 %v433
      %v916 = vpop.f32.mrb[0].mxu0
      %v917 = vadd.f32 0.0, %v916
      %v918 = vpop.f32.mrb[0].mxu0
      %919 = vmatprep.mubr.f32.mxu0 0.0
      %920 = vmatmul.mubr.f32.gmra.mrb[0].mxu0 %v436
      %v921 = vpop.f32.mrb[0].mxu0
      %v922 = vadd.f32 0.0, %v921
      %v923 = vpop.f32.mrb[0].mxu0
      %924 = vmatprep.mubr.f32.mxu0 0.0
      %925 = vmatmul.mubr.f32.gmra.mrb[0].mxu0 %v439
      %v926 = vpop.f32.mrb[0].mxu0
      %v927 = vadd.f32 0.0, %v926
      %v928 = vpop.f32.mrb[0].mxu0
      %929 = vmatprep.mubr.f32.mxu0 0.0
      %930 = vmatmul.mubr.f32.gmra.mrb[0].mxu0 %v442
      %v931 = vpop.f32.mrb[0].mxu0
      %v932 = vadd.f32 0.0, %v931
      %v933 = vpop.f32.mrb[0].mxu0
      %934 = vmatprep.mubr.f32.mxu0 0.0
      %935 = vmatmul.mubr.f32.gmra.mrb[0].mxu0 %v445
      %v936 = vpop.f32.mrb[0].mxu0
      %v937 = vadd.f32 0.0, %v936
      %v938 = vpop.f32.mrb[0].mxu0
      %939 = vmatprep.mubr.f32.mxu0 0.0
      %940 = vmatmul.mubr.f32.gmra.mrb[0].mxu0 %v448
      %v941 = vpop.f32.mrb[0].mxu0
      %v942 = vadd.f32 0.0, %v941
      %v943 = vpop.f32.mrb[0].mxu0
      %944 = vmatprep.mubr.f32.mxu0 0.0
      %945 = vmatmul.mubr.f32.gmra.mrb[0].mxu0 %v451
      %v946 = vpop.f32.mrb[0].mxu0
      %v947 = vadd.f32 0.0, %v946
      %v948 = vpop.f32.mrb[0].mxu0
      %949 = vmatprep.mubr.f32.mxu0 0.0
      %950 = vmatmul.mubr.f32.gmra.mrb[0].mxu0 %v454
      %v951 = vpop.f32.mrb[0].mxu0
      %v952 = vadd.f32 0.0, %v951
      %v953 = vpop.f32.mrb[0].mxu0
      %954 = vmatprep.mubr.f32.mxu0 0.0
      %955 = vmatmul.mubr.f32.gmra.mrb[0].mxu0 %v457
      %v956 = vpop.f32.mrb[0].mxu0
      %v957 = vadd.f32 0.0, %v956
      %v958 = vpop.f32.mrb[0].mxu0
      %959 = vmatprep.mubr.f32.mxu0 0.0
      %960 = vmatmul.mubr.f32.gmra.mrb[0].mxu0 %v460
      %v961 = vpop.f32.mrb[0].mxu0
      %v962 = vadd.f32 0.0, %v961
      %v963 = vpop.f32.mrb[0].mxu0
      %964 = vmatprep.mubr.f32.mxu0 0.0
      %965 = vmatmul.mubr.f32.gmra.mrb[0].mxu0 %v463
      %v966 = vpop.f32.mrb[0].mxu0
      %v967 = vadd.f32 0.0, %v966
      %v968 = vpop.f32.mrb[0].mxu0
      %969 = vmatprep.mubr.f32.mxu0 0.0
      %970 = vmatmul.mubr.f32.gmra.mrb[0].mxu0 %v466
      %v971 = vpop.f32.mrb[0].mxu0
      %v972 = vadd.f32 0.0, %v971
      %v973 = vpop.f32.mrb[0].mxu0
      %974 = vmatprep.mubr.f32.mxu0 0.0
      %975 = vmatmul.mubr.f32.gmra.mrb[0].mxu0 %v469
      %v976 = vpop.f32.mrb[0].mxu0
      %v977 = vadd.f32 0.0, %v976
      %v978 = vpop.f32.mrb[0].mxu0
      %979 = vmatprep.mubr.f32.mxu0 0.0
      %980 = vmatmul.mubr.f32.gmra.mrb[0].mxu0 %v472
      %v981 = vpop.f32.mrb[0].mxu0
      %v982 = vadd.f32 0.0, %v981
      %v983 = vpop.f32.mrb[0].mxu0
      %984 = vmatprep.mubr.f32.mxu0 0.0
      %985 = vmatmul.mubr.f32.gmra.mrb[0].mxu0 %v475
      %v986 = vpop.f32.mrb[0].mxu0
      %v987 = vadd.f32 0.0, %v986
      %v988 = vpop.f32.mrb[0].mxu0
      %989 = vmatprep.mubr.f32.mxu0 0.0
      %990 = vmatmul.mubr.f32.gmra.mrb[0].mxu0 %v478
      %v991 = vpop.f32.mrb[0].mxu0
      %v992 = vadd.f32 0.0, %v991
      %v993 = vpop.f32.mrb[0].mxu0
      %994 = vmatprep.mubr.f32.mxu0 0.0
      %995 = vmatmul.mubr.f32.gmra.mrb[0].mxu0 %v481
      %v996 = vpop.f32.mrb[0].mxu0
      %v997 = vadd.f32 0.0, %v996
      %v998 = vpop.f32.mrb[0].mxu0
      %999 = vmatprep.mubr.f32.mxu0 0.0
      %1000 = vmatmul.mubr.f32.gmra.mrb[0].mxu0 %v484
      %v1001 = vpop.f32.mrb[0].mxu0
      %v1002 = vadd.f32 0.0, %v1001
      %v1003 = vpop.f32.mrb[0].mxu0
      %1004 = vmatprep.mubr.f32.mxu0 0.0
      %1005 = vmatmul.mubr.f32.gmra.mrb[0].mxu0 %v487
      %v1006 = vpop.f32.mrb[0].mxu0
      %v1007 = vadd.f32 0.0, %v1006
      %v1008 = vpop.f32.mrb[0].mxu0
      %1009 = vmatprep.mubr.f32.mxu0 0.0
      %1010 = vmatmul.mubr.f32.gmra.mrb[0].mxu0 %v490
      %v1011 = vpop.f32.mrb[0].mxu0
      %v1012 = vadd.f32 0.0, %v1011
      %v1013 = vpop.f32.mrb[0].mxu0
      %1014 = vmatprep.mubr.f32.mxu0 0.0
      %1015 = vmatmul.mubr.f32.gmra.mrb[0].mxu0 %v493
      %v1016 = vpop.f32.mrb[0].mxu0
      %v1017 = vadd.f32 0.0, %v1016
      %v1018 = vpop.f32.mrb[0].mxu0
      %1019 = vmatprep.mubr.f32.mxu0 0.0
      %1020 = vmatmul.mubr.f32.gmra.mrb[0].mxu0 %v496
      %v1021 = vpop.f32.mrb[0].mxu0
      %v1022 = vadd.f32 0.0, %v1021
      %v1023 = vpop.f32.mrb[0].mxu0
      %1024 = vmatprep.mubr.f32.mxu0 0.0
      %1025 = vmatmul.mubr.f32.gmra.mrb[0].mxu0 %v499
      %v1026 = vpop.f32.mrb[0].mxu0
      %v1027 = vadd.f32 0.0, %v1026
      %v1028 = vpop.f32.mrb[0].mxu0
      %1029 = vmatprep.mubr.f32.mxu0 0.0
      %1030 = vmatmul.mubr.f32.gmra.mrb[0].mxu0 %v502
      %v1031 = vpop.f32.mrb[0].mxu0
      %v1032 = vadd.f32 0.0, %v1031
      %v1033 = vpop.f32.mrb[0].mxu0
      %1034 = vmatprep.mubr.f32.mxu0 0.0
      %1035 = vmatmul.mubr.f32.gmra.mrb[0].mxu0 %v505
      %v1036 = vpop.f32.mrb[0].mxu0
      %v1037 = vadd.f32 0.0, %v1036
      %v1038 = vpop.f32.mrb[0].mxu0
      %1039 = vmatprep.mubr.f32.mxu0 0.0
      %1040 = vmatmul.mubr.f32.gmra.mrb[0].mxu0 %v508
      %v1041 = vpop.f32.mrb[0].mxu0
      %v1042 = vadd.f32 0.0, %v1041
      %v1043 = vpop.f32.mrb[0].mxu0
      %1044 = vmatprep.mubr.f32.mxu0 0.0
      %1045 = vmatmul.mubr.f32.gmra.mrb[0].mxu0 %v511
      %v1046 = vpop.f32.mrb[0].mxu0
      %v1047 = vadd.f32 0.0, %v1046
      %v1048 = vpop.f32.mrb[0].mxu0
      %1049 = vmatprep.mubr.f32.mxu0 0.0
      %1050 = vmatmul.mubr.f32.gmra.mrb[0].mxu0 %v514
      %v1051 = vpop.f32.mrb[0].mxu0
      %v1052 = vadd.f32 0.0, %v1051
      %v1053 = vpop.f32.mrb[0].mxu0
      %1054 = vmatprep.mubr.f32.mxu0 0.0
      %1055 = vmatmul.mubr.f32.gmra.mrb[0].mxu0 %v517
      %v1056 = vpop.f32.mrb[0].mxu0
      %v1057 = vadd.f32 0.0, %v1056
      %v1058 = vpop.f32.mrb[0].mxu0
      %1059 = vmatprep.mubr.f32.mxu0 0.0
      %1060 = vmatmul.mubr.f32.gmra.mrb[0].mxu0 %v520
      %v1061 = vpop.f32.mrb[0].mxu0
      %v1062 = vadd.f32 0.0, %v1061
      %v1063 = vpop.f32.mrb[0].mxu0
      %1064 = vmatprep.mubr.f32.mxu0 0.0
      %1065 = vmatmul.mubr.f32.gmra.mrb[0].mxu0 %v523
      %v1066 = vpop.f32.mrb[0].mxu0
      %v1067 = vadd.f32 0.0, %v1066
      %v1068 = vpop.f32.mrb[0].mxu0
      %1069 = vmatprep.mubr.f32.mxu0 0.0
      %1070 = vmatmul.mubr.f32.gmra.mrb[0].mxu0 %v526
      %v1071 = vpop.f32.mrb[0].mxu0
      %v1072 = vadd.f32 0.0, %v1071
      %v1073 = vpop.f32.mrb[0].mxu0
      %1074 = vmatprep.mubr.f32.mxu0 0.0
      %1075 = vmatmul.mubr.f32.gmra.mrb[0].mxu0 %v529
      %v1076 = vpop.f32.mrb[0].mxu0
      %v1077 = vadd.f32 0.0, %v1076
      %v1078 = vpop.f32.mrb[0].mxu0
      %1079 = vmatprep.mubr.f32.mxu0 0.0
      %1080 = vmatmul.mubr.f32.gmra.mrb[0].mxu0 %v532
      %v1081 = vpop.f32.mrb[0].mxu0
      %v1082 = vadd.f32 0.0, %v1081
      %v1083 = vpop.f32.mrb[0].mxu0
      %1084 = vmatprep.mubr.f32.mxu0 0.0
      %1085 = vmatmul.mubr.f32.gmra.mrb[0].mxu0 %v535
      %v1086 = vpop.f32.mrb[0].mxu0
      %v1087 = vadd.f32 0.0, %v1086
      %v1088 = vpop.f32.mrb[0].mxu0
      %1089 = vmatprep.mubr.f32.mxu0 0.0
      %1090 = vmatmul.mubr.f32.gmra.mrb[0].mxu0 %v538
      %v1091 = vpop.f32.mrb[0].mxu0
      %v1092 = vadd.f32 0.0, %v1091
      %v1093 = vpop.f32.mrb[0].mxu0
      %1094 = vmatprep.mubr.f32.mxu0 0.0
      %1095 = vmatmul.mubr.f32.gmra.mrb[0].mxu0 %v541
      %v1096 = vpop.f32.mrb[0].mxu0
      %v1097 = vadd.f32 0.0, %v1096
      %v1098 = vpop.f32.mrb[0].mxu0
      %1099 = vmatprep.mubr.f32.mxu0 0.0
      %1100 = vmatmul.mubr.f32.gmra.mrb[0].mxu0 %v544
      %v1101 = vpop.f32.mrb[0].mxu0
      %v1102 = vadd.f32 0.0, %v1101
      %v1103 = vpop.f32.mrb[0].mxu0
      %1104 = vmatprep.mubr.f32.mxu0 0.0
      %1105 = vmatmul.mubr.f32.gmra.mrb[0].mxu0 %v547
      %v1106 = vpop.f32.mrb[0].mxu0
      %v1107 = vadd.f32 0.0, %v1106
      %v1108 = vpop.f32.mrb[0].mxu0
      %1109 = vmatprep.mubr.f32.mxu0 0.0
      %1110 = vmatmul.mubr.f32.gmra.mrb[0].mxu0 %v550
      %v1111 = vpop.f32.mrb[0].mxu0
      %v1112 = vadd.f32 0.0, %v1111
      %v1113 = vpop.f32.mrb[0].mxu0
      %1114 = vmatprep.mubr.f32.mxu0 0.0
      %1115 = vmatmul.mubr.f32.gmra.mrb[0].mxu0 %v553
      %v1116 = vpop.f32.mrb[0].mxu0
      %v1117 = vadd.f32 0.0, %v1116
      %v1118 = vpop.f32.mrb[0].mxu0
      %1119 = vmatprep.mubr.f32.mxu0 0.0
      %1120 = vmatmul.mubr.f32.gmra.mrb[0].mxu0 %v556
      %v1121 = vpop.f32.mrb[0].mxu0
      %v1122 = vadd.f32 0.0, %v1121
      %v1123 = vpop.f32.mrb[0].mxu0
      %1124 = vmatprep.mubr.f32.mxu0 0.0
      %1125 = vmatmul.mubr.f32.gmra.mrb[0].mxu0 %v559
      %v1126 = vpop.f32.mrb[0].mxu0
      %v1127 = vadd.f32 0.0, %v1126
      %v1128 = vpop.f32.mrb[0].mxu0
      %1129 = vmatprep.mubr.f32.mxu0 0.0
      %1130 = vmatmul.mubr.f32.gmra.mrb[0].mxu0 %v562
      %v1131 = vpop.f32.mrb[0].mxu0
      %v1132 = vadd.f32 0.0, %v1131
      %v1133 = vpop.f32.mrb[0].mxu0
      %1134 = vmatprep.mubr.f32.mxu0 0.0
      %1135 = vmatmul.mubr.f32.gmra.mrb[0].mxu0 %v565
      %v1136 = vpop.f32.mrb[0].mxu0
      %v1137 = vadd.f32 0.0, %v1136
      %v1138 = vpop.f32.mrb[0].mxu0
      %1139 = vmatprep.mubr.f32.mxu0 0.0
      %1140 = vmatmul.mubr.f32.gmra.mrb[0].mxu0 %v568
      %v1141 = vpop.f32.mrb[0].mxu0
      %v1142 = vadd.f32 0.0, %v1141
      %v1143 = vpop.f32.mrb[0].mxu0
      %1144 = vmatprep.mubr.f32.mxu0 0.0
      %1145 = vmatmul.mubr.f32.gmra.mrb[0].mxu0 %v571
      %v1146 = vpop.f32.mrb[0].mxu0
      %v1147 = vadd.f32 0.0, %v1146
      %v1148 = vpop.f32.mrb[0].mxu0
      %1149 = vmatprep.mubr.f32.mxu0 0.0
      %1150 = vmatmul.mubr.f32.gmra.mrb[0].mxu0 %v574
      %v1151 = vpop.f32.mrb[0].mxu0
      %v1152 = vadd.f32 0.0, %v1151
      %v1153 = vpop.f32.mrb[0].mxu0
      %1154 = vmatprep.mubr.f32.mxu0 0.0
      %1155 = vmatmul.mubr.f32.gmra.mrb[0].mxu0 %v577
      %v1156 = vpop.f32.mrb[0].mxu0
      %v1157 = vadd.f32 0.0, %v1156
      %v1158 = vpop.f32.mrb[0].mxu0
      %1159 = vmatprep.mubr.f32.mxu0 0.0
      %1160 = vmatmul.mubr.f32.gmra.mrb[0].mxu0 %v580
      %v1161 = vpop.f32.mrb[0].mxu0
      %v1162 = vadd.f32 0.0, %v1161
      %v1163 = vpop.f32.mrb[0].mxu0
      %1164 = vmatprep.mubr.f32.mxu0 0.0
      %1165 = vmatmul.mubr.f32.gmra.mrb[0].mxu0 %v583
      %v1166 = vpop.f32.mrb[0].mxu0
      %v1167 = vadd.f32 0.0, %v1166
      %v1168 = vpop.f32.mrb[0].mxu0
      %1169 = vmatprep.mubr.f32.mxu0 0.0
      %1170 = vmatmul.mubr.f32.gmra.mrb[0].mxu0 %v586
      %v1171 = vpop.f32.mrb[0].mxu0
      %v1172 = vadd.f32 0.0, %v1171
      %v1173 = vpop.f32.mrb[0].mxu0
      %1174 = vmatprep.mubr.f32.mxu0 0.0
      %1175 = vmatmul.mubr.f32.gmra.mrb[0].mxu0 %v589
      %v1176 = vpop.f32.mrb[0].mxu0
      %v1177 = vadd.f32 0.0, %v1176
      %v1178 = vpop.f32.mrb[0].mxu0
      %1179 = vmatprep.mubr.f32.mxu0 0.0
      %1180 = vmatmul.mubr.f32.gmra.mrb[0].mxu0 %v592
      %v1181 = vpop.f32.mrb[0].mxu0
      %v1182 = vadd.f32 0.0, %v1181
      %v1183 = vpop.f32.mrb[0].mxu0
      %1184 = vmatprep.mubr.f32.mxu0 0.0
      %1185 = vmatmul.mubr.f32.gmra.mrb[0].mxu0 %v595
      %v1186 = vpop.f32.mrb[0].mxu0
      %v1187 = vadd.f32 0.0, %v1186
      %v1188 = vpop.f32.mrb[0].mxu0
      %1189 = vmatprep.mubr.f32.mxu0 0.0
      %1190 = vmatmul.mubr.f32.gmra.mrb[0].mxu0 %v598
      %v1191 = vpop.f32.mrb[0].mxu0
      %v1192 = vadd.f32 0.0, %v1191
      %v1193 = vpop.f32.mrb[0].mxu0
      %1194 = vmatprep.mubr.f32.mxu0 0.0
      %1195 = vmatmul.mubr.f32.gmra.mrb[0].mxu0 %v601
      %v1196 = vpop.f32.mrb[0].mxu0
      %v1197 = vadd.f32 0.0, %v1196
      %v1198 = vpop.f32.mrb[0].mxu0
      %1199 = vmatprep.mubr.f32.mxu0 0.0
      %1200 = vmatmul.mubr.f32.gmra.mrb[0].mxu0 %v604
      %v1201 = vpop.f32.mrb[0].mxu0
      %v1202 = vadd.f32 0.0, %v1201
      %v1203 = vpop.f32.mrb[0].mxu0
      %1204 = vmatprep.mubr.f32.mxu0 0.0
      %1205 = vmatmul.mubr.f32.gmra.mrb[0].mxu0 %v607
      %v1206 = vpop.f32.mrb[0].mxu0
      %v1207 = vadd.f32 0.0, %v1206
      %v1208 = vpop.f32.mrb[0].mxu0
      %1209 = vmatprep.mubr.f32.mxu0 0.0
      %1210 = vmatmul.mubr.f32.gmra.mrb[0].mxu0 %v610
      %v1211 = vpop.f32.mrb[0].mxu0
      %v1212 = vadd.f32 0.0, %v1211
      %v1213 = vpop.f32.mrb[0].mxu0
      %1214 = vmatprep.mubr.f32.mxu0 0.0
      %1215 = vmatmul.mubr.f32.gmra.mrb[0].mxu0 %v613
      %v1216 = vpop.f32.mrb[0].mxu0
      %v1217 = vadd.f32 0.0, %v1216
      %v1218 = vpop.f32.mrb[0].mxu0
      %1219 = vmatprep.mubr.f32.mxu0 0.0
      %1220 = vmatmul.mubr.f32.gmra.mrb[0].mxu0 %v616
      %v1221 = vpop.f32.mrb[0].mxu0
      %v1222 = vadd.f32 0.0, %v1221
      %v1223 = vpop.f32.mrb[0].mxu0
      %1224 = vmatprep.mubr.f32.mxu0 0.0
      %1225 = vmatmul.mubr.f32.gmra.mrb[0].mxu0 %v619
      %v1226 = vpop.f32.mrb[0].mxu0
      %v1227 = vadd.f32 0.0, %v1226
      %v1228 = vpop.f32.mrb[0].mxu0
      %1229 = vmatprep.mubr.f32.mxu0 0.0
      %1230 = vmatmul.mubr.f32.gmra.mrb[0].mxu0 %v622
      %v1231 = vpop.f32.mrb[0].mxu0
      %v1232 = vadd.f32 0.0, %v1231
      %v1233 = vpop.f32.mrb[0].mxu0
      %1234 = vmatprep.mubr.f32.mxu0 0.0
      %1235 = vmatmul.mubr.f32.gmra.mrb[0].mxu0 %v625
      %v1236 = vpop.f32.mrb[0].mxu0
      %v1237 = vadd.f32 0.0, %v1236
      %v1238 = vpop.f32.mrb[0].mxu0
      %1239 = vmatprep.mubr.f32.mxu0 0.0
      %1240 = vmatmul.mubr.f32.gmra.mrb[0].mxu0 %v628
      %v1241 = vpop.f32.mrb[0].mxu0
      %v1242 = vadd.f32 0.0, %v1241
      %v1243 = vpop.f32.mrb[0].mxu0
      %1244 = vmatprep.mubr.f32.mxu0 0.0
      %1245 = vmatmul.mubr.f32.gmra.mrb[0].mxu0 %v631
      %v1246 = vpop.f32.mrb[0].mxu0
      %v1247 = vadd.f32 0.0, %v1246
      %v1248 = vpop.f32.mrb[0].mxu0
      %1249 = vmatprep.mubr.f32.mxu0 0.0
      %1250 = vmatmul.mubr.f32.gmra.mrb[0].mxu0 %v634
      %v1251 = vpop.f32.mrb[0].mxu0
      %v1252 = vadd.f32 0.0, %v1251
      %v1253 = vpop.f32.mrb[0].mxu0
      %1254 = vmatprep.mubr.f32.mxu0 0.0
      %1255 = vmatmul.mubr.f32.gmra.mrb[0].mxu0 %v637
      %v1256 = vpop.f32.mrb[0].mxu0
      %v1257 = vadd.f32 0.0, %v1256
      %v1258 = vpop.f32.mrb[0].mxu0
      %1259 = vmatprep.mubr.f32.mxu0 0.0
      %1260 = vmatmul.mubr.f32.gmra.mrb[0].mxu0 %v640
      %v1261 = vpop.f32.mrb[0].mxu0
      %v1262 = vadd.f32 0.0, %v1261
      %v1263 = vpop.f32.mrb[0].mxu0
      %1264 = vmatprep.mubr.f32.mxu0 0.0
      %1265 = vmatmul.mubr.f32.gmra.mrb[0].mxu0 %v643
      %v1266 = vpop.f32.mrb[0].mxu0
      %v1267 = vadd.f32 0.0, %v1266
      %v1268 = vpop.f32.mrb[0].mxu0
      %1269 = vmatprep.mubr.f32.mxu0 0.0
      %1270 = vmatmul.mubr.f32.gmra.mrb[0].mxu0 %v646
      %v1271 = vpop.f32.mrb[0].mxu0
      %v1272 = vadd.f32 0.0, %v1271
      %v1273 = vpop.f32.mrb[0].mxu0
      %1274 = vmatprep.mubr.f32.mxu0 0.0
      %1275 = vmatmul.mubr.f32.gmra.mrb[0].mxu0 %v649
      %v1276 = vpop.f32.mrb[0].mxu0
      %v1277 = vadd.f32 0.0, %v1276
      %v1278 = vpop.f32.mrb[0].mxu0
      %1279 = vmatprep.mubr.f32.mxu0 0.0
      %1280 = vmatmul.mubr.f32.gmra.mrb[0].mxu0 %v652
      %v1281 = vpop.f32.mrb[0].mxu0
      %v1282 = vadd.f32 0.0, %v1281
      %v1283 = vpop.f32.mrb[0].mxu0
      %1284 = vmatprep.mubr.f32.mxu0 0.0
      %1285 = vmatmul.mubr.f32.gmra.mrb[0].mxu0 %v655
      %v1286 = vpop.f32.mrb[0].mxu0
      %v1287 = vadd.f32 0.0, %v1286
      %v1288 = vpop.f32.mrb[0].mxu0
      %1289 = vmatprep.mubr.f32.mxu0 0.0
      %1290 = vmatmul.mubr.f32.gmra.mrb[0].mxu0 %v658
      %v1291 = vpop.f32.mrb[0].mxu0
      %v1292 = vadd.f32 0.0, %v1291
      %v1293 = vpop.f32.mrb[0].mxu0
      %1294 = vmatprep.mubr.f32.mxu0 0.0
      %1295 = vmatmul.mubr.f32.gmra.mrb[0].mxu0 %v661
      %v1296 = vpop.f32.mrb[0].mxu0
      %v1297 = vadd.f32 0.0, %v1296
      %v1298 = vpop.f32.mrb[0].mxu0
      %1299 = vmatprep.mubr.f32.mxu0 0.0
      %1300 = vmatmul.mubr.f32.gmra.mrb[0].mxu0 %v664
      %v1301 = vpop.f32.mrb[0].mxu0
      %v1302 = vadd.f32 0.0, %v1301
      %v1303 = vpop.f32.mrb[0].mxu0
      %1304 = vmatprep.mubr.f32.mxu0 0.0
      %1305 = vmatmul.mubr.f32.gmra.mrb[0].mxu0 %v667
      %v1306 = vpop.f32.mrb[0].mxu0
      %v1307 = vadd.f32 0.0, %v1306
      %v1308 = vpop.f32.mrb[0].mxu0
      %1309 = vmatprep.mubr.f32.mxu0 0.0
      %1310 = vmatmul.mubr.f32.gmra.mrb[0].mxu0 %v670
      %v1311 = vpop.f32.mrb[0].mxu0
      %v1312 = vadd.f32 0.0, %v1311
      %v1313 = vpop.f32.mrb[0].mxu0
      %1314 = vmatprep.mubr.f32.mxu0 0.0
      %1315 = vmatmul.mubr.f32.gmra.mrb[0].mxu0 %v673
      %v1316 = vpop.f32.mrb[0].mxu0
      %v1317 = vadd.f32 0.0, %v1316
      %v1318 = vpop.f32.mrb[0].mxu0
      %1319 = vmatprep.mubr.f32.mxu0 0.0
      %1320 = vmatmul.mubr.f32.gmra.mrb[0].mxu0 %v676
      %v1321 = vpop.f32.mrb[0].mxu0
      %v1322 = vadd.f32 0.0, %v1321
      %v1323 = vpop.f32.mrb[0].mxu0
      %1324 = vmatprep.mubr.f32.mxu0 0.0
      %1325 = vmatmul.mubr.f32.gmra.mrb[0].mxu0 %v679
      %v1326 = vpop.f32.mrb[0].mxu0
      %v1327 = vadd.f32 0.0, %v1326
      %v1328 = vpop.f32.mrb[0].mxu0
      %1329 = vmatprep.mubr.f32.mxu0 0.0
      %1330 = vmatmul.mubr.f32.gmra.mrb[0].mxu0 %v682
      %v1331 = vpop.f32.mrb[0].mxu0
      %v1332 = vadd.f32 0.0, %v1331
      %v1333 = vpop.f32.mrb[0].mxu0
      %1334 = vmatprep.mubr.f32.mxu0 0.0
      %1335 = vmatmul.mubr.f32.gmra.mrb[0].mxu0 %v685
      %v1336 = vpop.f32.mrb[0].mxu0
      %v1337 = vadd.f32 0.0, %v1336
      %v1338 = vpop.f32.mrb[0].mxu0
      %1339 = vmatprep.mubr.f32.mxu0 0.0
      %1340 = vmatmul.mubr.f32.gmra.mrb[0].mxu0 %v688
      %v1341 = vpop.f32.mrb[0].mxu0
      %v1342 = vadd.f32 0.0, %v1341
      %v1343 = vpop.f32.mrb[0].mxu0
      %1344 = vmatprep.mubr.f32.mxu0 0.0
      %1345 = vmatmul.mubr.f32.gmra.mrb[0].mxu0 %v691
      %v1346 = vpop.f32.mrb[0].mxu0
      %v1347 = vadd.f32 0.0, %v1346
      %v1348 = vpop.f32.mrb[0].mxu0
      %1349 = vmatprep.mubr.f32.mxu0 0.0
      %1350 = vmatmul.mubr.f32.gmra.mrb[0].mxu0 %v694
      %v1351 = vpop.f32.mrb[0].mxu0
      %v1352 = vadd.f32 0.0, %v1351
      %v1353 = vpop.f32.mrb[0].mxu0
      %1354 = vmatprep.mubr.f32.mxu0 0.0
      %1355 = vmatmul.mubr.f32.gmra.mrb[0].mxu0 %v697
      %v1356 = vpop.f32.mrb[0].mxu0
      %v1357 = vadd.f32 0.0, %v1356
      %v1358 = vpop.f32.mrb[0].mxu0
      %1359 = vmatprep.mubr.f32.mxu0 0.0
      %1360 = vmatmul.mubr.f32.gmra.mrb[0].mxu0 %v700
      %v1361 = vpop.f32.mrb[0].mxu0
      %v1362 = vadd.f32 0.0, %v1361
      %v1363 = vpop.f32.mrb[0].mxu0
      %1364 = vmatprep.mubr.f32.mxu0 0.0
      %1365 = vmatmul.mubr.f32.gmra.mrb[0].mxu0 %v703
      %v1366 = vpop.f32.mrb[0].mxu0
      %v1367 = vadd.f32 0.0, %v1366
      %v1368 = vpop.f32.mrb[0].mxu0
      %1369 = vmatprep.mubr.f32.mxu0 0.0
      %1370 = vmatmul.mubr.f32.gmra.mrb[0].mxu0 %v706
      %v1371 = vpop.f32.mrb[0].mxu0
      %v1372 = vadd.f32 0.0, %v1371
      %v1373 = vpop.f32.mrb[0].mxu0
      %1374 = vmatprep.mubr.f32.mxu0 0.0
      %1375 = vmatmul.mubr.f32.gmra.mrb[0].mxu0 %v709
      %v1376 = vpop.f32.mrb[0].mxu0
      %v1377 = vadd.f32 0.0, %v1376
      %v1378 = vpop.f32.mrb[0].mxu0
      %1379 = vmatprep.mubr.f32.mxu0 0.0
      %1380 = vmatmul.mubr.f32.gmra.mrb[0].mxu0 %v712
      %v1381 = vpop.f32.mrb[0].mxu0
      %v1382 = vadd.f32 0.0, %v1381
      %v1383 = vpop.f32.mrb[0].mxu0
      %1384 = vmatprep.mubr.f32.mxu0 0.0
      %1385 = vmatmul.mubr.f32.gmra.mrb[0].mxu0 %v715
      %v1386 = vpop.f32.mrb[0].mxu0
      %v1387 = vadd.f32 0.0, %v1386
      %v1388 = vpop.f32.mrb[0].mxu0
      %1389 = vmatprep.mubr.f32.mxu0 0.0
      %1390 = vmatmul.mubr.f32.gmra.mrb[0].mxu0 %v718
      %v1391 = vpop.f32.mrb[0].mxu0
      %v1392 = vadd.f32 0.0, %v1391
      %v1393 = vpop.f32.mrb[0].mxu0
      %1394 = vmatprep.mubr.f32.mxu0 0.0
      %1395 = vmatmul.mubr.f32.gmra.mrb[0].mxu0 %v721
      %v1396 = vpop.f32.mrb[0].mxu0
      %v1397 = vadd.f32 0.0, %v1396
      %v1398 = vpop.f32.mrb[0].mxu0
      %1399 = vmatprep.mubr.f32.mxu0 0.0
      %1400 = vmatmul.mubr.f32.gmra.mrb[0].mxu0 %v724
      %v1401 = vpop.f32.mrb[0].mxu0
      %v1402 = vadd.f32 0.0, %v1401
      %v1403 = vpop.f32.mrb[0].mxu0
      %1404 = vmatprep.mubr.f32.mxu0 0.0
      %1405 = vmatmul.mubr.f32.gmra.mrb[0].mxu0 %v727
      %v1406 = vpop.f32.mrb[0].mxu0
      %v1407 = vadd.f32 0.0, %v1406
      %v1408 = vpop.f32.mrb[0].mxu0
      %1409 = vmatprep.mubr.f32.mxu0 0.0
      %1410 = vmatmul.mubr.f32.gmra.mrb[0].mxu0 %v730
      %v1411 = vpop.f32.mrb[0].mxu0
      %v1412 = vadd.f32 0.0, %v1411
      %v1413 = vpop.f32.mrb[0].mxu0
      %1414 = vmatprep.mubr.f32.mxu0 0.0
      %1415 = vmatmul.mubr.f32.gmra.mrb[0].mxu0 %v733
      %v1416 = vpop.f32.mrb[0].mxu0
      %v1417 = vadd.f32 0.0, %v1416
      %v1418 = vpop.f32.mrb[0].mxu0
      %1419 = vmatprep.mubr.f32.mxu0 0.0
      %1420 = vmatmul.mubr.f32.gmra.mrb[0].mxu0 %v736
      %v1421 = vpop.f32.mrb[0].mxu0
      %v1422 = vadd.f32 0.0, %v1421
      %v1423 = vpop.f32.mrb[0].mxu0
      %1424 = vmatprep.mubr.f32.mxu0 0.0
      %1425 = vmatmul.mubr.f32.gmra.mrb[0].mxu0 %v739
      %v1426 = vpop.f32.mrb[0].mxu0
      %v1427 = vadd.f32 0.0, %v1426
      %v1428 = vpop.f32.mrb[0].mxu0
      %1429 = vmatprep.mubr.f32.mxu0 0.0
      %1430 = vmatmul.mubr.f32.gmra.mrb[0].mxu0 %v742
      %v1431 = vpop.f32.mrb[0].mxu0
      %v1432 = vadd.f32 0.0, %v1431
      %v1433 = vpop.f32.mrb[0].mxu0
      %1434 = vmatprep.mubr.f32.mxu0 0.0
      %1435 = vmatmul.mubr.f32.gmra.mrb[0].mxu0 %v745
      %v1436 = vpop.f32.mrb[0].mxu0
      %v1437 = vadd.f32 0.0, %v1436
      %v1438 = vpop.f32.mrb[0].mxu0
      %1439 = vmatprep.mubr.f32.mxu0 0.0
      %1440 = vmatmul.mubr.f32.gmra.mrb[0].mxu0 %v748
      %v1441 = vpop.f32.mrb[0].mxu0
      %v1442 = vadd.f32 0.0, %v1441
      %v1443 = vpop.f32.mrb[0].mxu0
      %1444 = vmatprep.mubr.f32.mxu0 0.0
      %1445 = vmatmul.mubr.f32.gmra.mrb[0].mxu0 %v751
      %v1446 = vpop.f32.mrb[0].mxu0
      %v1447 = vadd.f32 0.0, %v1446
      %v1448 = vpop.f32.mrb[0].mxu0
      %1449 = vmatprep.mubr.f32.mxu0 0.0
      %1450 = vmatmul.mubr.f32.gmra.mrb[0].mxu0 %v754
      %v1451 = vpop.f32.mrb[0].mxu0
      %v1452 = vadd.f32 0.0, %v1451
      %v1453 = vpop.f32.mrb[0].mxu0
      %1454 = vmatprep.mubr.f32.mxu0 0.0
      %1455 = vmatmul.mubr.f32.gmra.mrb[0].mxu0 %v757
      %v1456 = vpop.f32.mrb[0].mxu0
      %v1457 = vadd.f32 0.0, %v1456
      %v1458 = vpop.f32.mrb[0].mxu0
      %1459 = vmatprep.mubr.f32.mxu0 0.0
      %1460 = vmatmul.mubr.f32.gmra.mrb[0].mxu0 %v760
      %v1461 = vpop.f32.mrb[0].mxu0
      %v1462 = vadd.f32 0.0, %v1461
      %v1463 = vpop.f32.mrb[0].mxu0
      %1464 = vmatprep.mubr.f32.mxu0 0.0
      %1465 = vmatmul.mubr.f32.gmra.mrb[0].mxu0 %v763
      %v1466 = vpop.f32.mrb[0].mxu0
      %v1467 = vadd.f32 0.0, %v1466
      %v1468 = vpop.f32.mrb[0].mxu0
      %1469 = vdwg.mxu0
      %v1470 = vld [vmem:[%s242] sm:$0xff]
      %v1471 = vld [vmem:[%s242 + $0x8] sm:$0xff]
      %v1472 = vld [vmem:[%s242 + $0x10] sm:$0xff]
      %v1473 = vld [vmem:[%s242 + $0x18] sm:$0xff]
      %v1474 = vld [vmem:[%s242 + $0x20] sm:$0xff]
      %v1475 = vld [vmem:[%s242 + $0x28] sm:$0xff]
      %v1476 = vld [vmem:[%s242 + $0x30] sm:$0xff]
      %v1477 = vld [vmem:[%s242 + $0x38] sm:$0xff]
      %v1478 = vld [vmem:[%s242 + $0x40] sm:$0xff]
      %v1479 = vld [vmem:[%s242 + $0x48] sm:$0xff]
      %v1480 = vld [vmem:[%s242 + $0x50] sm:$0xff]
      %v1481 = vld [vmem:[%s242 + $0x58] sm:$0xff]
      %v1482 = vld [vmem:[%s242 + $0x60] sm:$0xff]
      %v1483 = vld [vmem:[%s242 + $0x68] sm:$0xff]
      %v1484 = vld [vmem:[%s242 + $0x70] sm:$0xff]
      %v1485 = vld [vmem:[%s242 + $0x78] sm:$0xff]
      %v1486 = vld [vmem:[%s242 + $0x80] sm:$0xff]
      %v1487 = vld [vmem:[%s242 + $0x88] sm:$0xff]
      %v1488 = vld [vmem:[%s242 + $0x90] sm:$0xff]
      %v1489 = vld [vmem:[%s242 + $0x98] sm:$0xff]
      %v1490 = vld [vmem:[%s242 + $0xa0] sm:$0xff]
      %v1491 = vld [vmem:[%s242 + $0xa8] sm:$0xff]
      %v1492 = vld [vmem:[%s242 + $0xb0] sm:$0xff]
      %v1493 = vld [vmem:[%s242 + $0xb8] sm:$0xff]
      %v1494 = vld [vmem:[%s242 + $0xc0] sm:$0xff]
      %v1495 = vld [vmem:[%s242 + $0xc8] sm:$0xff]
      %v1496 = vld [vmem:[%s242 + $0xd0] sm:$0xff]
      %v1497 = vld [vmem:[%s242 + $0xd8] sm:$0xff]
      %v1498 = vld [vmem:[%s242 + $0xe0] sm:$0xff]
      %v1499 = vld [vmem:[%s242 + $0xe8] sm:$0xff]
      %v1500 = vld [vmem:[%s242 + $0xf0] sm:$0xff]
      %v1501 = vld [vmem:[%s242 + $0xf8] sm:$0xff]
      %v1502 = vld [vmem:[%s242 + $0x100] sm:$0xff]
      %v1503 = vld [vmem:[%s242 + $0x108] sm:$0xff]
      %v1504 = vld [vmem:[%s242 + $0x110] sm:$0xff]
      %v1505 = vld [vmem:[%s242 + $0x118] sm:$0xff]
      %v1506 = vld [vmem:[%s242 + $0x120] sm:$0xff]
      %v1507 = vld [vmem:[%s242 + $0x128] sm:$0xff]
      %v1508 = vld [vmem:[%s242 + $0x130] sm:$0xff]
      %v1509 = vld [vmem:[%s242 + $0x138] sm:$0xff]
      %v1510 = vld [vmem:[%s242 + $0x140] sm:$0xff]
      %v1511 = vld [vmem:[%s242 + $0x148] sm:$0xff]
      %v1512 = vld [vmem:[%s242 + $0x150] sm:$0xff]
      %v1513 = vld [vmem:[%s242 + $0x158] sm:$0xff]
      %v1514 = vld [vmem:[%s242 + $0x160] sm:$0xff]
      %v1515 = vld [vmem:[%s242 + $0x168] sm:$0xff]
      %v1516 = vld [vmem:[%s242 + $0x170] sm:$0xff]
      %v1517 = vld [vmem:[%s242 + $0x178] sm:$0xff]
      %v1518 = vld [vmem:[%s242 + $0x180] sm:$0xff]
      %v1519 = vld [vmem:[%s242 + $0x188] sm:$0xff]
      %v1520 = vld [vmem:[%s242 + $0x190] sm:$0xff]
      %v1521 = vld [vmem:[%s242 + $0x198] sm:$0xff]
      %v1522 = vld [vmem:[%s242 + $0x1a0] sm:$0xff]
      %v1523 = vld [vmem:[%s242 + $0x1a8] sm:$0xff]
      %v1524 = vld [vmem:[%s242 + $0x1b0] sm:$0xff]
      %v1525 = vld [vmem:[%s242 + $0x1b8] sm:$0xff]
      %v1526 = vld [vmem:[%s242 + $0x1c0] sm:$0xff]
      %v1527 = vld [vmem:[%s242 + $0x1c8] sm:$0xff]
      %v1528 = vld [vmem:[%s242 + $0x1d0] sm:$0xff]
      %v1529 = vld [vmem:[%s242 + $0x1d8] sm:$0xff]
      %v1530 = vld [vmem:[%s242 + $0x1e0] sm:$0xff]
      %v1531 = vld [vmem:[%s242 + $0x1e8] sm:$0xff]
      %v1532 = vld [vmem:[%s242 + $0x1f0] sm:$0xff]
      %v1533 = vld [vmem:[%s242 + $0x1f8] sm:$0xff]
      %v1534 = vld [vmem:[%s242 + $0x200] sm:$0xff]
      %v1535 = vld [vmem:[%s242 + $0x208] sm:$0xff]
      %v1536 = vld [vmem:[%s242 + $0x210] sm:$0xff]
      %v1537 = vld [vmem:[%s242 + $0x218] sm:$0xff]
      %v1538 = vld [vmem:[%s242 + $0x220] sm:$0xff]
      %v1539 = vld [vmem:[%s242 + $0x228] sm:$0xff]
      %v1540 = vld [vmem:[%s242 + $0x230] sm:$0xff]
      %v1541 = vld [vmem:[%s242 + $0x238] sm:$0xff]
      %v1542 = vld [vmem:[%s242 + $0x240] sm:$0xff]
      %v1543 = vld [vmem:[%s242 + $0x248] sm:$0xff]
      %v1544 = vld [vmem:[%s242 + $0x250] sm:$0xff]
      %v1545 = vld [vmem:[%s242 + $0x258] sm:$0xff]
      %v1546 = vld [vmem:[%s242 + $0x260] sm:$0xff]
      %v1547 = vld [vmem:[%s242 + $0x268] sm:$0xff]
      %v1548 = vld [vmem:[%s242 + $0x270] sm:$0xff]
      %v1549 = vld [vmem:[%s242 + $0x278] sm:$0xff]
      %v1550 = vld [vmem:[%s242 + $0x280] sm:$0xff]
      %v1551 = vld [vmem:[%s242 + $0x288] sm:$0xff]
      %v1552 = vld [vmem:[%s242 + $0x290] sm:$0xff]
      %v1553 = vld [vmem:[%s242 + $0x298] sm:$0xff]
      %v1554 = vld [vmem:[%s242 + $0x2a0] sm:$0xff]
      %v1555 = vld [vmem:[%s242 + $0x2a8] sm:$0xff]
      %v1556 = vld [vmem:[%s242 + $0x2b0] sm:$0xff]
      %v1557 = vld [vmem:[%s242 + $0x2b8] sm:$0xff]
      %v1558 = vld [vmem:[%s242 + $0x2c0] sm:$0xff]
      %v1559 = vld [vmem:[%s242 + $0x2c8] sm:$0xff]
      %v1560 = vld [vmem:[%s242 + $0x2d0] sm:$0xff]
      %v1561 = vld [vmem:[%s242 + $0x2d8] sm:$0xff]
      %v1562 = vld [vmem:[%s242 + $0x2e0] sm:$0xff]
      %v1563 = vld [vmem:[%s242 + $0x2e8] sm:$0xff]
      %v1564 = vld [vmem:[%s242 + $0x2f0] sm:$0xff]
      %v1565 = vld [vmem:[%s242 + $0x2f8] sm:$0xff]
      %v1566 = vld [vmem:[%s242 + $0x300] sm:$0xff]
      %v1567 = vld [vmem:[%s242 + $0x308] sm:$0xff]
      %v1568 = vld [vmem:[%s242 + $0x310] sm:$0xff]
      %v1569 = vld [vmem:[%s242 + $0x318] sm:$0xff]
      %v1570 = vld [vmem:[%s242 + $0x320] sm:$0xff]
      %v1571 = vld [vmem:[%s242 + $0x328] sm:$0xff]
      %v1572 = vld [vmem:[%s242 + $0x330] sm:$0xff]
      %v1573 = vld [vmem:[%s242 + $0x338] sm:$0xff]
      %v1574 = vld [vmem:[%s242 + $0x340] sm:$0xff]
      %v1575 = vld [vmem:[%s242 + $0x348] sm:$0xff]
      %v1576 = vld [vmem:[%s242 + $0x350] sm:$0xff]
      %v1577 = vld [vmem:[%s242 + $0x358] sm:$0xff]
      %v1578 = vld [vmem:[%s242 + $0x360] sm:$0xff]
      %v1579 = vld [vmem:[%s242 + $0x368] sm:$0xff]
      %v1580 = vld [vmem:[%s242 + $0x370] sm:$0xff]
      %v1581 = vld [vmem:[%s242 + $0x378] sm:$0xff]
      %v1582 = vld [vmem:[%s242 + $0x380] sm:$0xff]
      %v1583 = vld [vmem:[%s242 + $0x388] sm:$0xff]
      %v1584 = vld [vmem:[%s242 + $0x390] sm:$0xff]
      %v1585 = vld [vmem:[%s242 + $0x398] sm:$0xff]
      %v1586 = vld [vmem:[%s242 + $0x3a0] sm:$0xff]
      %v1587 = vld [vmem:[%s242 + $0x3a8] sm:$0xff]
      %v1588 = vld [vmem:[%s242 + $0x3b0] sm:$0xff]
      %v1589 = vld [vmem:[%s242 + $0x3b8] sm:$0xff]
      %v1590 = vld [vmem:[%s242 + $0x3c0] sm:$0xff]
      %v1591 = vld [vmem:[%s242 + $0x3c8] sm:$0xff]
      %v1592 = vld [vmem:[%s242 + $0x3d0] sm:$0xff]
      %v1593 = vld [vmem:[%s242 + $0x3d8] sm:$0xff]
      %v1594 = vld [vmem:[%s242 + $0x3e0] sm:$0xff]
      %v1595 = vld [vmem:[%s242 + $0x3e8] sm:$0xff]
      %v1596 = vld [vmem:[%s242 + $0x3f0] sm:$0xff]
      %v1597 = vld [vmem:[%s242 + $0x3f8] sm:$0xff]
      %v1598 = vld [vmem:[%s3] sm:$0xf]
      %vm1599 = vcmask 31744
      %v1601 = vsel %vm1599, %v1470, 0
      %v1604 = vsel %vm1599, %v1471, 0
      %v1607 = vsel %vm1599, %v1472, 0
      %v1610 = vsel %vm1599, %v1473, 0
      %v1613 = vsel %vm1599, %v1474, 0
      %v1616 = vsel %vm1599, %v1475, 0
      %v1619 = vsel %vm1599, %v1476, 0
      %v1622 = vsel %vm1599, %v1477, 0
      %v1625 = vsel %vm1599, %v1478, 0
      %v1628 = vsel %vm1599, %v1479, 0
      %v1631 = vsel %vm1599, %v1480, 0
      %v1634 = vsel %vm1599, %v1481, 0
      %v1637 = vsel %vm1599, %v1482, 0
      %v1640 = vsel %vm1599, %v1483, 0
      %v1643 = vsel %vm1599, %v1484, 0
      %v1646 = vsel %vm1599, %v1485, 0
      %v1649 = vsel %vm1599, %v1486, 0
      %v1652 = vsel %vm1599, %v1487, 0
      %v1655 = vsel %vm1599, %v1488, 0
      %v1658 = vsel %vm1599, %v1489, 0
      %v1661 = vsel %vm1599, %v1490, 0
      %v1664 = vsel %vm1599, %v1491, 0
      %v1667 = vsel %vm1599, %v1492, 0
      %v1670 = vsel %vm1599, %v1493, 0
      %v1673 = vsel %vm1599, %v1494, 0
      %v1676 = vsel %vm1599, %v1495, 0
      %v1679 = vsel %vm1599, %v1496, 0
      %v1682 = vsel %vm1599, %v1497, 0
      %v1685 = vsel %vm1599, %v1498, 0
      %v1688 = vsel %vm1599, %v1499, 0
      %v1691 = vsel %vm1599, %v1500, 0
      %v1694 = vsel %vm1599, %v1501, 0
      %v1697 = vsel %vm1599, %v1502, 0
      %v1700 = vsel %vm1599, %v1503, 0
      %v1703 = vsel %vm1599, %v1504, 0
      %v1706 = vsel %vm1599, %v1505, 0
      %v1709 = vsel %vm1599, %v1506, 0
      %v1712 = vsel %vm1599, %v1507, 0
      %v1715 = vsel %vm1599, %v1508, 0
      %v1718 = vsel %vm1599, %v1509, 0
      %v1721 = vsel %vm1599, %v1510, 0
      %v1724 = vsel %vm1599, %v1511, 0
      %v1727 = vsel %vm1599, %v1512, 0
      %v1730 = vsel %vm1599, %v1513, 0
      %v1733 = vsel %vm1599, %v1514, 0
      %v1736 = vsel %vm1599, %v1515, 0
      %v1739 = vsel %vm1599, %v1516, 0
      %v1742 = vsel %vm1599, %v1517, 0
      %v1745 = vsel %vm1599, %v1518, 0
      %v1748 = vsel %vm1599, %v1519, 0
      %v1751 = vsel %vm1599, %v1520, 0
      %v1754 = vsel %vm1599, %v1521, 0
      %v1757 = vsel %vm1599, %v1522, 0
      %v1760 = vsel %vm1599, %v1523, 0
      %v1763 = vsel %vm1599, %v1524, 0
      %v1766 = vsel %vm1599, %v1525, 0
      %v1769 = vsel %vm1599, %v1526, 0
      %v1772 = vsel %vm1599, %v1527, 0
      %v1775 = vsel %vm1599, %v1528, 0
      %v1778 = vsel %vm1599, %v1529, 0
      %v1781 = vsel %vm1599, %v1530, 0
      %v1784 = vsel %vm1599, %v1531, 0
      %v1787 = vsel %vm1599, %v1532, 0
      %v1790 = vsel %vm1599, %v1533, 0
      %v1793 = vsel %vm1599, %v1534, 0
      %v1796 = vsel %vm1599, %v1535, 0
      %v1799 = vsel %vm1599, %v1536, 0
      %v1802 = vsel %vm1599, %v1537, 0
      %v1805 = vsel %vm1599, %v1538, 0
      %v1808 = vsel %vm1599, %v1539, 0
      %v1811 = vsel %vm1599, %v1540, 0
      %v1814 = vsel %vm1599, %v1541, 0
      %v1817 = vsel %vm1599, %v1542, 0
      %v1820 = vsel %vm1599, %v1543, 0
      %v1823 = vsel %vm1599, %v1544, 0
      %v1826 = vsel %vm1599, %v1545, 0
      %v1829 = vsel %vm1599, %v1546, 0
      %v1832 = vsel %vm1599, %v1547, 0
      %v1835 = vsel %vm1599, %v1548, 0
      %v1838 = vsel %vm1599, %v1549, 0
      %v1841 = vsel %vm1599, %v1550, 0
      %v1844 = vsel %vm1599, %v1551, 0
      %v1847 = vsel %vm1599, %v1552, 0
      %v1850 = vsel %vm1599, %v1553, 0
      %v1853 = vsel %vm1599, %v1554, 0
      %v1856 = vsel %vm1599, %v1555, 0
      %v1859 = vsel %vm1599, %v1556, 0
      %v1862 = vsel %vm1599, %v1557, 0
      %v1865 = vsel %vm1599, %v1558, 0
      %v1868 = vsel %vm1599, %v1559, 0
      %v1871 = vsel %vm1599, %v1560, 0
      %v1874 = vsel %vm1599, %v1561, 0
      %v1877 = vsel %vm1599, %v1562, 0
      %v1880 = vsel %vm1599, %v1563, 0
      %v1883 = vsel %vm1599, %v1564, 0
      %v1886 = vsel %vm1599, %v1565, 0
      %v1889 = vsel %vm1599, %v1566, 0
      %v1892 = vsel %vm1599, %v1567, 0
      %v1895 = vsel %vm1599, %v1568, 0
      %v1898 = vsel %vm1599, %v1569, 0
      %v1901 = vsel %vm1599, %v1570, 0
      %v1904 = vsel %vm1599, %v1571, 0
      %v1907 = vsel %vm1599, %v1572, 0
      %v1910 = vsel %vm1599, %v1573, 0
      %v1913 = vsel %vm1599, %v1574, 0
      %v1916 = vsel %vm1599, %v1575, 0
      %v1919 = vsel %vm1599, %v1576, 0
      %v1922 = vsel %vm1599, %v1577, 0
      %v1925 = vsel %vm1599, %v1578, 0
      %v1928 = vsel %vm1599, %v1579, 0
      %v1931 = vsel %vm1599, %v1580, 0
      %v1934 = vsel %vm1599, %v1581, 0
      %v1937 = vsel %vm1599, %v1582, 0
      %v1940 = vsel %vm1599, %v1583, 0
      %v1943 = vsel %vm1599, %v1584, 0
      %v1946 = vsel %vm1599, %v1585, 0
      %v1949 = vsel %vm1599, %v1586, 0
      %v1952 = vsel %vm1599, %v1587, 0
      %v1955 = vsel %vm1599, %v1588, 0
      %v1958 = vsel %vm1599, %v1589, 0
      %v1961 = vsel %vm1599, %v1590, 0
      %v1964 = vsel %vm1599, %v1591, 0
      %v1967 = vsel %vm1599, %v1592, 0
      %v1970 = vsel %vm1599, %v1593, 0
      %v1973 = vsel %vm1599, %v1594, 0
      %v1976 = vsel %vm1599, %v1595, 0
      %v1979 = vsel %vm1599, %v1596, 0
      %v1982 = vsel %vm1599, %v1597, 0
      %vm1984 = vcmask 1043456
      %v1986 = vsel %vm1984, %v1598, 0
      %1988 = vmatprep.subr.mxu0 0.0
      %1989 = vmatpush1.msra.mxu0 %v1986
      %1990 = vmatprep.subr.mxu0 0.0
      %1991 = vmatpush1.msra.mxu0 0.0
      %1992 = vmatprep.subr.mxu0 0.0
      %1993 = vmatpush1.msra.mxu0 0.0
      %1994 = vmatprep.subr.mxu0 0.0
      %1995 = vmatpush1.msra.mxu0 0.0
      %1996 = vmatprep.subr.mxu0 0.0
      %1997 = vmatpush1.msra.mxu0 0.0
      %1998 = vmatprep.subr.mxu0 0.0
      %1999 = vmatpush1.msra.mxu0 0.0
      %2000 = vmatprep.subr.mxu0 0.0
      %2001 = vmatpush1.msra.mxu0 0.0
      %2002 = vmatprep.subr.mxu0 0.0
      %2003 = vmatpush1.msra.mxu0 0.0
      %2004 = vmatprep.subr.mxu0 0.0
      %2005 = vmatpush1.msra.mxu0 0.0
      %2006 = vmatprep.subr.mxu0 0.0
      %2007 = vmatpush1.msra.mxu0 0.0
      %2008 = vmatprep.subr.mxu0 0.0
      %2009 = vmatpush1.msra.mxu0 0.0
      %2010 = vmatprep.subr.mxu0 0.0
      %2011 = vmatpush1.msra.mxu0 0.0
      %2012 = vmatprep.subr.mxu0 0.0
      %2013 = vmatpush1.msra.mxu0 0.0
      %2014 = vmatprep.subr.mxu0 0.0
      %2015 = vmatpush1.msra.mxu0 0.0
      %2016 = vmatprep.subr.mxu0 0.0
      %2017 = vmatpush1.msra.mxu0 0.0
      %2018 = vmatprep.subr.mxu0 0.0
      %2019 = vmatpush1.msra.mxu0 0.0
      %2020 = vmatprep.subr.mxu0 0.0
      %2021 = vmatpush1.msra.mxu0 0.0
      %2022 = vmatprep.subr.mxu0 0.0
      %2023 = vmatpush1.msra.mxu0 0.0
      %2024 = vmatprep.subr.mxu0 0.0
      %2025 = vmatpush1.msra.mxu0 0.0
      %2026 = vmatprep.subr.mxu0 0.0
      %2027 = vmatpush1.msra.mxu0 0.0
      %2028 = vmatprep.subr.mxu0 0.0
      %2029 = vmatpush1.msra.mxu0 0.0
      %2030 = vmatprep.subr.mxu0 0.0
      %2031 = vmatpush1.msra.mxu0 0.0
      %2032 = vmatprep.subr.mxu0 0.0
      %2033 = vmatpush1.msra.mxu0 0.0
      %2034 = vmatprep.subr.mxu0 0.0
      %2035 = vmatpush1.msra.mxu0 0.0
      %2036 = vmatprep.subr.mxu0 0.0
      %2037 = vmatpush1.msra.mxu0 0.0
      %2038 = vmatprep.subr.mxu0 0.0
      %2039 = vmatpush1.msra.mxu0 0.0
      %2040 = vmatprep.subr.mxu0 0.0
      %2041 = vmatpush1.msra.mxu0 0.0
      %2042 = vmatprep.subr.mxu0 0.0
      %2043 = vmatpush1.msra.mxu0 0.0
      %2044 = vmatprep.subr.mxu0 0.0
      %2045 = vmatpush1.msra.mxu0 0.0
      %2046 = vmatprep.subr.mxu0 0.0
      %2047 = vmatpush1.msra.mxu0 0.0
      %2048 = vmatprep.subr.mxu0 0.0
      %2049 = vmatpush1.msra.mxu0 0.0
      %2050 = vmatprep.subr.mxu0 0.0
      %2051 = vmatpush1.msra.mxu0 0.0
      %2052 = vmatprep.mubr.f32.mxu0 0.0
      %2053 = vmatmul.mubr.f32.gmra.mrb[0].mxu0 %v1601
      %v2054 = vpop.f32.mrb[0].mxu0
      %v2055 = vadd.f32 0.0, %v2054
      %v2056 = vpop.f32.mrb[0].mxu0
      %2057 = vmatprep.mubr.f32.mxu0 0.0
      %2058 = vmatmul.mubr.f32.gmra.mrb[0].mxu0 %v1604
      %v2059 = vpop.f32.mrb[0].mxu0
      %v2060 = vadd.f32 0.0, %v2059
      %v2061 = vpop.f32.mrb[0].mxu0
      %2062 = vmatprep.mubr.f32.mxu0 0.0
      %2063 = vmatmul.mubr.f32.gmra.mrb[0].mxu0 %v1607
      %v2064 = vpop.f32.mrb[0].mxu0
      %v2065 = vadd.f32 0.0, %v2064
      %v2066 = vpop.f32.mrb[0].mxu0
      %2067 = vmatprep.mubr.f32.mxu0 0.0
      %2068 = vmatmul.mubr.f32.gmra.mrb[0].mxu0 %v1610
      %v2069 = vpop.f32.mrb[0].mxu0
      %v2070 = vadd.f32 0.0, %v2069
      %v2071 = vpop.f32.mrb[0].mxu0
      %2072 = vmatprep.mubr.f32.mxu0 0.0
      %2073 = vmatmul.mubr.f32.gmra.mrb[0].mxu0 %v1613
      %v2074 = vpop.f32.mrb[0].mxu0
      %v2075 = vadd.f32 0.0, %v2074
      %v2076 = vpop.f32.mrb[0].mxu0
      %2077 = vmatprep.mubr.f32.mxu0 0.0
      %2078 = vmatmul.mubr.f32.gmra.mrb[0].mxu0 %v1616
      %v2079 = vpop.f32.mrb[0].mxu0
      %v2080 = vadd.f32 0.0, %v2079
      %v2081 = vpop.f32.mrb[0].mxu0
      %2082 = vmatprep.mubr.f32.mxu0 0.0
      %2083 = vmatmul.mubr.f32.gmra.mrb[0].mxu0 %v1619
      %v2084 = vpop.f32.mrb[0].mxu0
      %v2085 = vadd.f32 0.0, %v2084
      %v2086 = vpop.f32.mrb[0].mxu0
      %2087 = vmatprep.mubr.f32.mxu0 0.0
      %2088 = vmatmul.mubr.f32.gmra.mrb[0].mxu0 %v1622
      %v2089 = vpop.f32.mrb[0].mxu0
      %v2090 = vadd.f32 0.0, %v2089
      %v2091 = vpop.f32.mrb[0].mxu0
      %2092 = vmatprep.mubr.f32.mxu0 0.0
      %2093 = vmatmul.mubr.f32.gmra.mrb[0].mxu0 %v1625
      %v2094 = vpop.f32.mrb[0].mxu0
      %v2095 = vadd.f32 0.0, %v2094
      %v2096 = vpop.f32.mrb[0].mxu0
      %2097 = vmatprep.mubr.f32.mxu0 0.0
      %2098 = vmatmul.mubr.f32.gmra.mrb[0].mxu0 %v1628
      %v2099 = vpop.f32.mrb[0].mxu0
      %v2100 = vadd.f32 0.0, %v2099
      %v2101 = vpop.f32.mrb[0].mxu0
      %2102 = vmatprep.mubr.f32.mxu0 0.0
      %2103 = vmatmul.mubr.f32.gmra.mrb[0].mxu0 %v1631
      %v2104 = vpop.f32.mrb[0].mxu0
      %v2105 = vadd.f32 0.0, %v2104
      %v2106 = vpop.f32.mrb[0].mxu0
      %2107 = vmatprep.mubr.f32.mxu0 0.0
      %2108 = vmatmul.mubr.f32.gmra.mrb[0].mxu0 %v1634
      %v2109 = vpop.f32.mrb[0].mxu0
      %v2110 = vadd.f32 0.0, %v2109
      %v2111 = vpop.f32.mrb[0].mxu0
      %2112 = vmatprep.mubr.f32.mxu0 0.0
      %2113 = vmatmul.mubr.f32.gmra.mrb[0].mxu0 %v1637
      %v2114 = vpop.f32.mrb[0].mxu0
      %v2115 = vadd.f32 0.0, %v2114
      %v2116 = vpop.f32.mrb[0].mxu0
      %2117 = vmatprep.mubr.f32.mxu0 0.0
      %2118 = vmatmul.mubr.f32.gmra.mrb[0].mxu0 %v1640
      %v2119 = vpop.f32.mrb[0].mxu0
      %v2120 = vadd.f32 0.0, %v2119
      %v2121 = vpop.f32.mrb[0].mxu0
      %2122 = vmatprep.mubr.f32.mxu0 0.0
      %2123 = vmatmul.mubr.f32.gmra.mrb[0].mxu0 %v1643
      %v2124 = vpop.f32.mrb[0].mxu0
      %v2125 = vadd.f32 0.0, %v2124
      %v2126 = vpop.f32.mrb[0].mxu0
      %2127 = vmatprep.mubr.f32.mxu0 0.0
      %2128 = vmatmul.mubr.f32.gmra.mrb[0].mxu0 %v1646
      %v2129 = vpop.f32.mrb[0].mxu0
      %v2130 = vadd.f32 0.0, %v2129
      %v2131 = vpop.f32.mrb[0].mxu0
      %2132 = vmatprep.mubr.f32.mxu0 0.0
      %2133 = vmatmul.mubr.f32.gmra.mrb[0].mxu0 %v1649
      %v2134 = vpop.f32.mrb[0].mxu0
      %v2135 = vadd.f32 0.0, %v2134
      %v2136 = vpop.f32.mrb[0].mxu0
      %2137 = vmatprep.mubr.f32.mxu0 0.0
      %2138 = vmatmul.mubr.f32.gmra.mrb[0].mxu0 %v1652
      %v2139 = vpop.f32.mrb[0].mxu0
      %v2140 = vadd.f32 0.0, %v2139
      %v2141 = vpop.f32.mrb[0].mxu0
      %2142 = vmatprep.mubr.f32.mxu0 0.0
      %2143 = vmatmul.mubr.f32.gmra.mrb[0].mxu0 %v1655
      %v2144 = vpop.f32.mrb[0].mxu0
      %v2145 = vadd.f32 0.0, %v2144
      %v2146 = vpop.f32.mrb[0].mxu0
      %2147 = vmatprep.mubr.f32.mxu0 0.0
      %2148 = vmatmul.mubr.f32.gmra.mrb[0].mxu0 %v1658
      %v2149 = vpop.f32.mrb[0].mxu0
      %v2150 = vadd.f32 0.0, %v2149
      %v2151 = vpop.f32.mrb[0].mxu0
      %2152 = vmatprep.mubr.f32.mxu0 0.0
      %2153 = vmatmul.mubr.f32.gmra.mrb[0].mxu0 %v1661
      %v2154 = vpop.f32.mrb[0].mxu0
      %v2155 = vadd.f32 0.0, %v2154
      %v2156 = vpop.f32.mrb[0].mxu0
      %2157 = vmatprep.mubr.f32.mxu0 0.0
      %2158 = vmatmul.mubr.f32.gmra.mrb[0].mxu0 %v1664
      %v2159 = vpop.f32.mrb[0].mxu0
      %v2160 = vadd.f32 0.0, %v2159
      %v2161 = vpop.f32.mrb[0].mxu0
      %2162 = vmatprep.mubr.f32.mxu0 0.0
      %2163 = vmatmul.mubr.f32.gmra.mrb[0].mxu0 %v1667
      %v2164 = vpop.f32.mrb[0].mxu0
      %v2165 = vadd.f32 0.0, %v2164
      %v2166 = vpop.f32.mrb[0].mxu0
      %2167 = vmatprep.mubr.f32.mxu0 0.0
      %2168 = vmatmul.mubr.f32.gmra.mrb[0].mxu0 %v1670
      %v2169 = vpop.f32.mrb[0].mxu0
      %v2170 = vadd.f32 0.0, %v2169
      %v2171 = vpop.f32.mrb[0].mxu0
      %2172 = vmatprep.mubr.f32.mxu0 0.0
      %2173 = vmatmul.mubr.f32.gmra.mrb[0].mxu0 %v1673
      %v2174 = vpop.f32.mrb[0].mxu0
      %v2175 = vadd.f32 0.0, %v2174
      %v2176 = vpop.f32.mrb[0].mxu0
      %2177 = vmatprep.mubr.f32.mxu0 0.0
      %2178 = vmatmul.mubr.f32.gmra.mrb[0].mxu0 %v1676
      %v2179 = vpop.f32.mrb[0].mxu0
      %v2180 = vadd.f32 0.0, %v2179
      %v2181 = vpop.f32.mrb[0].mxu0
      %2182 = vmatprep.mubr.f32.mxu0 0.0
      %2183 = vmatmul.mubr.f32.gmra.mrb[0].mxu0 %v1679
      %v2184 = vpop.f32.mrb[0].mxu0
      %v2185 = vadd.f32 0.0, %v2184
      %v2186 = vpop.f32.mrb[0].mxu0
      %2187 = vmatprep.mubr.f32.mxu0 0.0
      %2188 = vmatmul.mubr.f32.gmra.mrb[0].mxu0 %v1682
      %v2189 = vpop.f32.mrb[0].mxu0
      %v2190 = vadd.f32 0.0, %v2189
      %v2191 = vpop.f32.mrb[0].mxu0
      %2192 = vmatprep.mubr.f32.mxu0 0.0
      %2193 = vmatmul.mubr.f32.gmra.mrb[0].mxu0 %v1685
      %v2194 = vpop.f32.mrb[0].mxu0
      %v2195 = vadd.f32 0.0, %v2194
      %v2196 = vpop.f32.mrb[0].mxu0
      %2197 = vmatprep.mubr.f32.mxu0 0.0
      %2198 = vmatmul.mubr.f32.gmra.mrb[0].mxu0 %v1688
      %v2199 = vpop.f32.mrb[0].mxu0
      %v2200 = vadd.f32 0.0, %v2199
      %v2201 = vpop.f32.mrb[0].mxu0
      %2202 = vmatprep.mubr.f32.mxu0 0.0
      %2203 = vmatmul.mubr.f32.gmra.mrb[0].mxu0 %v1691
      %v2204 = vpop.f32.mrb[0].mxu0
      %v2205 = vadd.f32 0.0, %v2204
      %v2206 = vpop.f32.mrb[0].mxu0
      %2207 = vmatprep.mubr.f32.mxu0 0.0
      %2208 = vmatmul.mubr.f32.gmra.mrb[0].mxu0 %v1694
      %v2209 = vpop.f32.mrb[0].mxu0
      %v2210 = vadd.f32 0.0, %v2209
      %v2211 = vpop.f32.mrb[0].mxu0
      %2212 = vmatprep.mubr.f32.mxu0 0.0
      %2213 = vmatmul.mubr.f32.gmra.mrb[0].mxu0 %v1697
      %v2214 = vpop.f32.mrb[0].mxu0
      %v2215 = vadd.f32 0.0, %v2214
      %v2216 = vpop.f32.mrb[0].mxu0
      %2217 = vmatprep.mubr.f32.mxu0 0.0
      %2218 = vmatmul.mubr.f32.gmra.mrb[0].mxu0 %v1700
      %v2219 = vpop.f32.mrb[0].mxu0
      %v2220 = vadd.f32 0.0, %v2219
      %v2221 = vpop.f32.mrb[0].mxu0
      %2222 = vmatprep.mubr.f32.mxu0 0.0
      %2223 = vmatmul.mubr.f32.gmra.mrb[0].mxu0 %v1703
      %v2224 = vpop.f32.mrb[0].mxu0
      %v2225 = vadd.f32 0.0, %v2224
      %v2226 = vpop.f32.mrb[0].mxu0
      %2227 = vmatprep.mubr.f32.mxu0 0.0
      %2228 = vmatmul.mubr.f32.gmra.mrb[0].mxu0 %v1706
      %v2229 = vpop.f32.mrb[0].mxu0
      %v2230 = vadd.f32 0.0, %v2229
      %v2231 = vpop.f32.mrb[0].mxu0
      %2232 = vmatprep.mubr.f32.mxu0 0.0
      %2233 = vmatmul.mubr.f32.gmra.mrb[0].mxu0 %v1709
      %v2234 = vpop.f32.mrb[0].mxu0
      %v2235 = vadd.f32 0.0, %v2234
      %v2236 = vpop.f32.mrb[0].mxu0
      %2237 = vmatprep.mubr.f32.mxu0 0.0
      %2238 = vmatmul.mubr.f32.gmra.mrb[0].mxu0 %v1712
      %v2239 = vpop.f32.mrb[0].mxu0
      %v2240 = vadd.f32 0.0, %v2239
      %v2241 = vpop.f32.mrb[0].mxu0
      %2242 = vmatprep.mubr.f32.mxu0 0.0
      %2243 = vmatmul.mubr.f32.gmra.mrb[0].mxu0 %v1715
      %v2244 = vpop.f32.mrb[0].mxu0
      %v2245 = vadd.f32 0.0, %v2244
      %v2246 = vpop.f32.mrb[0].mxu0
      %2247 = vmatprep.mubr.f32.mxu0 0.0
      %2248 = vmatmul.mubr.f32.gmra.mrb[0].mxu0 %v1718
      %v2249 = vpop.f32.mrb[0].mxu0
      %v2250 = vadd.f32 0.0, %v2249
      %v2251 = vpop.f32.mrb[0].mxu0
      %2252 = vmatprep.mubr.f32.mxu0 0.0
      %2253 = vmatmul.mubr.f32.gmra.mrb[0].mxu0 %v1721
      %v2254 = vpop.f32.mrb[0].mxu0
      %v2255 = vadd.f32 0.0, %v2254
      %v2256 = vpop.f32.mrb[0].mxu0
      %2257 = vmatprep.mubr.f32.mxu0 0.0
      %2258 = vmatmul.mubr.f32.gmra.mrb[0].mxu0 %v1724
      %v2259 = vpop.f32.mrb[0].mxu0
      %v2260 = vadd.f32 0.0, %v2259
      %v2261 = vpop.f32.mrb[0].mxu0
      %2262 = vmatprep.mubr.f32.mxu0 0.0
      %2263 = vmatmul.mubr.f32.gmra.mrb[0].mxu0 %v1727
      %v2264 = vpop.f32.mrb[0].mxu0
      %v2265 = vadd.f32 0.0, %v2264
      %v2266 = vpop.f32.mrb[0].mxu0
      %2267 = vmatprep.mubr.f32.mxu0 0.0
      %2268 = vmatmul.mubr.f32.gmra.mrb[0].mxu0 %v1730
      %v2269 = vpop.f32.mrb[0].mxu0
      %v2270 = vadd.f32 0.0, %v2269
      %v2271 = vpop.f32.mrb[0].mxu0
      %2272 = vmatprep.mubr.f32.mxu0 0.0
      %2273 = vmatmul.mubr.f32.gmra.mrb[0].mxu0 %v1733
      %v2274 = vpop.f32.mrb[0].mxu0
      %v2275 = vadd.f32 0.0, %v2274
      %v2276 = vpop.f32.mrb[0].mxu0
      %2277 = vmatprep.mubr.f32.mxu0 0.0
      %2278 = vmatmul.mubr.f32.gmra.mrb[0].mxu0 %v1736
      %v2279 = vpop.f32.mrb[0].mxu0
      %v2280 = vadd.f32 0.0, %v2279
      %v2281 = vpop.f32.mrb[0].mxu0
      %2282 = vmatprep.mubr.f32.mxu0 0.0
      %2283 = vmatmul.mubr.f32.gmra.mrb[0].mxu0 %v1739
      %v2284 = vpop.f32.mrb[0].mxu0
      %v2285 = vadd.f32 0.0, %v2284
      %v2286 = vpop.f32.mrb[0].mxu0
      %2287 = vmatprep.mubr.f32.mxu0 0.0
      %2288 = vmatmul.mubr.f32.gmra.mrb[0].mxu0 %v1742
      %v2289 = vpop.f32.mrb[0].mxu0
      %v2290 = vadd.f32 0.0, %v2289
      %v2291 = vpop.f32.mrb[0].mxu0
      %2292 = vmatprep.mubr.f32.mxu0 0.0
      %2293 = vmatmul.mubr.f32.gmra.mrb[0].mxu0 %v1745
      %v2294 = vpop.f32.mrb[0].mxu0
      %v2295 = vadd.f32 0.0, %v2294
      %v2296 = vpop.f32.mrb[0].mxu0
      %2297 = vmatprep.mubr.f32.mxu0 0.0
      %2298 = vmatmul.mubr.f32.gmra.mrb[0].mxu0 %v1748
      %v2299 = vpop.f32.mrb[0].mxu0
      %v2300 = vadd.f32 0.0, %v2299
      %v2301 = vpop.f32.mrb[0].mxu0
      %2302 = vmatprep.mubr.f32.mxu0 0.0
      %2303 = vmatmul.mubr.f32.gmra.mrb[0].mxu0 %v1751
      %v2304 = vpop.f32.mrb[0].mxu0
      %v2305 = vadd.f32 0.0, %v2304
      %v2306 = vpop.f32.mrb[0].mxu0
      %2307 = vmatprep.mubr.f32.mxu0 0.0
      %2308 = vmatmul.mubr.f32.gmra.mrb[0].mxu0 %v1754
      %v2309 = vpop.f32.mrb[0].mxu0
      %v2310 = vadd.f32 0.0, %v2309
      %v2311 = vpop.f32.mrb[0].mxu0
      %2312 = vmatprep.mubr.f32.mxu0 0.0
      %2313 = vmatmul.mubr.f32.gmra.mrb[0].mxu0 %v1757
      %v2314 = vpop.f32.mrb[0].mxu0
      %v2315 = vadd.f32 0.0, %v2314
      %v2316 = vpop.f32.mrb[0].mxu0
      %2317 = vmatprep.mubr.f32.mxu0 0.0
      %2318 = vmatmul.mubr.f32.gmra.mrb[0].mxu0 %v1760
      %v2319 = vpop.f32.mrb[0].mxu0
      %v2320 = vadd.f32 0.0, %v2319
      %v2321 = vpop.f32.mrb[0].mxu0
      %2322 = vmatprep.mubr.f32.mxu0 0.0
      %2323 = vmatmul.mubr.f32.gmra.mrb[0].mxu0 %v1763
      %v2324 = vpop.f32.mrb[0].mxu0
      %v2325 = vadd.f32 0.0, %v2324
      %v2326 = vpop.f32.mrb[0].mxu0
      %2327 = vmatprep.mubr.f32.mxu0 0.0
      %2328 = vmatmul.mubr.f32.gmra.mrb[0].mxu0 %v1766
      %v2329 = vpop.f32.mrb[0].mxu0
      %v2330 = vadd.f32 0.0, %v2329
      %v2331 = vpop.f32.mrb[0].mxu0
      %2332 = vmatprep.mubr.f32.mxu0 0.0
      %2333 = vmatmul.mubr.f32.gmra.mrb[0].mxu0 %v1769
      %v2334 = vpop.f32.mrb[0].mxu0
      %v2335 = vadd.f32 0.0, %v2334
      %v2336 = vpop.f32.mrb[0].mxu0
      %2337 = vmatprep.mubr.f32.mxu0 0.0
      %2338 = vmatmul.mubr.f32.gmra.mrb[0].mxu0 %v1772
      %v2339 = vpop.f32.mrb[0].mxu0
      %v2340 = vadd.f32 0.0, %v2339
      %v2341 = vpop.f32.mrb[0].mxu0
      %2342 = vmatprep.mubr.f32.mxu0 0.0
      %2343 = vmatmul.mubr.f32.gmra.mrb[0].mxu0 %v1775
      %v2344 = vpop.f32.mrb[0].mxu0
      %v2345 = vadd.f32 0.0, %v2344
      %v2346 = vpop.f32.mrb[0].mxu0
      %2347 = vmatprep.mubr.f32.mxu0 0.0
      %2348 = vmatmul.mubr.f32.gmra.mrb[0].mxu0 %v1778
      %v2349 = vpop.f32.mrb[0].mxu0
      %v2350 = vadd.f32 0.0, %v2349
      %v2351 = vpop.f32.mrb[0].mxu0
      %2352 = vmatprep.mubr.f32.mxu0 0.0
      %2353 = vmatmul.mubr.f32.gmra.mrb[0].mxu0 %v1781
      %v2354 = vpop.f32.mrb[0].mxu0
      %v2355 = vadd.f32 0.0, %v2354
      %v2356 = vpop.f32.mrb[0].mxu0
      %2357 = vmatprep.mubr.f32.mxu0 0.0
      %2358 = vmatmul.mubr.f32.gmra.mrb[0].mxu0 %v1784
      %v2359 = vpop.f32.mrb[0].mxu0
      %v2360 = vadd.f32 0.0, %v2359
      %v2361 = vpop.f32.mrb[0].mxu0
      %2362 = vmatprep.mubr.f32.mxu0 0.0
      %2363 = vmatmul.mubr.f32.gmra.mrb[0].mxu0 %v1787
      %v2364 = vpop.f32.mrb[0].mxu0
      %v2365 = vadd.f32 0.0, %v2364
      %v2366 = vpop.f32.mrb[0].mxu0
      %2367 = vmatprep.mubr.f32.mxu0 0.0
      %2368 = vmatmul.mubr.f32.gmra.mrb[0].mxu0 %v1790
      %v2369 = vpop.f32.mrb[0].mxu0
      %v2370 = vadd.f32 0.0, %v2369
      %v2371 = vpop.f32.mrb[0].mxu0
      %2372 = vmatprep.mubr.f32.mxu0 0.0
      %2373 = vmatmul.mubr.f32.gmra.mrb[0].mxu0 %v1793
      %v2374 = vpop.f32.mrb[0].mxu0
      %v2375 = vadd.f32 0.0, %v2374
      %v2376 = vpop.f32.mrb[0].mxu0
      %2377 = vmatprep.mubr.f32.mxu0 0.0
      %2378 = vmatmul.mubr.f32.gmra.mrb[0].mxu0 %v1796
      %v2379 = vpop.f32.mrb[0].mxu0
      %v2380 = vadd.f32 0.0, %v2379
      %v2381 = vpop.f32.mrb[0].mxu0
      %2382 = vmatprep.mubr.f32.mxu0 0.0
      %2383 = vmatmul.mubr.f32.gmra.mrb[0].mxu0 %v1799
      %v2384 = vpop.f32.mrb[0].mxu0
      %v2385 = vadd.f32 0.0, %v2384
      %v2386 = vpop.f32.mrb[0].mxu0
      %2387 = vmatprep.mubr.f32.mxu0 0.0
      %2388 = vmatmul.mubr.f32.gmra.mrb[0].mxu0 %v1802
      %v2389 = vpop.f32.mrb[0].mxu0
      %v2390 = vadd.f32 0.0, %v2389
      %v2391 = vpop.f32.mrb[0].mxu0
      %2392 = vmatprep.mubr.f32.mxu0 0.0
      %2393 = vmatmul.mubr.f32.gmra.mrb[0].mxu0 %v1805
      %v2394 = vpop.f32.mrb[0].mxu0
      %v2395 = vadd.f32 0.0, %v2394
      %v2396 = vpop.f32.mrb[0].mxu0
      %2397 = vmatprep.mubr.f32.mxu0 0.0
      %2398 = vmatmul.mubr.f32.gmra.mrb[0].mxu0 %v1808
      %v2399 = vpop.f32.mrb[0].mxu0
      %v2400 = vadd.f32 0.0, %v2399
      %v2401 = vpop.f32.mrb[0].mxu0
      %2402 = vmatprep.mubr.f32.mxu0 0.0
      %2403 = vmatmul.mubr.f32.gmra.mrb[0].mxu0 %v1811
      %v2404 = vpop.f32.mrb[0].mxu0
      %v2405 = vadd.f32 0.0, %v2404
      %v2406 = vpop.f32.mrb[0].mxu0
      %2407 = vmatprep.mubr.f32.mxu0 0.0
      %2408 = vmatmul.mubr.f32.gmra.mrb[0].mxu0 %v1814
      %v2409 = vpop.f32.mrb[0].mxu0
      %v2410 = vadd.f32 0.0, %v2409
      %v2411 = vpop.f32.mrb[0].mxu0
      %2412 = vmatprep.mubr.f32.mxu0 0.0
      %2413 = vmatmul.mubr.f32.gmra.mrb[0].mxu0 %v1817
      %v2414 = vpop.f32.mrb[0].mxu0
      %v2415 = vadd.f32 0.0, %v2414
      %v2416 = vpop.f32.mrb[0].mxu0
      %2417 = vmatprep.mubr.f32.mxu0 0.0
      %2418 = vmatmul.mubr.f32.gmra.mrb[0].mxu0 %v1820
      %v2419 = vpop.f32.mrb[0].mxu0
      %v2420 = vadd.f32 0.0, %v2419
      %v2421 = vpop.f32.mrb[0].mxu0
      %2422 = vmatprep.mubr.f32.mxu0 0.0
      %2423 = vmatmul.mubr.f32.gmra.mrb[0].mxu0 %v1823
      %v2424 = vpop.f32.mrb[0].mxu0
      %v2425 = vadd.f32 0.0, %v2424
      %v2426 = vpop.f32.mrb[0].mxu0
      %2427 = vmatprep.mubr.f32.mxu0 0.0
      %2428 = vmatmul.mubr.f32.gmra.mrb[0].mxu0 %v1826
      %v2429 = vpop.f32.mrb[0].mxu0
      %v2430 = vadd.f32 0.0, %v2429
      %v2431 = vpop.f32.mrb[0].mxu0
      %2432 = vmatprep.mubr.f32.mxu0 0.0
      %2433 = vmatmul.mubr.f32.gmra.mrb[0].mxu0 %v1829
      %v2434 = vpop.f32.mrb[0].mxu0
      %v2435 = vadd.f32 0.0, %v2434
      %v2436 = vpop.f32.mrb[0].mxu0
      %2437 = vmatprep.mubr.f32.mxu0 0.0
      %2438 = vmatmul.mubr.f32.gmra.mrb[0].mxu0 %v1832
      %v2439 = vpop.f32.mrb[0].mxu0
      %v2440 = vadd.f32 0.0, %v2439
      %v2441 = vpop.f32.mrb[0].mxu0
      %2442 = vmatprep.mubr.f32.mxu0 0.0
      %2443 = vmatmul.mubr.f32.gmra.mrb[0].mxu0 %v1835
      %v2444 = vpop.f32.mrb[0].mxu0
      %v2445 = vadd.f32 0.0, %v2444
      %v2446 = vpop.f32.mrb[0].mxu0
      %2447 = vmatprep.mubr.f32.mxu0 0.0
      %2448 = vmatmul.mubr.f32.gmra.mrb[0].mxu0 %v1838
      %v2449 = vpop.f32.mrb[0].mxu0
      %v2450 = vadd.f32 0.0, %v2449
      %v2451 = vpop.f32.mrb[0].mxu0
      %2452 = vmatprep.mubr.f32.mxu0 0.0
      %2453 = vmatmul.mubr.f32.gmra.mrb[0].mxu0 %v1841
      %v2454 = vpop.f32.mrb[0].mxu0
      %v2455 = vadd.f32 0.0, %v2454
      %v2456 = vpop.f32.mrb[0].mxu0
      %2457 = vmatprep.mubr.f32.mxu0 0.0
      %2458 = vmatmul.mubr.f32.gmra.mrb[0].mxu0 %v1844
      %v2459 = vpop.f32.mrb[0].mxu0
      %v2460 = vadd.f32 0.0, %v2459
      %v2461 = vpop.f32.mrb[0].mxu0
      %2462 = vmatprep.mubr.f32.mxu0 0.0
      %2463 = vmatmul.mubr.f32.gmra.mrb[0].mxu0 %v1847
      %v2464 = vpop.f32.mrb[0].mxu0
      %v2465 = vadd.f32 0.0, %v2464
      %v2466 = vpop.f32.mrb[0].mxu0
      %2467 = vmatprep.mubr.f32.mxu0 0.0
      %2468 = vmatmul.mubr.f32.gmra.mrb[0].mxu0 %v1850
      %v2469 = vpop.f32.mrb[0].mxu0
      %v2470 = vadd.f32 0.0, %v2469
      %v2471 = vpop.f32.mrb[0].mxu0
      %2472 = vmatprep.mubr.f32.mxu0 0.0
      %2473 = vmatmul.mubr.f32.gmra.mrb[0].mxu0 %v1853
      %v2474 = vpop.f32.mrb[0].mxu0
      %v2475 = vadd.f32 0.0, %v2474
      %v2476 = vpop.f32.mrb[0].mxu0
      %2477 = vmatprep.mubr.f32.mxu0 0.0
      %2478 = vmatmul.mubr.f32.gmra.mrb[0].mxu0 %v1856
      %v2479 = vpop.f32.mrb[0].mxu0
      %v2480 = vadd.f32 0.0, %v2479
      %v2481 = vpop.f32.mrb[0].mxu0
      %2482 = vmatprep.mubr.f32.mxu0 0.0
      %2483 = vmatmul.mubr.f32.gmra.mrb[0].mxu0 %v1859
      %v2484 = vpop.f32.mrb[0].mxu0
      %v2485 = vadd.f32 0.0, %v2484
      %v2486 = vpop.f32.mrb[0].mxu0
      %2487 = vmatprep.mubr.f32.mxu0 0.0
      %2488 = vmatmul.mubr.f32.gmra.mrb[0].mxu0 %v1862
      %v2489 = vpop.f32.mrb[0].mxu0
      %v2490 = vadd.f32 0.0, %v2489
      %v2491 = vpop.f32.mrb[0].mxu0
      %2492 = vmatprep.mubr.f32.mxu0 0.0
      %2493 = vmatmul.mubr.f32.gmra.mrb[0].mxu0 %v1865
      %v2494 = vpop.f32.mrb[0].mxu0
      %v2495 = vadd.f32 0.0, %v2494
      %v2496 = vpop.f32.mrb[0].mxu0
      %2497 = vmatprep.mubr.f32.mxu0 0.0
      %2498 = vmatmul.mubr.f32.gmra.mrb[0].mxu0 %v1868
      %v2499 = vpop.f32.mrb[0].mxu0
      %v2500 = vadd.f32 0.0, %v2499
      %v2501 = vpop.f32.mrb[0].mxu0
      %2502 = vmatprep.mubr.f32.mxu0 0.0
      %2503 = vmatmul.mubr.f32.gmra.mrb[0].mxu0 %v1871
      %v2504 = vpop.f32.mrb[0].mxu0
      %v2505 = vadd.f32 0.0, %v2504
      %v2506 = vpop.f32.mrb[0].mxu0
      %2507 = vmatprep.mubr.f32.mxu0 0.0
      %2508 = vmatmul.mubr.f32.gmra.mrb[0].mxu0 %v1874
      %v2509 = vpop.f32.mrb[0].mxu0
      %v2510 = vadd.f32 0.0, %v2509
      %v2511 = vpop.f32.mrb[0].mxu0
      %2512 = vmatprep.mubr.f32.mxu0 0.0
      %2513 = vmatmul.mubr.f32.gmra.mrb[0].mxu0 %v1877
      %v2514 = vpop.f32.mrb[0].mxu0
      %v2515 = vadd.f32 0.0, %v2514
      %v2516 = vpop.f32.mrb[0].mxu0
      %2517 = vmatprep.mubr.f32.mxu0 0.0
      %2518 = vmatmul.mubr.f32.gmra.mrb[0].mxu0 %v1880
      %v2519 = vpop.f32.mrb[0].mxu0
      %v2520 = vadd.f32 0.0, %v2519
      %v2521 = vpop.f32.mrb[0].mxu0
      %2522 = vmatprep.mubr.f32.mxu0 0.0
      %2523 = vmatmul.mubr.f32.gmra.mrb[0].mxu0 %v1883
      %v2524 = vpop.f32.mrb[0].mxu0
      %v2525 = vadd.f32 0.0, %v2524
      %v2526 = vpop.f32.mrb[0].mxu0
      %2527 = vmatprep.mubr.f32.mxu0 0.0
      %2528 = vmatmul.mubr.f32.gmra.mrb[0].mxu0 %v1886
      %v2529 = vpop.f32.mrb[0].mxu0
      %v2530 = vadd.f32 0.0, %v2529
      %v2531 = vpop.f32.mrb[0].mxu0
      %2532 = vmatprep.mubr.f32.mxu0 0.0
      %2533 = vmatmul.mubr.f32.gmra.mrb[0].mxu0 %v1889
      %v2534 = vpop.f32.mrb[0].mxu0
      %v2535 = vadd.f32 0.0, %v2534
      %v2536 = vpop.f32.mrb[0].mxu0
      %2537 = vmatprep.mubr.f32.mxu0 0.0
      %2538 = vmatmul.mubr.f32.gmra.mrb[0].mxu0 %v1892
      %v2539 = vpop.f32.mrb[0].mxu0
      %v2540 = vadd.f32 0.0, %v2539
      %v2541 = vpop.f32.mrb[0].mxu0
      %2542 = vmatprep.mubr.f32.mxu0 0.0
      %2543 = vmatmul.mubr.f32.gmra.mrb[0].mxu0 %v1895
      %v2544 = vpop.f32.mrb[0].mxu0
      %v2545 = vadd.f32 0.0, %v2544
      %v2546 = vpop.f32.mrb[0].mxu0
      %2547 = vmatprep.mubr.f32.mxu0 0.0
      %2548 = vmatmul.mubr.f32.gmra.mrb[0].mxu0 %v1898
      %v2549 = vpop.f32.mrb[0].mxu0
      %v2550 = vadd.f32 0.0, %v2549
      %v2551 = vpop.f32.mrb[0].mxu0
      %2552 = vmatprep.mubr.f32.mxu0 0.0
      %2553 = vmatmul.mubr.f32.gmra.mrb[0].mxu0 %v1901
      %v2554 = vpop.f32.mrb[0].mxu0
      %v2555 = vadd.f32 0.0, %v2554
      %v2556 = vpop.f32.mrb[0].mxu0
      %2557 = vmatprep.mubr.f32.mxu0 0.0
      %2558 = vmatmul.mubr.f32.gmra.mrb[0].mxu0 %v1904
      %v2559 = vpop.f32.mrb[0].mxu0
      %v2560 = vadd.f32 0.0, %v2559
      %v2561 = vpop.f32.mrb[0].mxu0
      %2562 = vmatprep.mubr.f32.mxu0 0.0
      %2563 = vmatmul.mubr.f32.gmra.mrb[0].mxu0 %v1907
      %v2564 = vpop.f32.mrb[0].mxu0
      %v2565 = vadd.f32 0.0, %v2564
      %v2566 = vpop.f32.mrb[0].mxu0
      %2567 = vmatprep.mubr.f32.mxu0 0.0
      %2568 = vmatmul.mubr.f32.gmra.mrb[0].mxu0 %v1910
      %v2569 = vpop.f32.mrb[0].mxu0
      %v2570 = vadd.f32 0.0, %v2569
      %v2571 = vpop.f32.mrb[0].mxu0
      %2572 = vmatprep.mubr.f32.mxu0 0.0
      %2573 = vmatmul.mubr.f32.gmra.mrb[0].mxu0 %v1913
      %v2574 = vpop.f32.mrb[0].mxu0
      %v2575 = vadd.f32 0.0, %v2574
      %v2576 = vpop.f32.mrb[0].mxu0
      %2577 = vmatprep.mubr.f32.mxu0 0.0
      %2578 = vmatmul.mubr.f32.gmra.mrb[0].mxu0 %v1916
      %v2579 = vpop.f32.mrb[0].mxu0
      %v2580 = vadd.f32 0.0, %v2579
      %v2581 = vpop.f32.mrb[0].mxu0
      %2582 = vmatprep.mubr.f32.mxu0 0.0
      %2583 = vmatmul.mubr.f32.gmra.mrb[0].mxu0 %v1919
      %v2584 = vpop.f32.mrb[0].mxu0
      %v2585 = vadd.f32 0.0, %v2584
      %v2586 = vpop.f32.mrb[0].mxu0
      %2587 = vmatprep.mubr.f32.mxu0 0.0
      %2588 = vmatmul.mubr.f32.gmra.mrb[0].mxu0 %v1922
      %v2589 = vpop.f32.mrb[0].mxu0
      %v2590 = vadd.f32 0.0, %v2589
      %v2591 = vpop.f32.mrb[0].mxu0
      %2592 = vmatprep.mubr.f32.mxu0 0.0
      %2593 = vmatmul.mubr.f32.gmra.mrb[0].mxu0 %v1925
      %v2594 = vpop.f32.mrb[0].mxu0
      %v2595 = vadd.f32 0.0, %v2594
      %v2596 = vpop.f32.mrb[0].mxu0
      %2597 = vmatprep.mubr.f32.mxu0 0.0
      %2598 = vmatmul.mubr.f32.gmra.mrb[0].mxu0 %v1928
      %v2599 = vpop.f32.mrb[0].mxu0
      %v2600 = vadd.f32 0.0, %v2599
      %v2601 = vpop.f32.mrb[0].mxu0
      %2602 = vmatprep.mubr.f32.mxu0 0.0
      %2603 = vmatmul.mubr.f32.gmra.mrb[0].mxu0 %v1931
      %v2604 = vpop.f32.mrb[0].mxu0
      %v2605 = vadd.f32 0.0, %v2604
      %v2606 = vpop.f32.mrb[0].mxu0
      %2607 = vmatprep.mubr.f32.mxu0 0.0
      %2608 = vmatmul.mubr.f32.gmra.mrb[0].mxu0 %v1934
      %v2609 = vpop.f32.mrb[0].mxu0
      %v2610 = vadd.f32 0.0, %v2609
      %v2611 = vpop.f32.mrb[0].mxu0
      %2612 = vmatprep.mubr.f32.mxu0 0.0
      %2613 = vmatmul.mubr.f32.gmra.mrb[0].mxu0 %v1937
      %v2614 = vpop.f32.mrb[0].mxu0
      %v2615 = vadd.f32 0.0, %v2614
      %v2616 = vpop.f32.mrb[0].mxu0
      %2617 = vmatprep.mubr.f32.mxu0 0.0
      %2618 = vmatmul.mubr.f32.gmra.mrb[0].mxu0 %v1940
      %v2619 = vpop.f32.mrb[0].mxu0
      %v2620 = vadd.f32 0.0, %v2619
      %v2621 = vpop.f32.mrb[0].mxu0
      %2622 = vmatprep.mubr.f32.mxu0 0.0
      %2623 = vmatmul.mubr.f32.gmra.mrb[0].mxu0 %v1943
      %v2624 = vpop.f32.mrb[0].mxu0
      %v2625 = vadd.f32 0.0, %v2624
      %v2626 = vpop.f32.mrb[0].mxu0
      %2627 = vmatprep.mubr.f32.mxu0 0.0
      %2628 = vmatmul.mubr.f32.gmra.mrb[0].mxu0 %v1946
      %v2629 = vpop.f32.mrb[0].mxu0
      %v2630 = vadd.f32 0.0, %v2629
      %v2631 = vpop.f32.mrb[0].mxu0
      %2632 = vmatprep.mubr.f32.mxu0 0.0
      %2633 = vmatmul.mubr.f32.gmra.mrb[0].mxu0 %v1949
      %v2634 = vpop.f32.mrb[0].mxu0
      %v2635 = vadd.f32 0.0, %v2634
      %v2636 = vpop.f32.mrb[0].mxu0
      %2637 = vmatprep.mubr.f32.mxu0 0.0
      %2638 = vmatmul.mubr.f32.gmra.mrb[0].mxu0 %v1952
      %v2639 = vpop.f32.mrb[0].mxu0
      %v2640 = vadd.f32 0.0, %v2639
      %v2641 = vpop.f32.mrb[0].mxu0
      %2642 = vmatprep.mubr.f32.mxu0 0.0
      %2643 = vmatmul.mubr.f32.gmra.mrb[0].mxu0 %v1955
      %v2644 = vpop.f32.mrb[0].mxu0
      %v2645 = vadd.f32 0.0, %v2644
      %v2646 = vpop.f32.mrb[0].mxu0
      %2647 = vmatprep.mubr.f32.mxu0 0.0
      %2648 = vmatmul.mubr.f32.gmra.mrb[0].mxu0 %v1958
      %v2649 = vpop.f32.mrb[0].mxu0
      %v2650 = vadd.f32 0.0, %v2649
      %v2651 = vpop.f32.mrb[0].mxu0
      %2652 = vmatprep.mubr.f32.mxu0 0.0
      %2653 = vmatmul.mubr.f32.gmra.mrb[0].mxu0 %v1961
      %v2654 = vpop.f32.mrb[0].mxu0
      %v2655 = vadd.f32 0.0, %v2654
      %v2656 = vpop.f32.mrb[0].mxu0
      %2657 = vmatprep.mubr.f32.mxu0 0.0
      %2658 = vmatmul.mubr.f32.gmra.mrb[0].mxu0 %v1964
      %v2659 = vpop.f32.mrb[0].mxu0
      %v2660 = vadd.f32 0.0, %v2659
      %v2661 = vpop.f32.mrb[0].mxu0
      %2662 = vmatprep.mubr.f32.mxu0 0.0
      %2663 = vmatmul.mubr.f32.gmra.mrb[0].mxu0 %v1967
      %v2664 = vpop.f32.mrb[0].mxu0
      %v2665 = vadd.f32 0.0, %v2664
      %v2666 = vpop.f32.mrb[0].mxu0
      %2667 = vmatprep.mubr.f32.mxu0 0.0
      %2668 = vmatmul.mubr.f32.gmra.mrb[0].mxu0 %v1970
      %v2669 = vpop.f32.mrb[0].mxu0
      %v2670 = vadd.f32 0.0, %v2669
      %v2671 = vpop.f32.mrb[0].mxu0
      %2672 = vmatprep.mubr.f32.mxu0 0.0
      %2673 = vmatmul.mubr.f32.gmra.mrb[0].mxu0 %v1973
      %v2674 = vpop.f32.mrb[0].mxu0
      %v2675 = vadd.f32 0.0, %v2674
      %v2676 = vpop.f32.mrb[0].mxu0
      %2677 = vmatprep.mubr.f32.mxu0 0.0
      %2678 = vmatmul.mubr.f32.gmra.mrb[0].mxu0 %v1976
      %v2679 = vpop.f32.mrb[0].mxu0
      %v2680 = vadd.f32 0.0, %v2679
      %v2681 = vpop.f32.mrb[0].mxu0
      %2682 = vmatprep.mubr.f32.mxu0 0.0
      %2683 = vmatmul.mubr.f32.gmra.mrb[0].mxu0 %v1979
      %v2684 = vpop.f32.mrb[0].mxu0
      %v2685 = vadd.f32 0.0, %v2684
      %v2686 = vpop.f32.mrb[0].mxu0
      %2687 = vmatprep.mubr.f32.mxu0 0.0
      %2688 = vmatmul.mubr.f32.gmra.mrb[0].mxu0 %v1982
      %v2689 = vpop.f32.mrb[0].mxu0
      %v2690 = vadd.f32 0.0, %v2689
      %v2691 = vpop.f32.mrb[0].mxu0
      %2692 = vdwg.mxu0
      %v2693 = vmul.f32 %v832, %v2055
      %v2694 = vmul.f32 %v837, %v2060
      %v2695 = vmul.f32 %v842, %v2065
      %v2696 = vmul.f32 %v847, %v2070
      %v2697 = vmul.f32 %v852, %v2075
      %v2698 = vmul.f32 %v857, %v2080
      %v2699 = vmul.f32 %v862, %v2085
      %v2700 = vmul.f32 %v867, %v2090
      %v2701 = vmul.f32 %v872, %v2095
      %v2702 = vmul.f32 %v877, %v2100
      %v2703 = vmul.f32 %v882, %v2105
      %v2704 = vmul.f32 %v887, %v2110
      %v2705 = vmul.f32 %v892, %v2115
      %v2706 = vmul.f32 %v897, %v2120
      %v2707 = vmul.f32 %v902, %v2125
      %v2708 = vmul.f32 %v907, %v2130
      %v2709 = vmul.f32 %v912, %v2135
      %v2710 = vmul.f32 %v917, %v2140
      %v2711 = vmul.f32 %v922, %v2145
      %v2712 = vmul.f32 %v927, %v2150
      %v2713 = vmul.f32 %v932, %v2155
      %v2714 = vmul.f32 %v937, %v2160
      %v2715 = vmul.f32 %v942, %v2165
      %v2716 = vmul.f32 %v947, %v2170
      %v2717 = vmul.f32 %v952, %v2175
      %v2718 = vmul.f32 %v957, %v2180
      %v2719 = vmul.f32 %v962, %v2185
      %v2720 = vmul.f32 %v967, %v2190
      %v2721 = vmul.f32 %v972, %v2195
      %v2722 = vmul.f32 %v977, %v2200
      %v2723 = vmul.f32 %v982, %v2205
      %v2724 = vmul.f32 %v987, %v2210
      %v2725 = vmul.f32 %v992, %v2215
      %v2726 = vmul.f32 %v997, %v2220
      %v2727 = vmul.f32 %v1002, %v2225
      %v2728 = vmul.f32 %v1007, %v2230
      %v2729 = vmul.f32 %v1012, %v2235
      %v2730 = vmul.f32 %v1017, %v2240
      %v2731 = vmul.f32 %v1022, %v2245
      %v2732 = vmul.f32 %v1027, %v2250
      %v2733 = vmul.f32 %v1032, %v2255
      %v2734 = vmul.f32 %v1037, %v2260
      %v2735 = vmul.f32 %v1042, %v2265
      %v2736 = vmul.f32 %v1047, %v2270
      %v2737 = vmul.f32 %v1052, %v2275
      %v2738 = vmul.f32 %v1057, %v2280
      %v2739 = vmul.f32 %v1062, %v2285
      %v2740 = vmul.f32 %v1067, %v2290
      %v2741 = vmul.f32 %v1072, %v2295
      %v2742 = vmul.f32 %v1077, %v2300
      %v2743 = vmul.f32 %v1082, %v2305
      %v2744 = vmul.f32 %v1087, %v2310
      %v2745 = vmul.f32 %v1092, %v2315
      %v2746 = vmul.f32 %v1097, %v2320
      %v2747 = vmul.f32 %v1102, %v2325
      %v2748 = vmul.f32 %v1107, %v2330
      %v2749 = vmul.f32 %v1112, %v2335
      %v2750 = vmul.f32 %v1117, %v2340
      %v2751 = vmul.f32 %v1122, %v2345
      %v2752 = vmul.f32 %v1127, %v2350
      %v2753 = vmul.f32 %v1132, %v2355
      %v2754 = vmul.f32 %v1137, %v2360
      %v2755 = vmul.f32 %v1142, %v2365
      %v2756 = vmul.f32 %v1147, %v2370
      %v2757 = vmul.f32 %v1152, %v2375
      %v2758 = vmul.f32 %v1157, %v2380
      %v2759 = vmul.f32 %v1162, %v2385
      %v2760 = vmul.f32 %v1167, %v2390
      %v2761 = vmul.f32 %v1172, %v2395
      %v2762 = vmul.f32 %v1177, %v2400
      %v2763 = vmul.f32 %v1182, %v2405
      %v2764 = vmul.f32 %v1187, %v2410
      %v2765 = vmul.f32 %v1192, %v2415
      %v2766 = vmul.f32 %v1197, %v2420
      %v2767 = vmul.f32 %v1202, %v2425
      %v2768 = vmul.f32 %v1207, %v2430
      %v2769 = vmul.f32 %v1212, %v2435
      %v2770 = vmul.f32 %v1217, %v2440
      %v2771 = vmul.f32 %v1222, %v2445
      %v2772 = vmul.f32 %v1227, %v2450
      %v2773 = vmul.f32 %v1232, %v2455
      %v2774 = vmul.f32 %v1237, %v2460
      %v2775 = vmul.f32 %v1242, %v2465
      %v2776 = vmul.f32 %v1247, %v2470
      %v2777 = vmul.f32 %v1252, %v2475
      %v2778 = vmul.f32 %v1257, %v2480
      %v2779 = vmul.f32 %v1262, %v2485
      %v2780 = vmul.f32 %v1267, %v2490
      %v2781 = vmul.f32 %v1272, %v2495
      %v2782 = vmul.f32 %v1277, %v2500
      %v2783 = vmul.f32 %v1282, %v2505
      %v2784 = vmul.f32 %v1287, %v2510
      %v2785 = vmul.f32 %v1292, %v2515
      %v2786 = vmul.f32 %v1297, %v2520
      %v2787 = vmul.f32 %v1302, %v2525
      %v2788 = vmul.f32 %v1307, %v2530
      %v2789 = vmul.f32 %v1312, %v2535
      %v2790 = vmul.f32 %v1317, %v2540
      %v2791 = vmul.f32 %v1322, %v2545
      %v2792 = vmul.f32 %v1327, %v2550
      %v2793 = vmul.f32 %v1332, %v2555
      %v2794 = vmul.f32 %v1337, %v2560
      %v2795 = vmul.f32 %v1342, %v2565
      %v2796 = vmul.f32 %v1347, %v2570
      %v2797 = vmul.f32 %v1352, %v2575
      %v2798 = vmul.f32 %v1357, %v2580
      %v2799 = vmul.f32 %v1362, %v2585
      %v2800 = vmul.f32 %v1367, %v2590
      %v2801 = vmul.f32 %v1372, %v2595
      %v2802 = vmul.f32 %v1377, %v2600
      %v2803 = vmul.f32 %v1382, %v2605
      %v2804 = vmul.f32 %v1387, %v2610
      %v2805 = vmul.f32 %v1392, %v2615
      %v2806 = vmul.f32 %v1397, %v2620
      %v2807 = vmul.f32 %v1402, %v2625
      %v2808 = vmul.f32 %v1407, %v2630
      %v2809 = vmul.f32 %v1412, %v2635
      %v2810 = vmul.f32 %v1417, %v2640
      %v2811 = vmul.f32 %v1422, %v2645
      %v2812 = vmul.f32 %v1427, %v2650
      %v2813 = vmul.f32 %v1432, %v2655
      %v2814 = vmul.f32 %v1437, %v2660
      %v2815 = vmul.f32 %v1442, %v2665
      %v2816 = vmul.f32 %v1447, %v2670
      %v2817 = vmul.f32 %v1452, %v2675
      %v2818 = vmul.f32 %v1457, %v2680
      %v2819 = vmul.f32 %v1462, %v2685
      %v2820 = vmul.f32 %v1467, %v2690
      %v2821 = vld [vmem:[%s4] sm:$0xff]
      %v2822 = vld [vmem:[%s4 + $0x8] sm:$0xff]
      %v2823 = vld [vmem:[%s4 + $0x10] sm:$0xff]
      %v2824 = vld [vmem:[%s4 + $0x18] sm:$0xff]
      %v2825 = vld [vmem:[%s4 + $0x20] sm:$0xff]
      %v2826 = vld [vmem:[%s4 + $0x28] sm:$0xff]
      %v2827 = vld [vmem:[%s4 + $0x30] sm:$0xff]
      %v2828 = vld [vmem:[%s4 + $0x38] sm:$0xff]
      %v2829 = vld [vmem:[%s4 + $0x40] sm:$0xff]
      %v2830 = vld [vmem:[%s4 + $0x48] sm:$0xff]
      %v2831 = vld [vmem:[%s4 + $0x50] sm:$0xff]
      %v2832 = vld [vmem:[%s4 + $0x58] sm:$0xff]
      %v2833 = vld [vmem:[%s4 + $0x60] sm:$0xff]
      %v2834 = vld [vmem:[%s4 + $0x68] sm:$0xff]
      %v2835 = vld [vmem:[%s4 + $0x70] sm:$0xff]
      %v2836 = vld [vmem:[%s4 + $0x78] sm:$0xff]
      %2837 = vmatprep.subr.mxu0 0.0
      %2838 = vmatpush1.msra.mxu0 %v2821
      %2839 = vmatprep.subr.mxu0 0.0
      %2840 = vmatpush1.msra.mxu0 %v2822
      %2841 = vmatprep.subr.mxu0 0.0
      %2842 = vmatpush1.msra.mxu0 %v2823
      %2843 = vmatprep.subr.mxu0 0.0
      %2844 = vmatpush1.msra.mxu0 %v2824
      %2845 = vmatprep.subr.mxu0 0.0
      %2846 = vmatpush1.msra.mxu0 %v2825
      %2847 = vmatprep.subr.mxu0 0.0
      %2848 = vmatpush1.msra.mxu0 %v2826
      %2849 = vmatprep.subr.mxu0 0.0
      %2850 = vmatpush1.msra.mxu0 %v2827
      %2851 = vmatprep.subr.mxu0 0.0
      %2852 = vmatpush1.msra.mxu0 %v2828
      %2853 = vmatprep.subr.mxu0 0.0
      %2854 = vmatpush1.msra.mxu0 %v2829
      %2855 = vmatprep.subr.mxu0 0.0
      %2856 = vmatpush1.msra.mxu0 %v2830
      %2857 = vmatprep.subr.mxu0 0.0
      %2858 = vmatpush1.msra.mxu0 %v2831
      %2859 = vmatprep.subr.mxu0 0.0
      %2860 = vmatpush1.msra.mxu0 %v2832
      %2861 = vmatprep.subr.mxu0 0.0
      %2862 = vmatpush1.msra.mxu0 %v2833
      %2863 = vmatprep.subr.mxu0 0.0
      %2864 = vmatpush1.msra.mxu0 %v2834
      %2865 = vmatprep.subr.mxu0 0.0
      %2866 = vmatpush1.msra.mxu0 %v2835
      %2867 = vmatprep.subr.mxu0 0.0
      %2868 = vmatpush1.msra.mxu0 %v2836
      %2869 = vmatprep.subr.mxu0 0.0
      %2870 = vmatpush1.msra.mxu0 0.0
      %2871 = vmatprep.subr.mxu0 0.0
      %2872 = vmatpush1.msra.mxu0 0.0
      %2873 = vmatprep.subr.mxu0 0.0
      %2874 = vmatpush1.msra.mxu0 0.0
      %2875 = vmatprep.subr.mxu0 0.0
      %2876 = vmatpush1.msra.mxu0 0.0
      %2877 = vmatprep.subr.mxu0 0.0
      %2878 = vmatpush1.msra.mxu0 0.0
      %2879 = vmatprep.subr.mxu0 0.0
      %2880 = vmatpush1.msra.mxu0 0.0
      %2881 = vmatprep.subr.mxu0 0.0
      %2882 = vmatpush1.msra.mxu0 0.0
      %2883 = vmatprep.subr.mxu0 0.0
      %2884 = vmatpush1.msra.mxu0 0.0
      %2885 = vmatprep.subr.mxu0 0.0
      %2886 = vmatpush1.msra.mxu0 0.0
      %2887 = vmatprep.subr.mxu0 0.0
      %2888 = vmatpush1.msra.mxu0 0.0
      %2889 = vmatprep.subr.mxu0 0.0
      %2890 = vmatpush1.msra.mxu0 0.0
      %2891 = vmatprep.subr.mxu0 0.0
      %2892 = vmatpush1.msra.mxu0 0.0
      %2893 = vmatprep.subr.mxu0 0.0
      %2894 = vmatpush1.msra.mxu0 0.0
      %2895 = vmatprep.subr.mxu0 0.0
      %2896 = vmatpush1.msra.mxu0 0.0
      %2897 = vmatprep.subr.mxu0 0.0
      %2898 = vmatpush1.msra.mxu0 0.0
      %2899 = vmatprep.subr.mxu0 0.0
      %2900 = vmatpush1.msra.mxu0 0.0
      %2901 = vmatprep.mubr.f32.mxu0 0.0
      %2902 = vmatmul.mubr.f32.gmra.mrb[0].mxu0 %v2693
      %v2903 = vpop.f32.mrb[0].mxu0
      %v2904 = vadd.f32 0.0, %v2903
      %v2905 = vpop.f32.mrb[0].mxu0
      %2906 = vmatprep.mubr.f32.mxu0 0.0
      %2907 = vmatmul.mubr.f32.gmra.mrb[0].mxu0 %v2694
      %v2908 = vpop.f32.mrb[0].mxu0
      %v2909 = vadd.f32 0.0, %v2908
      %v2910 = vpop.f32.mrb[0].mxu0
      %2911 = vmatprep.mubr.f32.mxu0 0.0
      %2912 = vmatmul.mubr.f32.gmra.mrb[0].mxu0 %v2695
      %v2913 = vpop.f32.mrb[0].mxu0
      %v2914 = vadd.f32 0.0, %v2913
      %v2915 = vpop.f32.mrb[0].mxu0
      %2916 = vmatprep.mubr.f32.mxu0 0.0
      %2917 = vmatmul.mubr.f32.gmra.mrb[0].mxu0 %v2696
      %v2918 = vpop.f32.mrb[0].mxu0
      %v2919 = vadd.f32 0.0, %v2918
      %v2920 = vpop.f32.mrb[0].mxu0
      %2921 = vmatprep.mubr.f32.mxu0 0.0
      %2922 = vmatmul.mubr.f32.gmra.mrb[0].mxu0 %v2697
      %v2923 = vpop.f32.mrb[0].mxu0
      %v2924 = vadd.f32 0.0, %v2923
      %v2925 = vpop.f32.mrb[0].mxu0
      %2926 = vmatprep.mubr.f32.mxu0 0.0
      %2927 = vmatmul.mubr.f32.gmra.mrb[0].mxu0 %v2698
      %v2928 = vpop.f32.mrb[0].mxu0
      %v2929 = vadd.f32 0.0, %v2928
      %v2930 = vpop.f32.mrb[0].mxu0
      %2931 = vmatprep.mubr.f32.mxu0 0.0
      %2932 = vmatmul.mubr.f32.gmra.mrb[0].mxu0 %v2699
      %v2933 = vpop.f32.mrb[0].mxu0
      %v2934 = vadd.f32 0.0, %v2933
      %v2935 = vpop.f32.mrb[0].mxu0
      %2936 = vmatprep.mubr.f32.mxu0 0.0
      %2937 = vmatmul.mubr.f32.gmra.mrb[0].mxu0 %v2700
      %v2938 = vpop.f32.mrb[0].mxu0
      %v2939 = vadd.f32 0.0, %v2938
      %v2940 = vpop.f32.mrb[0].mxu0
      %2941 = vmatprep.mubr.f32.mxu0 0.0
      %2942 = vmatmul.mubr.f32.gmra.mrb[0].mxu0 %v2701
      %v2943 = vpop.f32.mrb[0].mxu0
      %v2944 = vadd.f32 0.0, %v2943
      %v2945 = vpop.f32.mrb[0].mxu0
      %2946 = vmatprep.mubr.f32.mxu0 0.0
      %2947 = vmatmul.mubr.f32.gmra.mrb[0].mxu0 %v2702
      %v2948 = vpop.f32.mrb[0].mxu0
      %v2949 = vadd.f32 0.0, %v2948
      %v2950 = vpop.f32.mrb[0].mxu0
      %2951 = vmatprep.mubr.f32.mxu0 0.0
      %2952 = vmatmul.mubr.f32.gmra.mrb[0].mxu0 %v2703
      %v2953 = vpop.f32.mrb[0].mxu0
      %v2954 = vadd.f32 0.0, %v2953
      %v2955 = vpop.f32.mrb[0].mxu0
      %2956 = vmatprep.mubr.f32.mxu0 0.0
      %2957 = vmatmul.mubr.f32.gmra.mrb[0].mxu0 %v2704
      %v2958 = vpop.f32.mrb[0].mxu0
      %v2959 = vadd.f32 0.0, %v2958
      %v2960 = vpop.f32.mrb[0].mxu0
      %2961 = vmatprep.mubr.f32.mxu0 0.0
      %2962 = vmatmul.mubr.f32.gmra.mrb[0].mxu0 %v2705
      %v2963 = vpop.f32.mrb[0].mxu0
      %v2964 = vadd.f32 0.0, %v2963
      %v2965 = vpop.f32.mrb[0].mxu0
      %2966 = vmatprep.mubr.f32.mxu0 0.0
      %2967 = vmatmul.mubr.f32.gmra.mrb[0].mxu0 %v2706
      %v2968 = vpop.f32.mrb[0].mxu0
      %v2969 = vadd.f32 0.0, %v2968
      %v2970 = vpop.f32.mrb[0].mxu0
      %2971 = vmatprep.mubr.f32.mxu0 0.0
      %2972 = vmatmul.mubr.f32.gmra.mrb[0].mxu0 %v2707
      %v2973 = vpop.f32.mrb[0].mxu0
      %v2974 = vadd.f32 0.0, %v2973
      %v2975 = vpop.f32.mrb[0].mxu0
      %2976 = vmatprep.mubr.f32.mxu0 0.0
      %2977 = vmatmul.mubr.f32.gmra.mrb[0].mxu0 %v2708
      %v2978 = vpop.f32.mrb[0].mxu0
      %v2979 = vadd.f32 0.0, %v2978
      %v2980 = vpop.f32.mrb[0].mxu0
      %2981 = vmatprep.mubr.f32.mxu0 0.0
      %2982 = vmatmul.mubr.f32.gmra.mrb[0].mxu0 %v2709
      %v2983 = vpop.f32.mrb[0].mxu0
      %v2984 = vadd.f32 0.0, %v2983
      %v2985 = vpop.f32.mrb[0].mxu0
      %2986 = vmatprep.mubr.f32.mxu0 0.0
      %2987 = vmatmul.mubr.f32.gmra.mrb[0].mxu0 %v2710
      %v2988 = vpop.f32.mrb[0].mxu0
      %v2989 = vadd.f32 0.0, %v2988
      %v2990 = vpop.f32.mrb[0].mxu0
      %2991 = vmatprep.mubr.f32.mxu0 0.0
      %2992 = vmatmul.mubr.f32.gmra.mrb[0].mxu0 %v2711
      %v2993 = vpop.f32.mrb[0].mxu0
      %v2994 = vadd.f32 0.0, %v2993
      %v2995 = vpop.f32.mrb[0].mxu0
      %2996 = vmatprep.mubr.f32.mxu0 0.0
      %2997 = vmatmul.mubr.f32.gmra.mrb[0].mxu0 %v2712
      %v2998 = vpop.f32.mrb[0].mxu0
      %v2999 = vadd.f32 0.0, %v2998
      %v3000 = vpop.f32.mrb[0].mxu0
      %3001 = vmatprep.mubr.f32.mxu0 0.0
      %3002 = vmatmul.mubr.f32.gmra.mrb[0].mxu0 %v2713
      %v3003 = vpop.f32.mrb[0].mxu0
      %v3004 = vadd.f32 0.0, %v3003
      %v3005 = vpop.f32.mrb[0].mxu0
      %3006 = vmatprep.mubr.f32.mxu0 0.0
      %3007 = vmatmul.mubr.f32.gmra.mrb[0].mxu0 %v2714
      %v3008 = vpop.f32.mrb[0].mxu0
      %v3009 = vadd.f32 0.0, %v3008
      %v3010 = vpop.f32.mrb[0].mxu0
      %3011 = vmatprep.mubr.f32.mxu0 0.0
      %3012 = vmatmul.mubr.f32.gmra.mrb[0].mxu0 %v2715
      %v3013 = vpop.f32.mrb[0].mxu0
      %v3014 = vadd.f32 0.0, %v3013
      %v3015 = vpop.f32.mrb[0].mxu0
      %3016 = vmatprep.mubr.f32.mxu0 0.0
      %3017 = vmatmul.mubr.f32.gmra.mrb[0].mxu0 %v2716
      %v3018 = vpop.f32.mrb[0].mxu0
      %v3019 = vadd.f32 0.0, %v3018
      %v3020 = vpop.f32.mrb[0].mxu0
      %3021 = vmatprep.mubr.f32.mxu0 0.0
      %3022 = vmatmul.mubr.f32.gmra.mrb[0].mxu0 %v2717
      %v3023 = vpop.f32.mrb[0].mxu0
      %v3024 = vadd.f32 0.0, %v3023
      %v3025 = vpop.f32.mrb[0].mxu0
      %3026 = vmatprep.mubr.f32.mxu0 0.0
      %3027 = vmatmul.mubr.f32.gmra.mrb[0].mxu0 %v2718
      %v3028 = vpop.f32.mrb[0].mxu0
      %v3029 = vadd.f32 0.0, %v3028
      %v3030 = vpop.f32.mrb[0].mxu0
      %3031 = vmatprep.mubr.f32.mxu0 0.0
      %3032 = vmatmul.mubr.f32.gmra.mrb[0].mxu0 %v2719
      %v3033 = vpop.f32.mrb[0].mxu0
      %v3034 = vadd.f32 0.0, %v3033
      %v3035 = vpop.f32.mrb[0].mxu0
      %3036 = vmatprep.mubr.f32.mxu0 0.0
      %3037 = vmatmul.mubr.f32.gmra.mrb[0].mxu0 %v2720
      %v3038 = vpop.f32.mrb[0].mxu0
      %v3039 = vadd.f32 0.0, %v3038
      %v3040 = vpop.f32.mrb[0].mxu0
      %3041 = vmatprep.mubr.f32.mxu0 0.0
      %3042 = vmatmul.mubr.f32.gmra.mrb[0].mxu0 %v2721
      %v3043 = vpop.f32.mrb[0].mxu0
      %v3044 = vadd.f32 0.0, %v3043
      %v3045 = vpop.f32.mrb[0].mxu0
      %3046 = vmatprep.mubr.f32.mxu0 0.0
      %3047 = vmatmul.mubr.f32.gmra.mrb[0].mxu0 %v2722
      %v3048 = vpop.f32.mrb[0].mxu0
      %v3049 = vadd.f32 0.0, %v3048
      %v3050 = vpop.f32.mrb[0].mxu0
      %3051 = vmatprep.mubr.f32.mxu0 0.0
      %3052 = vmatmul.mubr.f32.gmra.mrb[0].mxu0 %v2723
      %v3053 = vpop.f32.mrb[0].mxu0
      %v3054 = vadd.f32 0.0, %v3053
      %v3055 = vpop.f32.mrb[0].mxu0
      %3056 = vmatprep.mubr.f32.mxu0 0.0
      %3057 = vmatmul.mubr.f32.gmra.mrb[0].mxu0 %v2724
      %v3058 = vpop.f32.mrb[0].mxu0
      %v3059 = vadd.f32 0.0, %v3058
      %v3060 = vpop.f32.mrb[0].mxu0
      %3061 = vmatprep.mubr.f32.mxu0 0.0
      %3062 = vmatmul.mubr.f32.gmra.mrb[0].mxu0 %v2725
      %v3063 = vpop.f32.mrb[0].mxu0
      %v3064 = vadd.f32 0.0, %v3063
      %v3065 = vpop.f32.mrb[0].mxu0
      %3066 = vmatprep.mubr.f32.mxu0 0.0
      %3067 = vmatmul.mubr.f32.gmra.mrb[0].mxu0 %v2726
      %v3068 = vpop.f32.mrb[0].mxu0
      %v3069 = vadd.f32 0.0, %v3068
      %v3070 = vpop.f32.mrb[0].mxu0
      %3071 = vmatprep.mubr.f32.mxu0 0.0
      %3072 = vmatmul.mubr.f32.gmra.mrb[0].mxu0 %v2727
      %v3073 = vpop.f32.mrb[0].mxu0
      %v3074 = vadd.f32 0.0, %v3073
      %v3075 = vpop.f32.mrb[0].mxu0
      %3076 = vmatprep.mubr.f32.mxu0 0.0
      %3077 = vmatmul.mubr.f32.gmra.mrb[0].mxu0 %v2728
      %v3078 = vpop.f32.mrb[0].mxu0
      %v3079 = vadd.f32 0.0, %v3078
      %v3080 = vpop.f32.mrb[0].mxu0
      %3081 = vmatprep.mubr.f32.mxu0 0.0
      %3082 = vmatmul.mubr.f32.gmra.mrb[0].mxu0 %v2729
      %v3083 = vpop.f32.mrb[0].mxu0
      %v3084 = vadd.f32 0.0, %v3083
      %v3085 = vpop.f32.mrb[0].mxu0
      %3086 = vmatprep.mubr.f32.mxu0 0.0
      %3087 = vmatmul.mubr.f32.gmra.mrb[0].mxu0 %v2730
      %v3088 = vpop.f32.mrb[0].mxu0
      %v3089 = vadd.f32 0.0, %v3088
      %v3090 = vpop.f32.mrb[0].mxu0
      %3091 = vmatprep.mubr.f32.mxu0 0.0
      %3092 = vmatmul.mubr.f32.gmra.mrb[0].mxu0 %v2731
      %v3093 = vpop.f32.mrb[0].mxu0
      %v3094 = vadd.f32 0.0, %v3093
      %v3095 = vpop.f32.mrb[0].mxu0
      %3096 = vmatprep.mubr.f32.mxu0 0.0
      %3097 = vmatmul.mubr.f32.gmra.mrb[0].mxu0 %v2732
      %v3098 = vpop.f32.mrb[0].mxu0
      %v3099 = vadd.f32 0.0, %v3098
      %v3100 = vpop.f32.mrb[0].mxu0
      %3101 = vmatprep.mubr.f32.mxu0 0.0
      %3102 = vmatmul.mubr.f32.gmra.mrb[0].mxu0 %v2733
      %v3103 = vpop.f32.mrb[0].mxu0
      %v3104 = vadd.f32 0.0, %v3103
      %v3105 = vpop.f32.mrb[0].mxu0
      %3106 = vmatprep.mubr.f32.mxu0 0.0
      %3107 = vmatmul.mubr.f32.gmra.mrb[0].mxu0 %v2734
      %v3108 = vpop.f32.mrb[0].mxu0
      %v3109 = vadd.f32 0.0, %v3108
      %v3110 = vpop.f32.mrb[0].mxu0
      %3111 = vmatprep.mubr.f32.mxu0 0.0
      %3112 = vmatmul.mubr.f32.gmra.mrb[0].mxu0 %v2735
      %v3113 = vpop.f32.mrb[0].mxu0
      %v3114 = vadd.f32 0.0, %v3113
      %v3115 = vpop.f32.mrb[0].mxu0
      %3116 = vmatprep.mubr.f32.mxu0 0.0
      %3117 = vmatmul.mubr.f32.gmra.mrb[0].mxu0 %v2736
      %v3118 = vpop.f32.mrb[0].mxu0
      %v3119 = vadd.f32 0.0, %v3118
      %v3120 = vpop.f32.mrb[0].mxu0
      %3121 = vmatprep.mubr.f32.mxu0 0.0
      %3122 = vmatmul.mubr.f32.gmra.mrb[0].mxu0 %v2737
      %v3123 = vpop.f32.mrb[0].mxu0
      %v3124 = vadd.f32 0.0, %v3123
      %v3125 = vpop.f32.mrb[0].mxu0
      %3126 = vmatprep.mubr.f32.mxu0 0.0
      %3127 = vmatmul.mubr.f32.gmra.mrb[0].mxu0 %v2738
      %v3128 = vpop.f32.mrb[0].mxu0
      %v3129 = vadd.f32 0.0, %v3128
      %v3130 = vpop.f32.mrb[0].mxu0
      %3131 = vmatprep.mubr.f32.mxu0 0.0
      %3132 = vmatmul.mubr.f32.gmra.mrb[0].mxu0 %v2739
      %v3133 = vpop.f32.mrb[0].mxu0
      %v3134 = vadd.f32 0.0, %v3133
      %v3135 = vpop.f32.mrb[0].mxu0
      %3136 = vmatprep.mubr.f32.mxu0 0.0
      %3137 = vmatmul.mubr.f32.gmra.mrb[0].mxu0 %v2740
      %v3138 = vpop.f32.mrb[0].mxu0
      %v3139 = vadd.f32 0.0, %v3138
      %v3140 = vpop.f32.mrb[0].mxu0
      %3141 = vmatprep.mubr.f32.mxu0 0.0
      %3142 = vmatmul.mubr.f32.gmra.mrb[0].mxu0 %v2741
      %v3143 = vpop.f32.mrb[0].mxu0
      %v3144 = vadd.f32 0.0, %v3143
      %v3145 = vpop.f32.mrb[0].mxu0
      %3146 = vmatprep.mubr.f32.mxu0 0.0
      %3147 = vmatmul.mubr.f32.gmra.mrb[0].mxu0 %v2742
      %v3148 = vpop.f32.mrb[0].mxu0
      %v3149 = vadd.f32 0.0, %v3148
      %v3150 = vpop.f32.mrb[0].mxu0
      %3151 = vmatprep.mubr.f32.mxu0 0.0
      %3152 = vmatmul.mubr.f32.gmra.mrb[0].mxu0 %v2743
      %v3153 = vpop.f32.mrb[0].mxu0
      %v3154 = vadd.f32 0.0, %v3153
      %v3155 = vpop.f32.mrb[0].mxu0
      %3156 = vmatprep.mubr.f32.mxu0 0.0
      %3157 = vmatmul.mubr.f32.gmra.mrb[0].mxu0 %v2744
      %v3158 = vpop.f32.mrb[0].mxu0
      %v3159 = vadd.f32 0.0, %v3158
      %v3160 = vpop.f32.mrb[0].mxu0
      %3161 = vmatprep.mubr.f32.mxu0 0.0
      %3162 = vmatmul.mubr.f32.gmra.mrb[0].mxu0 %v2745
      %v3163 = vpop.f32.mrb[0].mxu0
      %v3164 = vadd.f32 0.0, %v3163
      %v3165 = vpop.f32.mrb[0].mxu0
      %3166 = vmatprep.mubr.f32.mxu0 0.0
      %3167 = vmatmul.mubr.f32.gmra.mrb[0].mxu0 %v2746
      %v3168 = vpop.f32.mrb[0].mxu0
      %v3169 = vadd.f32 0.0, %v3168
      %v3170 = vpop.f32.mrb[0].mxu0
      %3171 = vmatprep.mubr.f32.mxu0 0.0
      %3172 = vmatmul.mubr.f32.gmra.mrb[0].mxu0 %v2747
      %v3173 = vpop.f32.mrb[0].mxu0
      %v3174 = vadd.f32 0.0, %v3173
      %v3175 = vpop.f32.mrb[0].mxu0
      %3176 = vmatprep.mubr.f32.mxu0 0.0
      %3177 = vmatmul.mubr.f32.gmra.mrb[0].mxu0 %v2748
      %v3178 = vpop.f32.mrb[0].mxu0
      %v3179 = vadd.f32 0.0, %v3178
      %v3180 = vpop.f32.mrb[0].mxu0
      %3181 = vmatprep.mubr.f32.mxu0 0.0
      %3182 = vmatmul.mubr.f32.gmra.mrb[0].mxu0 %v2749
      %v3183 = vpop.f32.mrb[0].mxu0
      %v3184 = vadd.f32 0.0, %v3183
      %v3185 = vpop.f32.mrb[0].mxu0
      %3186 = vmatprep.mubr.f32.mxu0 0.0
      %3187 = vmatmul.mubr.f32.gmra.mrb[0].mxu0 %v2750
      %v3188 = vpop.f32.mrb[0].mxu0
      %v3189 = vadd.f32 0.0, %v3188
      %v3190 = vpop.f32.mrb[0].mxu0
      %3191 = vmatprep.mubr.f32.mxu0 0.0
      %3192 = vmatmul.mubr.f32.gmra.mrb[0].mxu0 %v2751
      %v3193 = vpop.f32.mrb[0].mxu0
      %v3194 = vadd.f32 0.0, %v3193
      %v3195 = vpop.f32.mrb[0].mxu0
      %3196 = vmatprep.mubr.f32.mxu0 0.0
      %3197 = vmatmul.mubr.f32.gmra.mrb[0].mxu0 %v2752
      %v3198 = vpop.f32.mrb[0].mxu0
      %v3199 = vadd.f32 0.0, %v3198
      %v3200 = vpop.f32.mrb[0].mxu0
      %3201 = vmatprep.mubr.f32.mxu0 0.0
      %3202 = vmatmul.mubr.f32.gmra.mrb[0].mxu0 %v2753
      %v3203 = vpop.f32.mrb[0].mxu0
      %v3204 = vadd.f32 0.0, %v3203
      %v3205 = vpop.f32.mrb[0].mxu0
      %3206 = vmatprep.mubr.f32.mxu0 0.0
      %3207 = vmatmul.mubr.f32.gmra.mrb[0].mxu0 %v2754
      %v3208 = vpop.f32.mrb[0].mxu0
      %v3209 = vadd.f32 0.0, %v3208
      %v3210 = vpop.f32.mrb[0].mxu0
      %3211 = vmatprep.mubr.f32.mxu0 0.0
      %3212 = vmatmul.mubr.f32.gmra.mrb[0].mxu0 %v2755
      %v3213 = vpop.f32.mrb[0].mxu0
      %v3214 = vadd.f32 0.0, %v3213
      %v3215 = vpop.f32.mrb[0].mxu0
      %3216 = vmatprep.mubr.f32.mxu0 0.0
      %3217 = vmatmul.mubr.f32.gmra.mrb[0].mxu0 %v2756
      %v3218 = vpop.f32.mrb[0].mxu0
      %v3219 = vadd.f32 0.0, %v3218
      %v3220 = vpop.f32.mrb[0].mxu0
      %3221 = vmatprep.mubr.f32.mxu0 0.0
      %3222 = vmatmul.mubr.f32.gmra.mrb[0].mxu0 %v2757
      %v3223 = vpop.f32.mrb[0].mxu0
      %v3224 = vadd.f32 0.0, %v3223
      %v3225 = vpop.f32.mrb[0].mxu0
      %3226 = vmatprep.mubr.f32.mxu0 0.0
      %3227 = vmatmul.mubr.f32.gmra.mrb[0].mxu0 %v2758
      %v3228 = vpop.f32.mrb[0].mxu0
      %v3229 = vadd.f32 0.0, %v3228
      %v3230 = vpop.f32.mrb[0].mxu0
      %3231 = vmatprep.mubr.f32.mxu0 0.0
      %3232 = vmatmul.mubr.f32.gmra.mrb[0].mxu0 %v2759
      %v3233 = vpop.f32.mrb[0].mxu0
      %v3234 = vadd.f32 0.0, %v3233
      %v3235 = vpop.f32.mrb[0].mxu0
      %3236 = vmatprep.mubr.f32.mxu0 0.0
      %3237 = vmatmul.mubr.f32.gmra.mrb[0].mxu0 %v2760
      %v3238 = vpop.f32.mrb[0].mxu0
      %v3239 = vadd.f32 0.0, %v3238
      %v3240 = vpop.f32.mrb[0].mxu0
      %3241 = vmatprep.mubr.f32.mxu0 0.0
      %3242 = vmatmul.mubr.f32.gmra.mrb[0].mxu0 %v2761
      %v3243 = vpop.f32.mrb[0].mxu0
      %v3244 = vadd.f32 0.0, %v3243
      %v3245 = vpop.f32.mrb[0].mxu0
      %3246 = vmatprep.mubr.f32.mxu0 0.0
      %3247 = vmatmul.mubr.f32.gmra.mrb[0].mxu0 %v2762
      %v3248 = vpop.f32.mrb[0].mxu0
      %v3249 = vadd.f32 0.0, %v3248
      %v3250 = vpop.f32.mrb[0].mxu0
      %3251 = vmatprep.mubr.f32.mxu0 0.0
      %3252 = vmatmul.mubr.f32.gmra.mrb[0].mxu0 %v2763
      %v3253 = vpop.f32.mrb[0].mxu0
      %v3254 = vadd.f32 0.0, %v3253
      %v3255 = vpop.f32.mrb[0].mxu0
      %3256 = vmatprep.mubr.f32.mxu0 0.0
      %3257 = vmatmul.mubr.f32.gmra.mrb[0].mxu0 %v2764
      %v3258 = vpop.f32.mrb[0].mxu0
      %v3259 = vadd.f32 0.0, %v3258
      %v3260 = vpop.f32.mrb[0].mxu0
      %3261 = vmatprep.mubr.f32.mxu0 0.0
      %3262 = vmatmul.mubr.f32.gmra.mrb[0].mxu0 %v2765
      %v3263 = vpop.f32.mrb[0].mxu0
      %v3264 = vadd.f32 0.0, %v3263
      %v3265 = vpop.f32.mrb[0].mxu0
      %3266 = vmatprep.mubr.f32.mxu0 0.0
      %3267 = vmatmul.mubr.f32.gmra.mrb[0].mxu0 %v2766
      %v3268 = vpop.f32.mrb[0].mxu0
      %v3269 = vadd.f32 0.0, %v3268
      %v3270 = vpop.f32.mrb[0].mxu0
      %3271 = vmatprep.mubr.f32.mxu0 0.0
      %3272 = vmatmul.mubr.f32.gmra.mrb[0].mxu0 %v2767
      %v3273 = vpop.f32.mrb[0].mxu0
      %v3274 = vadd.f32 0.0, %v3273
      %v3275 = vpop.f32.mrb[0].mxu0
      %3276 = vmatprep.mubr.f32.mxu0 0.0
      %3277 = vmatmul.mubr.f32.gmra.mrb[0].mxu0 %v2768
      %v3278 = vpop.f32.mrb[0].mxu0
      %v3279 = vadd.f32 0.0, %v3278
      %v3280 = vpop.f32.mrb[0].mxu0
      %3281 = vmatprep.mubr.f32.mxu0 0.0
      %3282 = vmatmul.mubr.f32.gmra.mrb[0].mxu0 %v2769
      %v3283 = vpop.f32.mrb[0].mxu0
      %v3284 = vadd.f32 0.0, %v3283
      %v3285 = vpop.f32.mrb[0].mxu0
      %3286 = vmatprep.mubr.f32.mxu0 0.0
      %3287 = vmatmul.mubr.f32.gmra.mrb[0].mxu0 %v2770
      %v3288 = vpop.f32.mrb[0].mxu0
      %v3289 = vadd.f32 0.0, %v3288
      %v3290 = vpop.f32.mrb[0].mxu0
      %3291 = vmatprep.mubr.f32.mxu0 0.0
      %3292 = vmatmul.mubr.f32.gmra.mrb[0].mxu0 %v2771
      %v3293 = vpop.f32.mrb[0].mxu0
      %v3294 = vadd.f32 0.0, %v3293
      %v3295 = vpop.f32.mrb[0].mxu0
      %3296 = vmatprep.mubr.f32.mxu0 0.0
      %3297 = vmatmul.mubr.f32.gmra.mrb[0].mxu0 %v2772
      %v3298 = vpop.f32.mrb[0].mxu0
      %v3299 = vadd.f32 0.0, %v3298
      %v3300 = vpop.f32.mrb[0].mxu0
      %3301 = vmatprep.mubr.f32.mxu0 0.0
      %3302 = vmatmul.mubr.f32.gmra.mrb[0].mxu0 %v2773
      %v3303 = vpop.f32.mrb[0].mxu0
      %v3304 = vadd.f32 0.0, %v3303
      %v3305 = vpop.f32.mrb[0].mxu0
      %3306 = vmatprep.mubr.f32.mxu0 0.0
      %3307 = vmatmul.mubr.f32.gmra.mrb[0].mxu0 %v2774
      %v3308 = vpop.f32.mrb[0].mxu0
      %v3309 = vadd.f32 0.0, %v3308
      %v3310 = vpop.f32.mrb[0].mxu0
      %3311 = vmatprep.mubr.f32.mxu0 0.0
      %3312 = vmatmul.mubr.f32.gmra.mrb[0].mxu0 %v2775
      %v3313 = vpop.f32.mrb[0].mxu0
      %v3314 = vadd.f32 0.0, %v3313
      %v3315 = vpop.f32.mrb[0].mxu0
      %3316 = vmatprep.mubr.f32.mxu0 0.0
      %3317 = vmatmul.mubr.f32.gmra.mrb[0].mxu0 %v2776
      %v3318 = vpop.f32.mrb[0].mxu0
      %v3319 = vadd.f32 0.0, %v3318
      %v3320 = vpop.f32.mrb[0].mxu0
      %3321 = vmatprep.mubr.f32.mxu0 0.0
      %3322 = vmatmul.mubr.f32.gmra.mrb[0].mxu0 %v2777
      %v3323 = vpop.f32.mrb[0].mxu0
      %v3324 = vadd.f32 0.0, %v3323
      %v3325 = vpop.f32.mrb[0].mxu0
      %3326 = vmatprep.mubr.f32.mxu0 0.0
      %3327 = vmatmul.mubr.f32.gmra.mrb[0].mxu0 %v2778
      %v3328 = vpop.f32.mrb[0].mxu0
      %v3329 = vadd.f32 0.0, %v3328
      %v3330 = vpop.f32.mrb[0].mxu0
      %3331 = vmatprep.mubr.f32.mxu0 0.0
      %3332 = vmatmul.mubr.f32.gmra.mrb[0].mxu0 %v2779
      %v3333 = vpop.f32.mrb[0].mxu0
      %v3334 = vadd.f32 0.0, %v3333
      %v3335 = vpop.f32.mrb[0].mxu0
      %3336 = vmatprep.mubr.f32.mxu0 0.0
      %3337 = vmatmul.mubr.f32.gmra.mrb[0].mxu0 %v2780
      %v3338 = vpop.f32.mrb[0].mxu0
      %v3339 = vadd.f32 0.0, %v3338
      %v3340 = vpop.f32.mrb[0].mxu0
      %3341 = vmatprep.mubr.f32.mxu0 0.0
      %3342 = vmatmul.mubr.f32.gmra.mrb[0].mxu0 %v2781
      %v3343 = vpop.f32.mrb[0].mxu0
      %v3344 = vadd.f32 0.0, %v3343
      %v3345 = vpop.f32.mrb[0].mxu0
      %3346 = vmatprep.mubr.f32.mxu0 0.0
      %3347 = vmatmul.mubr.f32.gmra.mrb[0].mxu0 %v2782
      %v3348 = vpop.f32.mrb[0].mxu0
      %v3349 = vadd.f32 0.0, %v3348
      %v3350 = vpop.f32.mrb[0].mxu0
      %3351 = vmatprep.mubr.f32.mxu0 0.0
      %3352 = vmatmul.mubr.f32.gmra.mrb[0].mxu0 %v2783
      %v3353 = vpop.f32.mrb[0].mxu0
      %v3354 = vadd.f32 0.0, %v3353
      %v3355 = vpop.f32.mrb[0].mxu0
      %3356 = vmatprep.mubr.f32.mxu0 0.0
      %3357 = vmatmul.mubr.f32.gmra.mrb[0].mxu0 %v2784
      %v3358 = vpop.f32.mrb[0].mxu0
      %v3359 = vadd.f32 0.0, %v3358
      %v3360 = vpop.f32.mrb[0].mxu0
      %3361 = vmatprep.mubr.f32.mxu0 0.0
      %3362 = vmatmul.mubr.f32.gmra.mrb[0].mxu0 %v2785
      %v3363 = vpop.f32.mrb[0].mxu0
      %v3364 = vadd.f32 0.0, %v3363
      %v3365 = vpop.f32.mrb[0].mxu0
      %3366 = vmatprep.mubr.f32.mxu0 0.0
      %3367 = vmatmul.mubr.f32.gmra.mrb[0].mxu0 %v2786
      %v3368 = vpop.f32.mrb[0].mxu0
      %v3369 = vadd.f32 0.0, %v3368
      %v3370 = vpop.f32.mrb[0].mxu0
      %3371 = vmatprep.mubr.f32.mxu0 0.0
      %3372 = vmatmul.mubr.f32.gmra.mrb[0].mxu0 %v2787
      %v3373 = vpop.f32.mrb[0].mxu0
      %v3374 = vadd.f32 0.0, %v3373
      %v3375 = vpop.f32.mrb[0].mxu0
      %3376 = vmatprep.mubr.f32.mxu0 0.0
      %3377 = vmatmul.mubr.f32.gmra.mrb[0].mxu0 %v2788
      %v3378 = vpop.f32.mrb[0].mxu0
      %v3379 = vadd.f32 0.0, %v3378
      %v3380 = vpop.f32.mrb[0].mxu0
      %3381 = vmatprep.mubr.f32.mxu0 0.0
      %3382 = vmatmul.mubr.f32.gmra.mrb[0].mxu0 %v2789
      %v3383 = vpop.f32.mrb[0].mxu0
      %v3384 = vadd.f32 0.0, %v3383
      %v3385 = vpop.f32.mrb[0].mxu0
      %3386 = vmatprep.mubr.f32.mxu0 0.0
      %3387 = vmatmul.mubr.f32.gmra.mrb[0].mxu0 %v2790
      %v3388 = vpop.f32.mrb[0].mxu0
      %v3389 = vadd.f32 0.0, %v3388
      %v3390 = vpop.f32.mrb[0].mxu0
      %3391 = vmatprep.mubr.f32.mxu0 0.0
      %3392 = vmatmul.mubr.f32.gmra.mrb[0].mxu0 %v2791
      %v3393 = vpop.f32.mrb[0].mxu0
      %v3394 = vadd.f32 0.0, %v3393
      %v3395 = vpop.f32.mrb[0].mxu0
      %3396 = vmatprep.mubr.f32.mxu0 0.0
      %3397 = vmatmul.mubr.f32.gmra.mrb[0].mxu0 %v2792
      %v3398 = vpop.f32.mrb[0].mxu0
      %v3399 = vadd.f32 0.0, %v3398
      %v3400 = vpop.f32.mrb[0].mxu0
      %3401 = vmatprep.mubr.f32.mxu0 0.0
      %3402 = vmatmul.mubr.f32.gmra.mrb[0].mxu0 %v2793
      %v3403 = vpop.f32.mrb[0].mxu0
      %v3404 = vadd.f32 0.0, %v3403
      %v3405 = vpop.f32.mrb[0].mxu0
      %3406 = vmatprep.mubr.f32.mxu0 0.0
      %3407 = vmatmul.mubr.f32.gmra.mrb[0].mxu0 %v2794
      %v3408 = vpop.f32.mrb[0].mxu0
      %v3409 = vadd.f32 0.0, %v3408
      %v3410 = vpop.f32.mrb[0].mxu0
      %3411 = vmatprep.mubr.f32.mxu0 0.0
      %3412 = vmatmul.mubr.f32.gmra.mrb[0].mxu0 %v2795
      %v3413 = vpop.f32.mrb[0].mxu0
      %v3414 = vadd.f32 0.0, %v3413
      %v3415 = vpop.f32.mrb[0].mxu0
      %3416 = vmatprep.mubr.f32.mxu0 0.0
      %3417 = vmatmul.mubr.f32.gmra.mrb[0].mxu0 %v2796
      %v3418 = vpop.f32.mrb[0].mxu0
      %v3419 = vadd.f32 0.0, %v3418
      %v3420 = vpop.f32.mrb[0].mxu0
      %3421 = vmatprep.mubr.f32.mxu0 0.0
      %3422 = vmatmul.mubr.f32.gmra.mrb[0].mxu0 %v2797
      %v3423 = vpop.f32.mrb[0].mxu0
      %v3424 = vadd.f32 0.0, %v3423
      %v3425 = vpop.f32.mrb[0].mxu0
      %3426 = vmatprep.mubr.f32.mxu0 0.0
      %3427 = vmatmul.mubr.f32.gmra.mrb[0].mxu0 %v2798
      %v3428 = vpop.f32.mrb[0].mxu0
      %v3429 = vadd.f32 0.0, %v3428
      %v3430 = vpop.f32.mrb[0].mxu0
      %3431 = vmatprep.mubr.f32.mxu0 0.0
      %3432 = vmatmul.mubr.f32.gmra.mrb[0].mxu0 %v2799
      %v3433 = vpop.f32.mrb[0].mxu0
      %v3434 = vadd.f32 0.0, %v3433
      %v3435 = vpop.f32.mrb[0].mxu0
      %3436 = vmatprep.mubr.f32.mxu0 0.0
      %3437 = vmatmul.mubr.f32.gmra.mrb[0].mxu0 %v2800
      %v3438 = vpop.f32.mrb[0].mxu0
      %v3439 = vadd.f32 0.0, %v3438
      %v3440 = vpop.f32.mrb[0].mxu0
      %3441 = vmatprep.mubr.f32.mxu0 0.0
      %3442 = vmatmul.mubr.f32.gmra.mrb[0].mxu0 %v2801
      %v3443 = vpop.f32.mrb[0].mxu0
      %v3444 = vadd.f32 0.0, %v3443
      %v3445 = vpop.f32.mrb[0].mxu0
      %3446 = vmatprep.mubr.f32.mxu0 0.0
      %3447 = vmatmul.mubr.f32.gmra.mrb[0].mxu0 %v2802
      %v3448 = vpop.f32.mrb[0].mxu0
      %v3449 = vadd.f32 0.0, %v3448
      %v3450 = vpop.f32.mrb[0].mxu0
      %3451 = vmatprep.mubr.f32.mxu0 0.0
      %3452 = vmatmul.mubr.f32.gmra.mrb[0].mxu0 %v2803
      %v3453 = vpop.f32.mrb[0].mxu0
      %v3454 = vadd.f32 0.0, %v3453
      %v3455 = vpop.f32.mrb[0].mxu0
      %3456 = vmatprep.mubr.f32.mxu0 0.0
      %3457 = vmatmul.mubr.f32.gmra.mrb[0].mxu0 %v2804
      %v3458 = vpop.f32.mrb[0].mxu0
      %v3459 = vadd.f32 0.0, %v3458
      %v3460 = vpop.f32.mrb[0].mxu0
      %3461 = vmatprep.mubr.f32.mxu0 0.0
      %3462 = vmatmul.mubr.f32.gmra.mrb[0].mxu0 %v2805
      %v3463 = vpop.f32.mrb[0].mxu0
      %v3464 = vadd.f32 0.0, %v3463
      %v3465 = vpop.f32.mrb[0].mxu0
      %3466 = vmatprep.mubr.f32.mxu0 0.0
      %3467 = vmatmul.mubr.f32.gmra.mrb[0].mxu0 %v2806
      %v3468 = vpop.f32.mrb[0].mxu0
      %v3469 = vadd.f32 0.0, %v3468
      %v3470 = vpop.f32.mrb[0].mxu0
      %3471 = vmatprep.mubr.f32.mxu0 0.0
      %3472 = vmatmul.mubr.f32.gmra.mrb[0].mxu0 %v2807
      %v3473 = vpop.f32.mrb[0].mxu0
      %v3474 = vadd.f32 0.0, %v3473
      %v3475 = vpop.f32.mrb[0].mxu0
      %3476 = vmatprep.mubr.f32.mxu0 0.0
      %3477 = vmatmul.mubr.f32.gmra.mrb[0].mxu0 %v2808
      %v3478 = vpop.f32.mrb[0].mxu0
      %v3479 = vadd.f32 0.0, %v3478
      %v3480 = vpop.f32.mrb[0].mxu0
      %3481 = vmatprep.mubr.f32.mxu0 0.0
      %3482 = vmatmul.mubr.f32.gmra.mrb[0].mxu0 %v2809
      %v3483 = vpop.f32.mrb[0].mxu0
      %v3484 = vadd.f32 0.0, %v3483
      %v3485 = vpop.f32.mrb[0].mxu0
      %3486 = vmatprep.mubr.f32.mxu0 0.0
      %3487 = vmatmul.mubr.f32.gmra.mrb[0].mxu0 %v2810
      %v3488 = vpop.f32.mrb[0].mxu0
      %v3489 = vadd.f32 0.0, %v3488
      %v3490 = vpop.f32.mrb[0].mxu0
      %3491 = vmatprep.mubr.f32.mxu0 0.0
      %3492 = vmatmul.mubr.f32.gmra.mrb[0].mxu0 %v2811
      %v3493 = vpop.f32.mrb[0].mxu0
      %v3494 = vadd.f32 0.0, %v3493
      %v3495 = vpop.f32.mrb[0].mxu0
      %3496 = vmatprep.mubr.f32.mxu0 0.0
      %3497 = vmatmul.mubr.f32.gmra.mrb[0].mxu0 %v2812
      %v3498 = vpop.f32.mrb[0].mxu0
      %v3499 = vadd.f32 0.0, %v3498
      %v3500 = vpop.f32.mrb[0].mxu0
      %3501 = vmatprep.mubr.f32.mxu0 0.0
      %3502 = vmatmul.mubr.f32.gmra.mrb[0].mxu0 %v2813
      %v3503 = vpop.f32.mrb[0].mxu0
      %v3504 = vadd.f32 0.0, %v3503
      %v3505 = vpop.f32.mrb[0].mxu0
      %3506 = vmatprep.mubr.f32.mxu0 0.0
      %3507 = vmatmul.mubr.f32.gmra.mrb[0].mxu0 %v2814
      %v3508 = vpop.f32.mrb[0].mxu0
      %v3509 = vadd.f32 0.0, %v3508
      %v3510 = vpop.f32.mrb[0].mxu0
      %3511 = vmatprep.mubr.f32.mxu0 0.0
      %3512 = vmatmul.mubr.f32.gmra.mrb[0].mxu0 %v2815
      %v3513 = vpop.f32.mrb[0].mxu0
      %v3514 = vadd.f32 0.0, %v3513
      %v3515 = vpop.f32.mrb[0].mxu0
      %3516 = vmatprep.mubr.f32.mxu0 0.0
      %3517 = vmatmul.mubr.f32.gmra.mrb[0].mxu0 %v2816
      %v3518 = vpop.f32.mrb[0].mxu0
      %v3519 = vadd.f32 0.0, %v3518
      %v3520 = vpop.f32.mrb[0].mxu0
      %3521 = vmatprep.mubr.f32.mxu0 0.0
      %3522 = vmatmul.mubr.f32.gmra.mrb[0].mxu0 %v2817
      %v3523 = vpop.f32.mrb[0].mxu0
      %v3524 = vadd.f32 0.0, %v3523
      %v3525 = vpop.f32.mrb[0].mxu0
      %3526 = vmatprep.mubr.f32.mxu0 0.0
      %3527 = vmatmul.mubr.f32.gmra.mrb[0].mxu0 %v2818
      %v3528 = vpop.f32.mrb[0].mxu0
      %v3529 = vadd.f32 0.0, %v3528
      %v3530 = vpop.f32.mrb[0].mxu0
      %3531 = vmatprep.mubr.f32.mxu0 0.0
      %3532 = vmatmul.mubr.f32.gmra.mrb[0].mxu0 %v2819
      %v3533 = vpop.f32.mrb[0].mxu0
      %v3534 = vadd.f32 0.0, %v3533
      %v3535 = vpop.f32.mrb[0].mxu0
      %3536 = vmatprep.mubr.f32.mxu0 0.0
      %3537 = vmatmul.mubr.f32.gmra.mrb[0].mxu0 %v2820
      %v3538 = vpop.f32.mrb[0].mxu0
      %v3539 = vadd.f32 0.0, %v3538
      %v3540 = vpop.f32.mrb[0].mxu0
      %3541 = vdwg.mxu0
      %vm3542 = vcmask 261120
      %3543 = vst.msk [vmem:[%s248] sm:$0xff] %vm3542, %v2904
      %3544 = vst.msk [vmem:[%s248 + $0x8] sm:$0xff] %vm3542, %v2909
      %3545 = vst.msk [vmem:[%s248 + $0x10] sm:$0xff] %vm3542, %v2914
      %3546 = vst.msk [vmem:[%s248 + $0x18] sm:$0xff] %vm3542, %v2919
      %3547 = vst.msk [vmem:[%s248 + $0x20] sm:$0xff] %vm3542, %v2924
      %3548 = vst.msk [vmem:[%s248 + $0x28] sm:$0xff] %vm3542, %v2929
      %3549 = vst.msk [vmem:[%s248 + $0x30] sm:$0xff] %vm3542, %v2934
      %3550 = vst.msk [vmem:[%s248 + $0x38] sm:$0xff] %vm3542, %v2939
      %3551 = vst.msk [vmem:[%s248 + $0x40] sm:$0xff] %vm3542, %v2944
      %3552 = vst.msk [vmem:[%s248 + $0x48] sm:$0xff] %vm3542, %v2949
      %3553 = vst.msk [vmem:[%s248 + $0x50] sm:$0xff] %vm3542, %v2954
      %3554 = vst.msk [vmem:[%s248 + $0x58] sm:$0xff] %vm3542, %v2959
      %3555 = vst.msk [vmem:[%s248 + $0x60] sm:$0xff] %vm3542, %v2964
      %3556 = vst.msk [vmem:[%s248 + $0x68] sm:$0xff] %vm3542, %v2969
      %3557 = vst.msk [vmem:[%s248 + $0x70] sm:$0xff] %vm3542, %v2974
      %3558 = vst.msk [vmem:[%s248 + $0x78] sm:$0xff] %vm3542, %v2979
      %3559 = vst.msk [vmem:[%s248 + $0x80] sm:$0xff] %vm3542, %v2984
      %3560 = vst.msk [vmem:[%s248 + $0x88] sm:$0xff] %vm3542, %v2989
      %3561 = vst.msk [vmem:[%s248 + $0x90] sm:$0xff] %vm3542, %v2994
      %3562 = vst.msk [vmem:[%s248 + $0x98] sm:$0xff] %vm3542, %v2999
      %3563 = vst.msk [vmem:[%s248 + $0xa0] sm:$0xff] %vm3542, %v3004
      %3564 = vst.msk [vmem:[%s248 + $0xa8] sm:$0xff] %vm3542, %v3009
      %3565 = vst.msk [vmem:[%s248 + $0xb0] sm:$0xff] %vm3542, %v3014
      %3566 = vst.msk [vmem:[%s248 + $0xb8] sm:$0xff] %vm3542, %v3019
      %3567 = vst.msk [vmem:[%s248 + $0xc0] sm:$0xff] %vm3542, %v3024
      %3568 = vst.msk [vmem:[%s248 + $0xc8] sm:$0xff] %vm3542, %v3029
      %3569 = vst.msk [vmem:[%s248 + $0xd0] sm:$0xff] %vm3542, %v3034
      %3570 = vst.msk [vmem:[%s248 + $0xd8] sm:$0xff] %vm3542, %v3039
      %3571 = vst.msk [vmem:[%s248 + $0xe0] sm:$0xff] %vm3542, %v3044
      %3572 = vst.msk [vmem:[%s248 + $0xe8] sm:$0xff] %vm3542, %v3049
      %3573 = vst.msk [vmem:[%s248 + $0xf0] sm:$0xff] %vm3542, %v3054
      %3574 = vst.msk [vmem:[%s248 + $0xf8] sm:$0xff] %vm3542, %v3059
      %3575 = vst.msk [vmem:[%s248 + $0x100] sm:$0xff] %vm3542, %v3064
      %3576 = vst.msk [vmem:[%s248 + $0x108] sm:$0xff] %vm3542, %v3069
      %3577 = vst.msk [vmem:[%s248 + $0x110] sm:$0xff] %vm3542, %v3074
      %3578 = vst.msk [vmem:[%s248 + $0x118] sm:$0xff] %vm3542, %v3079
      %3579 = vst.msk [vmem:[%s248 + $0x120] sm:$0xff] %vm3542, %v3084
      %3580 = vst.msk [vmem:[%s248 + $0x128] sm:$0xff] %vm3542, %v3089
      %3581 = vst.msk [vmem:[%s248 + $0x130] sm:$0xff] %vm3542, %v3094
      %3582 = vst.msk [vmem:[%s248 + $0x138] sm:$0xff] %vm3542, %v3099
      %3583 = vst.msk [vmem:[%s248 + $0x140] sm:$0xff] %vm3542, %v3104
      %3584 = vst.msk [vmem:[%s248 + $0x148] sm:$0xff] %vm3542, %v3109
      %3585 = vst.msk [vmem:[%s248 + $0x150] sm:$0xff] %vm3542, %v3114
      %3586 = vst.msk [vmem:[%s248 + $0x158] sm:$0xff] %vm3542, %v3119
      %3587 = vst.msk [vmem:[%s248 + $0x160] sm:$0xff] %vm3542, %v3124
      %3588 = vst.msk [vmem:[%s248 + $0x168] sm:$0xff] %vm3542, %v3129
      %3589 = vst.msk [vmem:[%s248 + $0x170] sm:$0xff] %vm3542, %v3134
      %3590 = vst.msk [vmem:[%s248 + $0x178] sm:$0xff] %vm3542, %v3139
      %3591 = vst.msk [vmem:[%s248 + $0x180] sm:$0xff] %vm3542, %v3144
      %3592 = vst.msk [vmem:[%s248 + $0x188] sm:$0xff] %vm3542, %v3149
      %3593 = vst.msk [vmem:[%s248 + $0x190] sm:$0xff] %vm3542, %v3154
      %3594 = vst.msk [vmem:[%s248 + $0x198] sm:$0xff] %vm3542, %v3159
      %3595 = vst.msk [vmem:[%s248 + $0x1a0] sm:$0xff] %vm3542, %v3164
      %3596 = vst.msk [vmem:[%s248 + $0x1a8] sm:$0xff] %vm3542, %v3169
      %3597 = vst.msk [vmem:[%s248 + $0x1b0] sm:$0xff] %vm3542, %v3174
      %3598 = vst.msk [vmem:[%s248 + $0x1b8] sm:$0xff] %vm3542, %v3179
      %3599 = vst.msk [vmem:[%s248 + $0x1c0] sm:$0xff] %vm3542, %v3184
      %3600 = vst.msk [vmem:[%s248 + $0x1c8] sm:$0xff] %vm3542, %v3189
      %3601 = vst.msk [vmem:[%s248 + $0x1d0] sm:$0xff] %vm3542, %v3194
      %3602 = vst.msk [vmem:[%s248 + $0x1d8] sm:$0xff] %vm3542, %v3199
      %3603 = vst.msk [vmem:[%s248 + $0x1e0] sm:$0xff] %vm3542, %v3204
      %3604 = vst.msk [vmem:[%s248 + $0x1e8] sm:$0xff] %vm3542, %v3209
      %3605 = vst.msk [vmem:[%s248 + $0x1f0] sm:$0xff] %vm3542, %v3214
      %3606 = vst.msk [vmem:[%s248 + $0x1f8] sm:$0xff] %vm3542, %v3219
      %3607 = vst.msk [vmem:[%s248 + $0x200] sm:$0xff] %vm3542, %v3224
      %3608 = vst.msk [vmem:[%s248 + $0x208] sm:$0xff] %vm3542, %v3229
      %3609 = vst.msk [vmem:[%s248 + $0x210] sm:$0xff] %vm3542, %v3234
      %3610 = vst.msk [vmem:[%s248 + $0x218] sm:$0xff] %vm3542, %v3239
      %3611 = vst.msk [vmem:[%s248 + $0x220] sm:$0xff] %vm3542, %v3244
      %3612 = vst.msk [vmem:[%s248 + $0x228] sm:$0xff] %vm3542, %v3249
      %3613 = vst.msk [vmem:[%s248 + $0x230] sm:$0xff] %vm3542, %v3254
      %3614 = vst.msk [vmem:[%s248 + $0x238] sm:$0xff] %vm3542, %v3259
      %3615 = vst.msk [vmem:[%s248 + $0x240] sm:$0xff] %vm3542, %v3264
      %3616 = vst.msk [vmem:[%s248 + $0x248] sm:$0xff] %vm3542, %v3269
      %3617 = vst.msk [vmem:[%s248 + $0x250] sm:$0xff] %vm3542, %v3274
      %3618 = vst.msk [vmem:[%s248 + $0x258] sm:$0xff] %vm3542, %v3279
      %3619 = vst.msk [vmem:[%s248 + $0x260] sm:$0xff] %vm3542, %v3284
      %3620 = vst.msk [vmem:[%s248 + $0x268] sm:$0xff] %vm3542, %v3289
      %3621 = vst.msk [vmem:[%s248 + $0x270] sm:$0xff] %vm3542, %v3294
      %3622 = vst.msk [vmem:[%s248 + $0x278] sm:$0xff] %vm3542, %v3299
      %3623 = vst.msk [vmem:[%s248 + $0x280] sm:$0xff] %vm3542, %v3304
      %3624 = vst.msk [vmem:[%s248 + $0x288] sm:$0xff] %vm3542, %v3309
      %3625 = vst.msk [vmem:[%s248 + $0x290] sm:$0xff] %vm3542, %v3314
      %3626 = vst.msk [vmem:[%s248 + $0x298] sm:$0xff] %vm3542, %v3319
      %3627 = vst.msk [vmem:[%s248 + $0x2a0] sm:$0xff] %vm3542, %v3324
      %3628 = vst.msk [vmem:[%s248 + $0x2a8] sm:$0xff] %vm3542, %v3329
      %3629 = vst.msk [vmem:[%s248 + $0x2b0] sm:$0xff] %vm3542, %v3334
      %3630 = vst.msk [vmem:[%s248 + $0x2b8] sm:$0xff] %vm3542, %v3339
      %3631 = vst.msk [vmem:[%s248 + $0x2c0] sm:$0xff] %vm3542, %v3344
      %3632 = vst.msk [vmem:[%s248 + $0x2c8] sm:$0xff] %vm3542, %v3349
      %3633 = vst.msk [vmem:[%s248 + $0x2d0] sm:$0xff] %vm3542, %v3354
      %3634 = vst.msk [vmem:[%s248 + $0x2d8] sm:$0xff] %vm3542, %v3359
      %3635 = vst.msk [vmem:[%s248 + $0x2e0] sm:$0xff] %vm3542, %v3364
      %3636 = vst.msk [vmem:[%s248 + $0x2e8] sm:$0xff] %vm3542, %v3369
      %3637 = vst.msk [vmem:[%s248 + $0x2f0] sm:$0xff] %vm3542, %v3374
      %3638 = vst.msk [vmem:[%s248 + $0x2f8] sm:$0xff] %vm3542, %v3379
      %3639 = vst.msk [vmem:[%s248 + $0x300] sm:$0xff] %vm3542, %v3384
      %3640 = vst.msk [vmem:[%s248 + $0x308] sm:$0xff] %vm3542, %v3389
      %3641 = vst.msk [vmem:[%s248 + $0x310] sm:$0xff] %vm3542, %v3394
      %3642 = vst.msk [vmem:[%s248 + $0x318] sm:$0xff] %vm3542, %v3399
      %3643 = vst.msk [vmem:[%s248 + $0x320] sm:$0xff] %vm3542, %v3404
      %3644 = vst.msk [vmem:[%s248 + $0x328] sm:$0xff] %vm3542, %v3409
      %3645 = vst.msk [vmem:[%s248 + $0x330] sm:$0xff] %vm3542, %v3414
      %3646 = vst.msk [vmem:[%s248 + $0x338] sm:$0xff] %vm3542, %v3419
      %3647 = vst.msk [vmem:[%s248 + $0x340] sm:$0xff] %vm3542, %v3424
      %3648 = vst.msk [vmem:[%s248 + $0x348] sm:$0xff] %vm3542, %v3429
      %3649 = vst.msk [vmem:[%s248 + $0x350] sm:$0xff] %vm3542, %v3434
      %3650 = vst.msk [vmem:[%s248 + $0x358] sm:$0xff] %vm3542, %v3439
      %3651 = vst.msk [vmem:[%s248 + $0x360] sm:$0xff] %vm3542, %v3444
      %3652 = vst.msk [vmem:[%s248 + $0x368] sm:$0xff] %vm3542, %v3449
      %3653 = vst.msk [vmem:[%s248 + $0x370] sm:$0xff] %vm3542, %v3454
      %3654 = vst.msk [vmem:[%s248 + $0x378] sm:$0xff] %vm3542, %v3459
      %3655 = vst.msk [vmem:[%s248 + $0x380] sm:$0xff] %vm3542, %v3464
      %3656 = vst.msk [vmem:[%s248 + $0x388] sm:$0xff] %vm3542, %v3469
      %3657 = vst.msk [vmem:[%s248 + $0x390] sm:$0xff] %vm3542, %v3474
      %3658 = vst.msk [vmem:[%s248 + $0x398] sm:$0xff] %vm3542, %v3479
      %3659 = vst.msk [vmem:[%s248 + $0x3a0] sm:$0xff] %vm3542, %v3484
      %3660 = vst.msk [vmem:[%s248 + $0x3a8] sm:$0xff] %vm3542, %v3489
      %3661 = vst.msk [vmem:[%s248 + $0x3b0] sm:$0xff] %vm3542, %v3494
      %3662 = vst.msk [vmem:[%s248 + $0x3b8] sm:$0xff] %vm3542, %v3499
      %3663 = vst.msk [vmem:[%s248 + $0x3c0] sm:$0xff] %vm3542, %v3504
      %3664 = vst.msk [vmem:[%s248 + $0x3c8] sm:$0xff] %vm3542, %v3509
      %3665 = vst.msk [vmem:[%s248 + $0x3d0] sm:$0xff] %vm3542, %v3514
      %3666 = vst.msk [vmem:[%s248 + $0x3d8] sm:$0xff] %vm3542, %v3519
      %3667 = vst.msk [vmem:[%s248 + $0x3e0] sm:$0xff] %vm3542, %v3524
      %3668 = vst.msk [vmem:[%s248 + $0x3e8] sm:$0xff] %vm3542, %v3529
      %3669 = vst.msk [vmem:[%s248 + $0x3f0] sm:$0xff] %vm3542, %v3534
      %3670 = vst.msk [vmem:[%s248 + $0x3f8] sm:$0xff] %vm3542, %v3539
      %s3671 = smul.u32 128, %s16
      %p3672 = scmp.lt.s32.totalorder %s3671, 255
      %s3673 = scalar_select %p3672, %s3671, 255
      %s3674 = smul.addr %s3673, 8
      %s3675 = scalar_lea.vmem %s5, %s3674
      // Predicated region
      $region41: #{tpu_custom_call.1} parent=39 // pred_check
        %p3676 = pneg %p149
      $region42: #{tpu_custom_call.1} parent=39 // pred_check_branch
        %3678 = sbr.rel (%p3676) target = $region44
      $region43: #{tpu_custom_call.1} parent=39 // pred_region
        %s3679 = smul.u32 128, %s16
      $region44: #{tpu_custom_call.1} parent=39 // pred_fallthru
        _
    $region40: #{tpu_custom_call.1} parent=5 // pred_fallthru
      _
    %p3680 = scmp.le.s32.totalorder 2, %s11
    // Predicated region
    $region45: #{tpu_custom_call.1} parent=5 // pred_check
      %p3681 = pneg %p3680
    $region46: #{tpu_custom_call.1} parent=5 // pred_check_branch
      %3683 = sbr.rel (%p3681) target = $region48
    $region47: #{tpu_custom_call.1} parent=5 // pred_region
      %s3684 = ssub.s32 %s11, 2
      // Predicated region
      $region49: #{tpu_custom_call.1} parent=47 // pred_check
        %p3685 = pneg %p155
      $region50: #{tpu_custom_call.1} parent=47 // pred_check_branch
        %3687 = sbr.rel (%p3685) target = $region52
      $region51: #{tpu_custom_call.1} parent=47 // pred_region
        %s3688 = smul.u32 128, %s17
        %p3689 = scmp.lt.s32.totalorder %s3688, 255
        %s3690 = scalar_select %p3689, %s3688, 255
        %s3691 = smul.addr %s3690, 8
        %s3692 = scalar_lea.vmem %s5, %s3691
      $region52: #{tpu_custom_call.1} parent=47 // pred_fallthru
        _
    $region48: #{tpu_custom_call.1} parent=5 // pred_fallthru
      _
  $region6: #{tpu_custom_call.1} parent=0 // loop_footer
    %s15 = sadd.s32 1, %s11
  $region7: #{tpu_custom_call.1} parent=0 // loop_footer_branch
    %10 = sbr.rel target = $region3
  $region8: #{tpu_custom_call.1} parent=0 // loop_exit
    _

</llo_original>
